<compile_context>
chip_gen: v7x
topology: tpu7x:2x2x1
jax: 0.10.0
libtpu: 0.0.40
codegen_flags: <defaults>
</compile_context>

<pallas_src>
import math

import jax
import jax.numpy as jnp
from jax import lax
from jax.experimental import pallas as pl
from jax.experimental.pallas import tpu as pltpu

# ----------------------------- configuration --------------------------------
Z_DIM = 128          # z_dim == w_dim (module requires them equal)
W_DIM = Z_DIM
NUM_LAYERS = 8
NUM_WS = 4
LR_MUL = 0.01
LRELU_SLOPE = 0.2
FUSED_LRELU_SCALE = math.sqrt(2.0)
PIXELNORM_EPS = 1e-8

# TILE_M = rows fed to the MXU per grid step. 128 is safe on all generations;
# 256 better fills the 256-wide MXU on v6e/v7x when the batch allows.
DEFAULT_TILE_M = 128


# -------------------- one-time parameter preparation (not per-call) ----------
def prepare_mapping_params(weights, biases, lr_mul=LR_MUL):
    """weights: [L, out, in] (PyTorch EqualLinear layout); biases: [L, out].

    Returns:
      w_folded: [L, in, out] bf16, with the equal-lr scale (lr_mul/sqrt(in))
                folded in BEFORE the bf16 cast (keeps values O(1/sqrt(D))).
      b_folded: [L, 1, out] f32, with lr_mul folded in.
    Call this once at init / parameter-load time, not every forward.
    """
    L, d_out, d_in = weights.shape
    scale = (1.0 / math.sqrt(d_in)) * lr_mul
    w_folded = (
        jnp.transpose(weights, (0, 2, 1)).astype(jnp.float32) * scale
    ).astype(jnp.bfloat16)
    b_folded = (biases.astype(jnp.float32) * lr_mul).reshape(L, 1, d_out)
    return w_folded, b_folded


# ------------------------------- Pallas kernel -------------------------------
def _mapping_kernel(z_ref, w_ref, b_ref, out_ref):
    """z_ref:   [TILE_M, D] f32
       w_ref:   [L, D, D]  bf16  ([layer, in, out], equal-lr scale folded in)
       b_ref:   [L, 1, D]  f32   (lr_mul folded in)
       out_ref: [TILE_M, NUM_WS, D] f32 (replicated W output)."""
    x = z_ref[...].astype(jnp.float32)

    # PixelNorm over the feature (lane) axis — f32 VPU/EUP math.
    x = x * lax.rsqrt(jnp.mean(x * x, axis=1, keepdims=True) + PIXELNORM_EPS)

    # num_layers EqualLinear + fused_leaky_relu, unrolled (static trip count).
    for layer in range(NUM_LAYERS):
        # MXU: bf16 operands, f32 accumulation. Scale already folded into w.
        y = jnp.dot(
            x.astype(jnp.bfloat16), w_ref[layer],
            preferred_element_type=jnp.float32,
        )
        y = y + b_ref[layer]                       # bias (lr_mul pre-folded), f32
        x = jnp.where(y >= 0.0, y, LRELU_SLOPE * y) * FUSED_LRELU_SCALE

    # Emit the replicated [TILE_M, NUM_WS, D] output directly (lane-dense, D=128).
    out_ref[...] = jnp.broadcast_to(x[:, None, :], out_ref.shape).astype(out_ref.dtype)


# --------------------------------- wrapper -----------------------------------
def mapping_network_forward(z, w_folded, b_folded, num_ws=NUM_WS,
                            tile_m=DEFAULT_TILE_M):
    """z: [B, z_dim] ; w_folded/b_folded from prepare_mapping_params().
    Returns [B, num_ws, w_dim] (or [B, w_dim] if num_ws is None)."""
    B, D = z.shape
    L = w_folded.shape[0]
    n_ws = num_ws if num_ws is not None else 1

    # Pad batch to a multiple of tile_m (zeros are safe through pixelnorm).
    n_tiles = pl.cdiv(B, tile_m)
    padded_B = n_tiles * tile_m
    z_f32 = z.astype(jnp.float32)
    if padded_B != B:
        z_f32 = jnp.pad(z_f32, ((0, padded_B - B), (0, 0)))

    out = pl.pallas_call(
        _mapping_kernel,
        out_shape=jax.ShapeDtypeStruct((padded_B, n_ws, D), jnp.float32),
        grid_spec=pltpu.PrefetchScalarGridSpec(
            num_scalar_prefetch=0,
            grid=(n_tiles,),
            in_specs=[
                pl.BlockSpec((tile_m, D), lambda i: (i, 0)),
                # Constant index_map -> weights/bias stay VMEM-resident.
                pl.BlockSpec((L, D, D), lambda i: (0, 0, 0)),
                pl.BlockSpec((L, 1, D), lambda i: (0, 0, 0)),
            ],
            out_specs=pl.BlockSpec((tile_m, n_ws, D), lambda i: (i, 0, 0)),
        ),
        compiler_params=pltpu.CompilerParams(
            dimension_semantics=("parallel",),   # megacore-shardable batch axis
        ),
    )(z_f32, w_folded, b_folded)

    out = out[:B]
    if num_ws is None:
        out = out[:, 0, :]
    # TODO(synk): truncation (psi != 1.0) needs the 2000-sample w_avg estimation
    # loop (_estimate_w_avg_original); default forward (psi=1.0) doesn't use it.
    return out


# ------------------------- pure-JAX references (checks) -----------------------
def _reference_forward_f32(z, weights, biases, num_ws=NUM_WS):
    """Exact f32 PyTorch-semantics reference ([L, out, in] weights)."""
    D = z.shape[1]
    scale = (1.0 / math.sqrt(D)) * LR_MUL
    x = z * lax.rsqrt(jnp.mean(z * z, axis=1, keepdims=True) + PIXELNORM_EPS)
    for layer in range(weights.shape[0]):
        y = x @ (weights[layer] * scale).T + biases[layer] * LR_MUL
        x = jnp.where(y >= 0.0, y, LRELU_SLOPE * y) * FUSED_LRELU_SCALE
    if num_ws is not None:
        x = jnp.broadcast_to(x[:, None, :], (x.shape[0], num_ws, D))
    return x


def _reference_forward_matched(z, w_folded, b_folded, num_ws=NUM_WS):
    """Precision-matched reference: same folded bf16 weights / f32 accumulate."""
    x = z.astype(jnp.float32)
    x = x * lax.rsqrt(jnp.mean(x * x, axis=1, keepdims=True) + PIXELNORM_EPS)
    for layer in range(w_folded.shape[0]):
        y = jnp.dot(x.astype(jnp.bfloat16), w_folded[layer],
                    preferred_element_type=jnp.float32)
        y = y + b_folded[layer]
        x = jnp.where(y >= 0.0, y, LRELU_SLOPE * y) * FUSED_LRELU_SCALE
    if num_ws is not None:
        x = jnp.broadcast_to(x[:, None, :], (x.shape[0], num_ws, x.shape[1]))
    return x


# ----------------------------------- main ------------------------------------
if __name__ == "__main__":
    key = jax.random.PRNGKey(0)
    k_z, k_w = jax.random.split(key)

    # Non-multiple-of-tile batch to exercise padding + a multi-step grid.
    B = 200
    # Deterministic parameters matching EqualLinear.__init__:
    #   weight = randn(out, in) / lr_mul ; bias = zeros(out)
    weights = (
        jax.random.normal(k_w, (NUM_LAYERS, W_DIM, Z_DIM), dtype=jnp.float32) / LR_MUL
    )
    biases = jnp.zeros((NUM_LAYERS, W_DIM), dtype=jnp.float32)
    z = jax.random.normal(k_z, (B, Z_DIM), dtype=jnp.float32)

    # Parameter prep happens ONCE, off the forward path.
    w_folded, b_folded = prepare_mapping_params(weights, biases)

    out = mapping_network_forward(z, w_folded, b_folded, num_ws=NUM_WS)
    out = jax.block_until_ready(out)
    assert out.shape == (B, NUM_WS, W_DIM), out.shape

    # Tight check vs a precision-matched (same bf16 weights) reference.
    ref_matched = _reference_forward_matched(z, w_folded, b_folded, num_ws=NUM_WS)
    assert jnp.allclose(out, ref_matched, atol=1e-3, rtol=1e-3), \
        "mismatch vs precision-matched reference"

    # Loose check vs the exact f32 PyTorch-semantics reference
    # (bf16 weight cast over 8 layers -> small accumulated error).
    ref_f32 = _reference_forward_f32(z, weights, biases, num_ws=NUM_WS)
    assert jnp.allclose(out, ref_f32, atol=1e-1, rtol=1e-1), \
        "mismatch vs exact f32 reference"

    print("KERNEL_OK")
</pallas_src>

<mosaic_0001>
module attributes {stable_mosaic.version = 11 : i64} {
  func.func @_mapping_kernel(%arg0: i32, %arg1: memref<128x128xf32, #tpu.memory_space<vmem>>, %arg2: memref<8x128x128xbf16, #tpu.memory_space<vmem>>, %arg3: memref<8x1x128xf32, #tpu.memory_space<vmem>>, %arg4: memref<128x4x128xf32, #tpu.memory_space<vmem>>) attributes {dimension_semantics = [#tpu.dimension_semantics<parallel>], iteration_bounds = array<i64: 2>, scalar_prefetch = 0 : i64, scratch_operands = 0 : i64, tpu.core_type = #tpu.core_type<tc>, window_params = [{transform_indices = @transform_0, window_bounds = array<i64: 128, 128>}, {pipeline_mode = #tpu.pipeline_mode<synchronous>, transform_indices = @transform_1, window_bounds = array<i64: 8, 128, 128>}, {pipeline_mode = #tpu.pipeline_mode<synchronous>, transform_indices = @transform_2, window_bounds = array<i64: 8, 1, 128>}, {transform_indices = @transform_3, window_bounds = array<i64: 128, 4, 128>}]} {
    %c0 = arith.constant 0 : index
    %c0_0 = arith.constant 0 : index
    %0 = vector.load %arg1[%c0, %c0_0] : memref<128x128xf32, #tpu.memory_space<vmem>>, vector<128x128xf32>
    %1 = arith.mulf %0, %0 : vector<128x128xf32>
    %cst = arith.constant dense<0.000000e+00> : vector<128xf32>
    %2 = vector.multi_reduction <add>, %1, %cst [1] : vector<128x128xf32> to vector<128xf32>
    %3 = vector.shape_cast %2 : vector<128xf32> to vector<128x1xf32>
    %cst_1 = arith.constant 1.280000e+02 : f32
    %4 = vector.broadcast %cst_1 : f32 to vector<128x1xf32>
    %5 = arith.divf %3, %4 : vector<128x1xf32>
    %cst_2 = arith.constant 9.99999993E-9 : f32
    %6 = vector.broadcast %cst_2 : f32 to vector<128x1xf32>
    %7 = arith.addf %5, %6 : vector<128x1xf32>
    %8 = math.rsqrt %7 : vector<128x1xf32>
    %9 = vector.broadcast %8 : vector<128x1xf32> to vector<128x128xf32>
    %10 = arith.mulf %0, %9 : vector<128x128xf32>
    %11 = arith.truncf %10 : vector<128x128xf32> to vector<128x128xbf16>
    %c0_3 = arith.constant 0 : index
    %c0_4 = arith.constant 0 : index
    %c0_5 = arith.constant 0 : index
    %12 = vector.load %arg2[%c0_3, %c0_4, %c0_5] : memref<8x128x128xbf16, #tpu.memory_space<vmem>>, vector<1x128x128xbf16>
    %13 = vector.shape_cast %12 : vector<1x128x128xbf16> to vector<128x128xbf16>
    %cst_6 = arith.constant dense<0.000000e+00> : vector<128x128xf32>
    %14 = tpu.matmul %11, %13, %cst_6 {dimension_numbers = #tpu.dot_dimension_numbers<[1], [0], [0], [1], [0, 0, 1, 1], [], []>} : vector<128x128xbf16>, vector<128x128xbf16>, vector<128x128xf32> -> vector<128x128xf32>
    %c0_7 = arith.constant 0 : index
    %c0_8 = arith.constant 0 : index
    %c0_9 = arith.constant 0 : index
    %15 = vector.load %arg3[%c0_7, %c0_8, %c0_9] : memref<8x1x128xf32, #tpu.memory_space<vmem>>, vector<1x1x128xf32>
    %16 = vector.shape_cast %15 : vector<1x1x128xf32> to vector<1x128xf32>
    %17 = vector.broadcast %16 : vector<1x128xf32> to vector<128x128xf32>
    %18 = arith.addf %14, %17 : vector<128x128xf32>
    %cst_10 = arith.constant 0.000000e+00 : f32
    %19 = vector.broadcast %cst_10 : f32 to vector<128x128xf32>
    %20 = arith.cmpf oge, %18, %19 : vector<128x128xf32>
    %cst_11 = arith.constant 2.000000e-01 : f32
    %21 = vector.broadcast %cst_11 : f32 to vector<128x128xf32>
    %22 = arith.mulf %21, %18 : vector<128x128xf32>
    %23 = arith.select %20, %18, %22 : vector<128x128xi1>, vector<128x128xf32>
    %cst_12 = arith.constant 1.41421354 : f32
    %24 = vector.broadcast %cst_12 : f32 to vector<128x128xf32>
    %25 = arith.mulf %23, %24 : vector<128x128xf32>
    %26 = arith.truncf %25 : vector<128x128xf32> to vector<128x128xbf16>
    %c1 = arith.constant 1 : index
    %c0_13 = arith.constant 0 : index
    %c0_14 = arith.constant 0 : index
    %27 = vector.load %arg2[%c1, %c0_13, %c0_14] : memref<8x128x128xbf16, #tpu.memory_space<vmem>>, vector<1x128x128xbf16>
    %28 = vector.shape_cast %27 : vector<1x128x128xbf16> to vector<128x128xbf16>
    %cst_15 = arith.constant dense<0.000000e+00> : vector<128x128xf32>
    %29 = tpu.matmul %26, %28, %cst_15 {dimension_numbers = #tpu.dot_dimension_numbers<[1], [0], [0], [1], [0, 0, 1, 1], [], []>} : vector<128x128xbf16>, vector<128x128xbf16>, vector<128x128xf32> -> vector<128x128xf32>
    %c1_16 = arith.constant 1 : index
    %c0_17 = arith.constant 0 : index
    %c0_18 = arith.constant 0 : index
    %30 = vector.load %arg3[%c1_16, %c0_17, %c0_18] : memref<8x1x128xf32, #tpu.memory_space<vmem>>, vector<1x1x128xf32>
    %31 = vector.shape_cast %30 : vector<1x1x128xf32> to vector<1x128xf32>
    %32 = vector.broadcast %31 : vector<1x128xf32> to vector<128x128xf32>
    %33 = arith.addf %29, %32 : vector<128x128xf32>
    %cst_19 = arith.constant 0.000000e+00 : f32
    %34 = vector.broadcast %cst_19 : f32 to vector<128x128xf32>
    %35 = arith.cmpf oge, %33, %34 : vector<128x128xf32>
    %cst_20 = arith.constant 2.000000e-01 : f32
    %36 = vector.broadcast %cst_20 : f32 to vector<128x128xf32>
    %37 = arith.mulf %36, %33 : vector<128x128xf32>
    %38 = arith.select %35, %33, %37 : vector<128x128xi1>, vector<128x128xf32>
    %cst_21 = arith.constant 1.41421354 : f32
    %39 = vector.broadcast %cst_21 : f32 to vector<128x128xf32>
    %40 = arith.mulf %38, %39 : vector<128x128xf32>
    %41 = arith.truncf %40 : vector<128x128xf32> to vector<128x128xbf16>
    %c2 = arith.constant 2 : index
    %c0_22 = arith.constant 0 : index
    %c0_23 = arith.constant 0 : index
    %42 = vector.load %arg2[%c2, %c0_22, %c0_23] : memref<8x128x128xbf16, #tpu.memory_space<vmem>>, vector<1x128x128xbf16>
    %43 = vector.shape_cast %42 : vector<1x128x128xbf16> to vector<128x128xbf16>
    %cst_24 = arith.constant dense<0.000000e+00> : vector<128x128xf32>
    %44 = tpu.matmul %41, %43, %cst_24 {dimension_numbers = #tpu.dot_dimension_numbers<[1], [0], [0], [1], [0, 0, 1, 1], [], []>} : vector<128x128xbf16>, vector<128x128xbf16>, vector<128x128xf32> -> vector<128x128xf32>
    %c2_25 = arith.constant 2 : index
    %c0_26 = arith.constant 0 : index
    %c0_27 = arith.constant 0 : index
    %45 = vector.load %arg3[%c2_25, %c0_26, %c0_27] : memref<8x1x128xf32, #tpu.memory_space<vmem>>, vector<1x1x128xf32>
    %46 = vector.shape_cast %45 : vector<1x1x128xf32> to vector<1x128xf32>
    %47 = vector.broadcast %46 : vector<1x128xf32> to vector<128x128xf32>
    %48 = arith.addf %44, %47 : vector<128x128xf32>
    %cst_28 = arith.constant 0.000000e+00 : f32
    %49 = vector.broadcast %cst_28 : f32 to vector<128x128xf32>
    %50 = arith.cmpf oge, %48, %49 : vector<128x128xf32>
    %cst_29 = arith.constant 2.000000e-01 : f32
    %51 = vector.broadcast %cst_29 : f32 to vector<128x128xf32>
    %52 = arith.mulf %51, %48 : vector<128x128xf32>
    %53 = arith.select %50, %48, %52 : vector<128x128xi1>, vector<128x128xf32>
    %cst_30 = arith.constant 1.41421354 : f32
    %54 = vector.broadcast %cst_30 : f32 to vector<128x128xf32>
    %55 = arith.mulf %53, %54 : vector<128x128xf32>
    %56 = arith.truncf %55 : vector<128x128xf32> to vector<128x128xbf16>
    %c3 = arith.constant 3 : index
    %c0_31 = arith.constant 0 : index
    %c0_32 = arith.constant 0 : index
    %57 = vector.load %arg2[%c3, %c0_31, %c0_32] : memref<8x128x128xbf16, #tpu.memory_space<vmem>>, vector<1x128x128xbf16>
    %58 = vector.shape_cast %57 : vector<1x128x128xbf16> to vector<128x128xbf16>
    %cst_33 = arith.constant dense<0.000000e+00> : vector<128x128xf32>
    %59 = tpu.matmul %56, %58, %cst_33 {dimension_numbers = #tpu.dot_dimension_numbers<[1], [0], [0], [1], [0, 0, 1, 1], [], []>} : vector<128x128xbf16>, vector<128x128xbf16>, vector<128x128xf32> -> vector<128x128xf32>
    %c3_34 = arith.constant 3 : index
    %c0_35 = arith.constant 0 : index
    %c0_36 = arith.constant 0 : index
    %60 = vector.load %arg3[%c3_34, %c0_35, %c0_36] : memref<8x1x128xf32, #tpu.memory_space<vmem>>, vector<1x1x128xf32>
    %61 = vector.shape_cast %60 : vector<1x1x128xf32> to vector<1x128xf32>
    %62 = vector.broadcast %61 : vector<1x128xf32> to vector<128x128xf32>
    %63 = arith.addf %59, %62 : vector<128x128xf32>
    %cst_37 = arith.constant 0.000000e+00 : f32
    %64 = vector.broadcast %cst_37 : f32 to vector<128x128xf32>
    %65 = arith.cmpf oge, %63, %64 : vector<128x128xf32>
    %cst_38 = arith.constant 2.000000e-01 : f32
    %66 = vector.broadcast %cst_38 : f32 to vector<128x128xf32>
    %67 = arith.mulf %66, %63 : vector<128x128xf32>
    %68 = arith.select %65, %63, %67 : vector<128x128xi1>, vector<128x128xf32>
    %cst_39 = arith.constant 1.41421354 : f32
    %69 = vector.broadcast %cst_39 : f32 to vector<128x128xf32>
    %70 = arith.mulf %68, %69 : vector<128x128xf32>
    %71 = arith.truncf %70 : vector<128x128xf32> to vector<128x128xbf16>
    %c4 = arith.constant 4 : index
    %c0_40 = arith.constant 0 : index
    %c0_41 = arith.constant 0 : index
    %72 = vector.load %arg2[%c4, %c0_40, %c0_41] : memref<8x128x128xbf16, #tpu.memory_space<vmem>>, vector<1x128x128xbf16>
    %73 = vector.shape_cast %72 : vector<1x128x128xbf16> to vector<128x128xbf16>
    %cst_42 = arith.constant dense<0.000000e+00> : vector<128x128xf32>
    %74 = tpu.matmul %71, %73, %cst_42 {dimension_numbers = #tpu.dot_dimension_numbers<[1], [0], [0], [1], [0, 0, 1, 1], [], []>} : vector<128x128xbf16>, vector<128x128xbf16>, vector<128x128xf32> -> vector<128x128xf32>
    %c4_43 = arith.constant 4 : index
    %c0_44 = arith.constant 0 : index
    %c0_45 = arith.constant 0 : index
    %75 = vector.load %arg3[%c4_43, %c0_44, %c0_45] : memref<8x1x128xf32, #tpu.memory_space<vmem>>, vector<1x1x128xf32>
    %76 = vector.shape_cast %75 : vector<1x1x128xf32> to vector<1x128xf32>
    %77 = vector.broadcast %76 : vector<1x128xf32> to vector<128x128xf32>
    %78 = arith.addf %74, %77 : vector<128x128xf32>
    %cst_46 = arith.constant 0.000000e+00 : f32
    %79 = vector.broadcast %cst_46 : f32 to vector<128x128xf32>
    %80 = arith.cmpf oge, %78, %79 : vector<128x128xf32>
    %cst_47 = arith.constant 2.000000e-01 : f32
    %81 = vector.broadcast %cst_47 : f32 to vector<128x128xf32>
    %82 = arith.mulf %81, %78 : vector<128x128xf32>
    %83 = arith.select %80, %78, %82 : vector<128x128xi1>, vector<128x128xf32>
    %cst_48 = arith.constant 1.41421354 : f32
    %84 = vector.broadcast %cst_48 : f32 to vector<128x128xf32>
    %85 = arith.mulf %83, %84 : vector<128x128xf32>
    %86 = arith.truncf %85 : vector<128x128xf32> to vector<128x128xbf16>
    %c5 = arith.constant 5 : index
    %c0_49 = arith.constant 0 : index
    %c0_50 = arith.constant 0 : index
    %87 = vector.load %arg2[%c5, %c0_49, %c0_50] : memref<8x128x128xbf16, #tpu.memory_space<vmem>>, vector<1x128x128xbf16>
    %88 = vector.shape_cast %87 : vector<1x128x128xbf16> to vector<128x128xbf16>
    %cst_51 = arith.constant dense<0.000000e+00> : vector<128x128xf32>
    %89 = tpu.matmul %86, %88, %cst_51 {dimension_numbers = #tpu.dot_dimension_numbers<[1], [0], [0], [1], [0, 0, 1, 1], [], []>} : vector<128x128xbf16>, vector<128x128xbf16>, vector<128x128xf32> -> vector<128x128xf32>
    %c5_52 = arith.constant 5 : index
    %c0_53 = arith.constant 0 : index
    %c0_54 = arith.constant 0 : index
    %90 = vector.load %arg3[%c5_52, %c0_53, %c0_54] : memref<8x1x128xf32, #tpu.memory_space<vmem>>, vector<1x1x128xf32>
    %91 = vector.shape_cast %90 : vector<1x1x128xf32> to vector<1x128xf32>
    %92 = vector.broadcast %91 : vector<1x128xf32> to vector<128x128xf32>
    %93 = arith.addf %89, %92 : vector<128x128xf32>
    %cst_55 = arith.constant 0.000000e+00 : f32
    %94 = vector.broadcast %cst_55 : f32 to vector<128x128xf32>
    %95 = arith.cmpf oge, %93, %94 : vector<128x128xf32>
    %cst_56 = arith.constant 2.000000e-01 : f32
    %96 = vector.broadcast %cst_56 : f32 to vector<128x128xf32>
    %97 = arith.mulf %96, %93 : vector<128x128xf32>
    %98 = arith.select %95, %93, %97 : vector<128x128xi1>, vector<128x128xf32>
    %cst_57 = arith.constant 1.41421354 : f32
    %99 = vector.broadcast %cst_57 : f32 to vector<128x128xf32>
    %100 = arith.mulf %98, %99 : vector<128x128xf32>
    %101 = arith.truncf %100 : vector<128x128xf32> to vector<128x128xbf16>
    %c6 = arith.constant 6 : index
    %c0_58 = arith.constant 0 : index
    %c0_59 = arith.constant 0 : index
    %102 = vector.load %arg2[%c6, %c0_58, %c0_59] : memref<8x128x128xbf16, #tpu.memory_space<vmem>>, vector<1x128x128xbf16>
    %103 = vector.shape_cast %102 : vector<1x128x128xbf16> to vector<128x128xbf16>
    %cst_60 = arith.constant dense<0.000000e+00> : vector<128x128xf32>
    %104 = tpu.matmul %101, %103, %cst_60 {dimension_numbers = #tpu.dot_dimension_numbers<[1], [0], [0], [1], [0, 0, 1, 1], [], []>} : vector<128x128xbf16>, vector<128x128xbf16>, vector<128x128xf32> -> vector<128x128xf32>
    %c6_61 = arith.constant 6 : index
    %c0_62 = arith.constant 0 : index
    %c0_63 = arith.constant 0 : index
    %105 = vector.load %arg3[%c6_61, %c0_62, %c0_63] : memref<8x1x128xf32, #tpu.memory_space<vmem>>, vector<1x1x128xf32>
    %106 = vector.shape_cast %105 : vector<1x1x128xf32> to vector<1x128xf32>
    %107 = vector.broadcast %106 : vector<1x128xf32> to vector<128x128xf32>
    %108 = arith.addf %104, %107 : vector<128x128xf32>
    %cst_64 = arith.constant 0.000000e+00 : f32
    %109 = vector.broadcast %cst_64 : f32 to vector<128x128xf32>
    %110 = arith.cmpf oge, %108, %109 : vector<128x128xf32>
    %cst_65 = arith.constant 2.000000e-01 : f32
    %111 = vector.broadcast %cst_65 : f32 to vector<128x128xf32>
    %112 = arith.mulf %111, %108 : vector<128x128xf32>
    %113 = arith.select %110, %108, %112 : vector<128x128xi1>, vector<128x128xf32>
    %cst_66 = arith.constant 1.41421354 : f32
    %114 = vector.broadcast %cst_66 : f32 to vector<128x128xf32>
    %115 = arith.mulf %113, %114 : vector<128x128xf32>
    %116 = arith.truncf %115 : vector<128x128xf32> to vector<128x128xbf16>
    %c7 = arith.constant 7 : index
    %c0_67 = arith.constant 0 : index
    %c0_68 = arith.constant 0 : index
    %117 = vector.load %arg2[%c7, %c0_67, %c0_68] : memref<8x128x128xbf16, #tpu.memory_space<vmem>>, vector<1x128x128xbf16>
    %118 = vector.shape_cast %117 : vector<1x128x128xbf16> to vector<128x128xbf16>
    %cst_69 = arith.constant dense<0.000000e+00> : vector<128x128xf32>
    %119 = tpu.matmul %116, %118, %cst_69 {dimension_numbers = #tpu.dot_dimension_numbers<[1], [0], [0], [1], [0, 0, 1, 1], [], []>} : vector<128x128xbf16>, vector<128x128xbf16>, vector<128x128xf32> -> vector<128x128xf32>
    %c7_70 = arith.constant 7 : index
    %c0_71 = arith.constant 0 : index
    %c0_72 = arith.constant 0 : index
    %120 = vector.load %arg3[%c7_70, %c0_71, %c0_72] : memref<8x1x128xf32, #tpu.memory_space<vmem>>, vector<1x1x128xf32>
    %121 = vector.shape_cast %120 : vector<1x1x128xf32> to vector<1x128xf32>
    %122 = vector.broadcast %121 : vector<1x128xf32> to vector<128x128xf32>
    %123 = arith.addf %119, %122 : vector<128x128xf32>
    %cst_73 = arith.constant 0.000000e+00 : f32
    %124 = vector.broadcast %cst_73 : f32 to vector<128x128xf32>
    %125 = arith.cmpf oge, %123, %124 : vector<128x128xf32>
    %cst_74 = arith.constant 2.000000e-01 : f32
    %126 = vector.broadcast %cst_74 : f32 to vector<128x128xf32>
    %127 = arith.mulf %126, %123 : vector<128x128xf32>
    %128 = arith.select %125, %123, %127 : vector<128x128xi1>, vector<128x128xf32>
    %cst_75 = arith.constant 1.41421354 : f32
    %129 = vector.broadcast %cst_75 : f32 to vector<128x128xf32>
    %130 = arith.mulf %128, %129 : vector<128x128xf32>
    %131 = vector.shape_cast %130 : vector<128x128xf32> to vector<128x1x128xf32>
    %132 = vector.shape_cast %131 : vector<128x1x128xf32> to vector<128x1x128xf32>
    %133 = vector.broadcast %132 : vector<128x1x128xf32> to vector<128x4x128xf32>
    %c0_76 = arith.constant 0 : index
    %c0_77 = arith.constant 0 : index
    %c0_78 = arith.constant 0 : index
    %134 = vector.load %arg4[%c0_76, %c0_77, %c0_78] : memref<128x4x128xf32, #tpu.memory_space<vmem>>, vector<128x4x128xf32>
    tpu.vector_store %arg4[%c0_76, %c0_77, %c0_78], %133 {strides = array<i32>} : memref<128x4x128xf32, #tpu.memory_space<vmem>>, vector<128x4x128xf32>,
    return
  }
  func.func @transform_0(%arg0: i32) -> (i32, i32) {
    %c0_i32 = arith.constant 0 : i32
    %c0_i32_0 = arith.constant 0 : i32
    return %arg0, %c0_i32 : i32, i32
  }
  func.func @transform_1(%arg0: i32) -> (i32, i32, i32) {
    %c0_i32 = arith.constant 0 : i32
    %c0_i32_0 = arith.constant 0 : i32
    %c0_i32_1 = arith.constant 0 : i32
    %c0_i32_2 = arith.constant 0 : i32
    return %c0_i32, %c0_i32_0, %c0_i32_1 : i32, i32, i32
  }
  func.func @transform_2(%arg0: i32) -> (i32, i32, i32) {
    %c0_i32 = arith.constant 0 : i32
    %c0_i32_0 = arith.constant 0 : i32
    %c0_i32_1 = arith.constant 0 : i32
    %c0_i32_2 = arith.constant 0 : i32
    return %c0_i32, %c0_i32_0, %c0_i32_1 : i32, i32, i32
  }
  func.func @transform_3(%arg0: i32) -> (i32, i32, i32) {
    %c0_i32 = arith.constant 0 : i32
    %c0_i32_0 = arith.constant 0 : i32
    %c0_i32_1 = arith.constant 0 : i32
    return %arg0, %c0_i32, %c0_i32_0 : i32, i32, i32
  }
}

</mosaic_0001>

<llo_original>
// kernel: tpu_custom_call.1
$region0: #{tpu_custom_call.1}
  #allocation0 [shape = 'u32[]', space=smem, size = 0x4, offset = 0x4, fixed_abs, tag = 'smem constant byte address 0x4 - core index']
  #allocation1 [shape = 'u32[144,128]{1,0:T(1,128)}', space=vmem, size = 0x12000, scoped, tag = 'internal scratch']
  %s0 = inlined_call_operand.hbm [shape: f32[256,128], index: 0, kind: input, shape index: {}]
  %s1 = inlined_call_operand.hbm [shape: bf16[8,128,128], index: 1, kind: input, shape index: {}]
  %s2 = inlined_call_operand.hbm [shape: f32[8,1,128], index: 2, kind: input, shape index: {}]
  %s3 = inlined_call_operand.hbm [shape: f32[256,4,128], index: 3, kind: output, shape index: {}]
  %s4 = sld [smem:[#allocation0]]
  $region57: #{tpu_custom_call.1} parent=0
    _
  %s6 = ssub.s32 1, %s4
  %s7 = scalar_select 0, %s6, %s4
  $region1: #{tpu_custom_call.1} parent=0
    #allocation2 [shape = 'u8[131072]{0}', space=vmem, size = 0x20000, scoped, tag = 'input window, operand 0']
    #allocation3 [shape = 's32[2]{0}', space=sflag, size = 0x8, scoped, tag = 'scoped memory for tpu_custom_call.1']
    #allocation4 [shape = 's32[2]{0}', space=sflag, size = 0x8, scoped, tag = 'scoped memory for tpu_custom_call.1']
    #allocation5 [shape = 'u8[262144]{0}', space=vmem, size = 0x40000, scoped, tag = 'input window, operand 1, single buffered']
    #allocation6 [shape = 's32[1]{0}', space=sflag, size = 0x4, scoped, tag = 'scoped memory for tpu_custom_call.1']
    #allocation7 [shape = 'u8[4096]{0}', space=vmem, size = 0x1000, scoped, tag = 'input window, operand 2, single buffered']
    #allocation8 [shape = 'u8[524288]{0}', space=vmem, size = 0x80000, scoped, tag = 'output window, operand 0']
    %8 = vsyncpa [#allocation3], 0
    %s9 = scalar_lea.sflag [#allocation3], 1
    %10 = vsyncpa %s9, 0
    %11 = vsyncpa [#allocation6], 0
    %12 = vsyncpa [#allocation4], 0
    %s13 = scalar_lea.sflag [#allocation4], 1
    %14 = vsyncpa %s13, 0
    loop: start=0, step=1, limit=4
    $region2: #{tpu_custom_call.1} parent=1 // loop_pre_header
      _
    $region3: #{tpu_custom_call.1} parent=1 // loop_header
      %s16 = sphi 0, %s20
      %p17 = scmp.ge.s32.totalorder %s16, 4
      %s26 = sphi 0, %s28
      %s29 = sphi 0, %s26
      %s30 = sphi 0, %s29
      %s46 = sphi 0, %s30
      %s50 = sphi 0, %s50
      %s52 = sphi 0, %s50
      %s53 = sphi 0, %s52
      %s67 = sphi 0, %s53
      %s71 = sphi 0, %s71
      %s73 = sphi 0, %s71
      %s74 = sphi 0, %s73
      %s88 = sphi 0, %s74
      %s94 = sphi 0, %s96
      %s97 = sphi 0, %s94
      %s98 = sphi 0, %s97
      %s114 = sphi 0, %s98
    $region4: #{tpu_custom_call.1} parent=1 // loop_header_branch
      %19 = sbr.rel (%p17) target = $region8
    $region5: #{tpu_custom_call.1} parent=1 // loop_body
      %s21 = ssub.s32 %s16, 1
      %s22 = ssub.s32 %s16, 2
      %s23 = sadd.s32 %s16, 1
      %s24 = ssub.s32 %s16, %s23
      %p25 = scmp.eq.s32.totalorder %s24, 0
      %s27 = sadd.s32 %s26, 1
      %s28 = scalar_select %p25, %s26, %s27
      %p31 = pneg %p25
      %p32 = scmp.eq.s32.totalorder %s16, 1
      %p33 = por %p31, %p32
      %p34 = scmp.ne.s32.totalorder %s26, %s29
      %p35 = scmp.eq.s32.totalorder %s16, 0
      %p36 = por %p34, %p35
      %p37 = scmp.ne.s32.totalorder %s26, %s29
      %p38 = scmp.eq.s32.totalorder %s21, 1
      %p39 = por %p37, %p38
      %p40 = scmp.ne.s32.totalorder %s29, %s30
      %p41 = scmp.eq.s32.totalorder %s21, 0
      %p42 = por %p40, %p41
      %p43 = scmp.ne.s32.totalorder %s29, %s30
      %p44 = scmp.eq.s32.totalorder %s22, 1
      %p45 = por %p43, %p44
      %p47 = scmp.ne.s32.totalorder %s30, %s46
      %p48 = scmp.eq.s32.totalorder %s22, 0
      %p49 = por %p47, %p48
      %s51 = sadd.s32 %s50, 1
      %p54 = scmp.eq.s32.totalorder %s16, 1
      %p55 = scmp.ne.s32.totalorder %s50, %s52
      %p56 = scmp.eq.s32.totalorder %s16, 0
      %p57 = por %p55, %p56
      %p58 = scmp.ne.s32.totalorder %s50, %s52
      %p59 = scmp.eq.s32.totalorder %s21, 1
      %p60 = por %p58, %p59
      %p61 = scmp.ne.s32.totalorder %s52, %s53
      %p62 = scmp.eq.s32.totalorder %s21, 0
      %p63 = por %p61, %p62
      %p64 = scmp.ne.s32.totalorder %s52, %s53
      %p65 = scmp.eq.s32.totalorder %s22, 1
      %p66 = por %p64, %p65
      %p68 = scmp.ne.s32.totalorder %s53, %s67
      %p69 = scmp.eq.s32.totalorder %s22, 0
      %p70 = por %p68, %p69
      %s72 = sadd.s32 %s71, 1
      %p75 = scmp.eq.s32.totalorder %s16, 1
      %p76 = scmp.ne.s32.totalorder %s71, %s73
      %p77 = scmp.eq.s32.totalorder %s16, 0
      %p78 = por %p76, %p77
      %p79 = scmp.ne.s32.totalorder %s71, %s73
      %p80 = scmp.eq.s32.totalorder %s21, 1
      %p81 = por %p79, %p80
      %p82 = scmp.ne.s32.totalorder %s73, %s74
      %p83 = scmp.eq.s32.totalorder %s21, 0
      %p84 = por %p82, %p83
      %p85 = scmp.ne.s32.totalorder %s73, %s74
      %p86 = scmp.eq.s32.totalorder %s22, 1
      %p87 = por %p85, %p86
      %p89 = scmp.ne.s32.totalorder %s74, %s88
      %p90 = scmp.eq.s32.totalorder %s22, 0
      %p91 = por %p89, %p90
      %s92 = ssub.s32 %s16, %s23
      %p93 = scmp.eq.s32.totalorder %s92, 0
      %s95 = sadd.s32 %s94, 1
      %s96 = scalar_select %p93, %s94, %s95
      %p99 = pneg %p93
      %p100 = scmp.eq.s32.totalorder %s16, 1
      %p101 = por %p99, %p100
      %p102 = scmp.ne.s32.totalorder %s94, %s97
      %p103 = scmp.eq.s32.totalorder %s16, 0
      %p104 = por %p102, %p103
      %p105 = scmp.ne.s32.totalorder %s94, %s97
      %p106 = scmp.eq.s32.totalorder %s21, 1
      %p107 = por %p105, %p106
      %p108 = scmp.ne.s32.totalorder %s97, %s98
      %p109 = scmp.eq.s32.totalorder %s21, 0
      %p110 = por %p108, %p109
      %p111 = scmp.ne.s32.totalorder %s97, %s98
      %p112 = scmp.eq.s32.totalorder %s22, 1
      %p113 = por %p111, %p112
      %p115 = scmp.ne.s32.totalorder %s98, %s114
      %p116 = scmp.eq.s32.totalorder %s22, 0
      %p117 = por %p115, %p116
      %p118 = scmp.le.s32.totalorder 1, %s16
      %p119 = scmp.lt.s32.totalorder %s16, 3
      %p120 = pnand %p118, %p119
      %p121 = pneg %p120
      // Predicated region
      $region9: #{tpu_custom_call.1} parent=5 // pred_check
        _
      $region10: #{tpu_custom_call.1} parent=5 // pred_check_branch
        %123 = sbr.rel (%p120) target = $region12
      $region11: #{tpu_custom_call.1} parent=5 // pred_region
        %s124 = ssub.s32 %s16, 1
        // Predicated region
        $region13: #{tpu_custom_call.1} parent=11 // pred_check
          %p125 = pneg %p63
        $region14: #{tpu_custom_call.1} parent=11 // pred_check_branch
          %127 = sbr.rel (%p125) target = $region16
        $region15: #{tpu_custom_call.1} parent=11 // pred_region
          %s129 = ssub.s32 8192, 8192
          %130 = vsyncadd [#allocation6], %s129
          %s131 = sshll.u32 [#allocation5], 4
          %s132 = int_to_ptr.vmem [resolvable:$true] %s131
          %137 = dma.hbm_to_vmem [thread:$0]  %s1, 8192, %s132, [#allocation6], 64, 64, 4
        $region16: #{tpu_custom_call.1} parent=11 // pred_fallthru
          _
        // Predicated region
        $region17: #{tpu_custom_call.1} parent=11 // pred_check
          %p138 = pneg %p84
        $region18: #{tpu_custom_call.1} parent=11 // pred_check_branch
          %140 = sbr.rel (%p138) target = $region20
        $region19: #{tpu_custom_call.1} parent=11 // pred_region
          %s142 = ssub.s32 128, 128
          %143 = vsyncadd [#allocation6], %s142
          %s144 = sshll.u32 [#allocation7], 4
          %s145 = int_to_ptr.vmem [resolvable:$true] %s144
          %150 = dma.hbm_to_vmem [thread:$0]  %s2, 128, %s145, [#allocation6], 16, 16, 1
        $region20: #{tpu_custom_call.1} parent=11 // pred_fallthru
          _
      $region12: #{tpu_custom_call.1} parent=5 // pred_fallthru
        _
      %p151 = scmp.lt.s32.totalorder %s16, 2
      // Predicated region
      $region21: #{tpu_custom_call.1} parent=5 // pred_check
        %p152 = pneg %p151
      $region22: #{tpu_custom_call.1} parent=5 // pred_check_branch
        %154 = sbr.rel (%p152) target = $region24
      $region23: #{tpu_custom_call.1} parent=5 // pred_region
        // Predicated region
        $region25: #{tpu_custom_call.1} parent=23 // pred_check
          %p155 = pneg %p36
        $region26: #{tpu_custom_call.1} parent=23 // pred_check_branch
          %157 = sbr.rel (%p155) target = $region28
        $region27: #{tpu_custom_call.1} parent=23 // pred_region
          %s158 = sand.u32 %s26, 1
          %s159 = scalar_lea.sflag [#allocation3], %s158
          %s160 = sand.u32 %s26, 1
          %s161 = smul.addr %s160, 128
          %s162 = scalar_lea.vmem [#allocation2], %s161
          %s163 = smul.u32 16, %s16
          %s165 = ssub.s32 2048, 2048
          %166 = vsyncadd %s159, %s165
          %s167 = smul.addr %s163, 128
          %s168 = scalar_lea.hbm %s0, %s167
          %s169 = sshll.u32 %s162, 4
          %s170 = int_to_ptr.vmem [resolvable:$true] %s169
          %175 = dma.hbm_to_vmem [thread:$0]  %s168, 2048, %s170, %s159, 128, 128, 8
        $region28: #{tpu_custom_call.1} parent=23 // pred_fallthru
          _
      $region24: #{tpu_custom_call.1} parent=5 // pred_fallthru
        _
      %p176 = scmp.le.s32.totalorder 1, %s16
      %p177 = scmp.lt.s32.totalorder %s16, 3
      %p178 = pnand %p176, %p177
      %p179 = pneg %p178
      // Predicated region
      $region29: #{tpu_custom_call.1} parent=5 // pred_check
        _
      $region30: #{tpu_custom_call.1} parent=5 // pred_check_branch
        %181 = sbr.rel (%p178) target = $region32
      $region31: #{tpu_custom_call.1} parent=5 // pred_region
        %s182 = ssub.s32 %s16, 1
        %s183 = sand.u32 %s29, 1
        %s184 = scalar_lea.sflag [#allocation3], %s183
        %s185 = sand.u32 %s29, 1
        %s186 = smul.addr %s185, 128
        %s187 = scalar_lea.vmem [#allocation2], %s186
        // Predicated region
        $region33: #{tpu_custom_call.1} parent=31 // pred_check
          %p188 = pneg %p42
        $region34: #{tpu_custom_call.1} parent=31 // pred_check_branch
          %190 = sbr.rel (%p188) target = $region36
        $region35: #{tpu_custom_call.1} parent=31 // pred_region
          %191 = dma.done %s184, 2048
        $region36: #{tpu_custom_call.1} parent=31 // pred_fallthru
          _
        // Predicated region
        $region37: #{tpu_custom_call.1} parent=31 // pred_check
          %p192 = pneg %p63
        $region38: #{tpu_custom_call.1} parent=31 // pred_check_branch
          %194 = sbr.rel (%p192) target = $region40
        $region39: #{tpu_custom_call.1} parent=31 // pred_region
          %195 = dma.done [#allocation6], 8192
        $region40: #{tpu_custom_call.1} parent=31 // pred_fallthru
          _
        // Predicated region
        $region41: #{tpu_custom_call.1} parent=31 // pred_check
          %p196 = pneg %p84
        $region42: #{tpu_custom_call.1} parent=31 // pred_check_branch
          %198 = sbr.rel (%p196) target = $region44
        $region43: #{tpu_custom_call.1} parent=31 // pred_region
          %199 = dma.done [#allocation6], 128
        $region44: #{tpu_custom_call.1} parent=31 // pred_fallthru
          _
        %s200 = sand.u32 %s29, 1
        %s201 = scalar_lea.sflag [#allocation3], %s200
        %s202 = sand.u32 %s29, 1
        %s203 = smul.addr %s202, 128
        %s204 = scalar_lea.vmem [#allocation2], %s203
        %p205 = pneg %p42
        %p206 = pneg %p39
        %p207 = pneg %p63
        %p208 = pneg %p60
        %p209 = pneg %p84
        %p210 = pneg %p81
        %p211 = pneg %p110
        %p212 = pneg %p107
        %s213 = sand.u32 %s97, 1
        %s214 = scalar_lea.sflag [#allocation4], %s213
        %s215 = sand.u32 %s97, 1
        %s216 = smul.addr %s215, 512
        %s217 = scalar_lea.vmem [#allocation8], %s216
        %s218 = smul.u32 16, %s21
        %s219 = smul.u32 128, %s21
        %v221 = vld [vmem:[%s187] sm:$0xff]
        %v222 = vld [vmem:[%s187 + $0x8] sm:$0xff]
        %v223 = vld [vmem:[%s187 + $0x10] sm:$0xff]
        %v224 = vld [vmem:[%s187 + $0x18] sm:$0xff]
        %v225 = vld [vmem:[%s187 + $0x20] sm:$0xff]
        %v226 = vld [vmem:[%s187 + $0x28] sm:$0xff]
        %v227 = vld [vmem:[%s187 + $0x30] sm:$0xff]
        %v228 = vld [vmem:[%s187 + $0x38] sm:$0xff]
        %v229 = vld [vmem:[%s187 + $0x40] sm:$0xff]
        %v230 = vld [vmem:[%s187 + $0x48] sm:$0xff]
        %v231 = vld [vmem:[%s187 + $0x50] sm:$0xff]
        %v232 = vld [vmem:[%s187 + $0x58] sm:$0xff]
        %v233 = vld [vmem:[%s187 + $0x60] sm:$0xff]
        %v234 = vld [vmem:[%s187 + $0x68] sm:$0xff]
        %v235 = vld [vmem:[%s187 + $0x70] sm:$0xff]
        %v236 = vld [vmem:[%s187 + $0x78] sm:$0xff]
        %v237 = vmul.f32 %v221, %v221
        %v238 = vmul.f32 %v222, %v222
        %v239 = vmul.f32 %v223, %v223
        %v240 = vmul.f32 %v224, %v224
        %v241 = vmul.f32 %v225, %v225
        %v242 = vmul.f32 %v226, %v226
        %v243 = vmul.f32 %v227, %v227
        %v244 = vmul.f32 %v228, %v228
        %v245 = vmul.f32 %v229, %v229
        %v246 = vmul.f32 %v230, %v230
        %v247 = vmul.f32 %v231, %v231
        %v248 = vmul.f32 %v232, %v232
        %v249 = vmul.f32 %v233, %v233
        %v250 = vmul.f32 %v234, %v234
        %v251 = vmul.f32 %v235, %v235
        %v252 = vmul.f32 %v236, %v236
        %253 = vadd.xlane.f32.xlu0 %v237
        %v254 = vpop.xlane.xlu0 %253
        %255 = vadd.xlane.f32.xlu0 %v238
        %v256 = vpop.xlane.xlu0 %255
        %257 = vadd.xlane.f32.xlu0 %v239
        %v258 = vpop.xlane.xlu0 %257
        %259 = vadd.xlane.f32.xlu0 %v240
        %v260 = vpop.xlane.xlu0 %259
        %261 = vadd.xlane.f32.xlu0 %v241
        %v262 = vpop.xlane.xlu0 %261
        %263 = vadd.xlane.f32.xlu0 %v242
        %v264 = vpop.xlane.xlu0 %263
        %265 = vadd.xlane.f32.xlu0 %v243
        %v266 = vpop.xlane.xlu0 %265
        %267 = vadd.xlane.f32.xlu0 %v244
        %v268 = vpop.xlane.xlu0 %267
        %269 = vadd.xlane.f32.xlu0 %v245
        %v270 = vpop.xlane.xlu0 %269
        %271 = vadd.xlane.f32.xlu0 %v246
        %v272 = vpop.xlane.xlu0 %271
        %273 = vadd.xlane.f32.xlu0 %v247
        %v274 = vpop.xlane.xlu0 %273
        %275 = vadd.xlane.f32.xlu0 %v248
        %v276 = vpop.xlane.xlu0 %275
        %277 = vadd.xlane.f32.xlu0 %v249
        %v278 = vpop.xlane.xlu0 %277
        %279 = vadd.xlane.f32.xlu0 %v250
        %v280 = vpop.xlane.xlu0 %279
        %281 = vadd.xlane.f32.xlu0 %v251
        %v282 = vpop.xlane.xlu0 %281
        %283 = vadd.xlane.f32.xlu0 %v252
        %v284 = vpop.xlane.xlu0 %283
        %v285 = vrcp.pop 128.0
        %v286 = vmul.f32 %v254, %v285
        %v287 = vmul.f32 %v256, %v285
        %v288 = vmul.f32 %v258, %v285
        %v289 = vmul.f32 %v260, %v285
        %v290 = vmul.f32 %v262, %v285
        %v291 = vmul.f32 %v264, %v285
        %v292 = vmul.f32 %v266, %v285
        %v293 = vmul.f32 %v268, %v285
        %v294 = vmul.f32 %v270, %v285
        %v295 = vmul.f32 %v272, %v285
        %v296 = vmul.f32 %v274, %v285
        %v297 = vmul.f32 %v276, %v285
        %v298 = vmul.f32 %v278, %v285
        %v299 = vmul.f32 %v280, %v285
        %v300 = vmul.f32 %v282, %v285
        %v301 = vmul.f32 %v284, %v285
        %v302 = vadd.f32 %v286, 1e-08
        %v303 = vadd.f32 %v287, 1e-08
        %v304 = vadd.f32 %v288, 1e-08
        %v305 = vadd.f32 %v289, 1e-08
        %v306 = vadd.f32 %v290, 1e-08
        %v307 = vadd.f32 %v291, 1e-08
        %v308 = vadd.f32 %v292, 1e-08
        %v309 = vadd.f32 %v293, 1e-08
        %v310 = vadd.f32 %v294, 1e-08
        %v311 = vadd.f32 %v295, 1e-08
        %v312 = vadd.f32 %v296, 1e-08
        %v313 = vadd.f32 %v297, 1e-08
        %v314 = vadd.f32 %v298, 1e-08
        %v315 = vadd.f32 %v299, 1e-08
        %v316 = vadd.f32 %v300, 1e-08
        %v317 = vadd.f32 %v301, 1e-08
        %v318 = vrsqrt.pop %v302
        %v319 = vrsqrt.pop %v303
        %v320 = vrsqrt.pop %v304
        %v321 = vrsqrt.pop %v305
        %v322 = vrsqrt.pop %v306
        %v323 = vrsqrt.pop %v307
        %v324 = vrsqrt.pop %v308
        %v325 = vrsqrt.pop %v309
        %v326 = vrsqrt.pop %v310
        %v327 = vrsqrt.pop %v311
        %v328 = vrsqrt.pop %v312
        %v329 = vrsqrt.pop %v313
        %v330 = vrsqrt.pop %v314
        %v331 = vrsqrt.pop %v315
        %v332 = vrsqrt.pop %v316
        %v333 = vrsqrt.pop %v317
        %v334 = vmul.f32 %v221, %v318
        %v335 = vmul.f32 %v222, %v319
        %v336 = vmul.f32 %v223, %v320
        %v337 = vmul.f32 %v224, %v321
        %v338 = vmul.f32 %v225, %v322
        %v339 = vmul.f32 %v226, %v323
        %v340 = vmul.f32 %v227, %v324
        %v341 = vmul.f32 %v228, %v325
        %v342 = vmul.f32 %v229, %v326
        %v343 = vmul.f32 %v230, %v327
        %v344 = vmul.f32 %v231, %v328
        %v345 = vmul.f32 %v232, %v329
        %v346 = vmul.f32 %v233, %v330
        %v347 = vmul.f32 %v234, %v331
        %v348 = vmul.f32 %v235, %v332
        %v349 = vmul.f32 %v236, %v333
        %v350 = vpack.c.bf16 %v335, %v334
        %v351 = vpack.c.bf16 %v337, %v336
        %v352 = vpack.c.bf16 %v339, %v338
        %v353 = vpack.c.bf16 %v341, %v340
        %v354 = vpack.c.bf16 %v343, %v342
        %v355 = vpack.c.bf16 %v345, %v344
        %v356 = vpack.c.bf16 %v347, %v346
        %v357 = vpack.c.bf16 %v349, %v348
        %v358 = vld [vmem:[#allocation5] sm:$0xf]
        %v359 = vld [vmem:[#allocation5 + $0x4] sm:$0xf]
        %v360 = vld [vmem:[#allocation5 + $0x8] sm:$0xf]
        %v361 = vld [vmem:[#allocation5 + $0xc] sm:$0xf]
        %v362 = vld [vmem:[#allocation5 + $0x10] sm:$0xf]
        %v363 = vld [vmem:[#allocation5 + $0x14] sm:$0xf]
        %v364 = vld [vmem:[#allocation5 + $0x18] sm:$0xf]
        %v365 = vld [vmem:[#allocation5 + $0x1c] sm:$0xf]
        %v366 = vld [vmem:[#allocation5 + $0x20] sm:$0xf]
        %v367 = vld [vmem:[#allocation5 + $0x24] sm:$0xf]
        %v368 = vld [vmem:[#allocation5 + $0x28] sm:$0xf]
        %v369 = vld [vmem:[#allocation5 + $0x2c] sm:$0xf]
        %v370 = vld [vmem:[#allocation5 + $0x30] sm:$0xf]
        %v371 = vld [vmem:[#allocation5 + $0x34] sm:$0xf]
        %v372 = vld [vmem:[#allocation5 + $0x38] sm:$0xf]
        %v373 = vld [vmem:[#allocation5 + $0x3c] sm:$0xf]
        %v374 = vld [vmem:[#allocation7] sm:$0x1]
        %v376 = vlaneseq
        %v377 = vshrl.u32 %v376, 7
        %v378 = vsub.s32 0, %v377
        %v379 = vrot.slane %v374, %v378
        %v397 = vunpack.c.l.b16 %v358
        %v398 = vunpack.c.l.b16 %v359
        %v399 = vunpack.c.l.b16 %v360
        %v400 = vunpack.c.l.b16 %v361
        %v401 = vunpack.c.l.b16 %v362
        %v402 = vunpack.c.l.b16 %v363
        %v403 = vunpack.c.l.b16 %v364
        %v404 = vunpack.c.l.b16 %v365
        %v405 = vunpack.c.l.b16 %v366
        %v406 = vunpack.c.l.b16 %v367
        %v407 = vunpack.c.l.b16 %v368
        %v408 = vunpack.c.l.b16 %v369
        %v409 = vunpack.c.l.b16 %v370
        %v410 = vunpack.c.l.b16 %v371
        %v411 = vunpack.c.l.b16 %v372
        %v412 = vunpack.c.l.b16 %v373
        %v413 = vpack.c.b16 %v398, %v397
        %v414 = vpack.c.b16 %v400, %v399
        %v415 = vpack.c.b16 %v402, %v401
        %v416 = vpack.c.b16 %v404, %v403
        %v417 = vpack.c.b16 %v406, %v405
        %v418 = vpack.c.b16 %v408, %v407
        %v419 = vpack.c.b16 %v410, %v409
        %v420 = vpack.c.b16 %v412, %v411
        %429 = vmatprep.subr.bf16.mxu0 0
        %430 = vmatpush1.bf16.msra.mxu0 %v413
        %431 = vmatprep.subr.bf16.mxu0 0
        %432 = vmatpush1.bf16.msra.mxu0 %v414
        %433 = vmatprep.subr.bf16.mxu0 0
        %434 = vmatpush1.bf16.msra.mxu0 %v415
        %435 = vmatprep.subr.bf16.mxu0 0
        %436 = vmatpush1.bf16.msra.mxu0 %v416
        %437 = vmatprep.subr.bf16.mxu0 0
        %438 = vmatpush1.bf16.msra.mxu0 %v417
        %439 = vmatprep.subr.bf16.mxu0 0
        %440 = vmatpush1.bf16.msra.mxu0 %v418
        %441 = vmatprep.subr.bf16.mxu0 0
        %442 = vmatpush1.bf16.msra.mxu0 %v419
        %443 = vmatprep.subr.bf16.mxu0 0
        %444 = vmatpush1.bf16.msra.mxu0 %v420
        %445 = vmatprep.subr.bf16.mxu0 0
        %446 = vmatpush1.bf16.msra.mxu0 0
        %447 = vmatprep.subr.bf16.mxu0 0
        %448 = vmatpush1.bf16.msra.mxu0 0
        %449 = vmatprep.subr.bf16.mxu0 0
        %450 = vmatpush1.bf16.msra.mxu0 0
        %451 = vmatprep.subr.bf16.mxu0 0
        %452 = vmatpush1.bf16.msra.mxu0 0
        %453 = vmatprep.subr.bf16.mxu0 0
        %454 = vmatpush1.bf16.msra.mxu0 0
        %455 = vmatprep.subr.bf16.mxu0 0
        %456 = vmatpush1.bf16.msra.mxu0 0
        %457 = vmatprep.subr.bf16.mxu0 0
        %458 = vmatpush1.bf16.msra.mxu0 0
        %459 = vmatprep.subr.bf16.mxu0 0
        %460 = vmatpush1.bf16.msra.mxu0 0
        %461 = vmatprep.mubr.bf16.mxu0 0
        %462 = vmatmul.mubr.bf16.gmra.mrb[0].mxu0 %v350
        %v463 = vpop.f32.mrb[0].mxu0
        %v464 = vadd.f32 %v379, %v463
        %v465 = vpop.f32.mrb[0].mxu0
        %v466 = vpop.f32.mrb[0].mxu0
        %v467 = vadd.f32 %v379, %v466
        %v468 = vpop.f32.mrb[0].mxu0
        %469 = vmatprep.mubr.bf16.mxu0 0
        %470 = vmatmul.mubr.bf16.gmra.mrb[0].mxu0 %v351
        %v471 = vpop.f32.mrb[0].mxu0
        %v472 = vadd.f32 %v379, %v471
        %v473 = vpop.f32.mrb[0].mxu0
        %v474 = vpop.f32.mrb[0].mxu0
        %v475 = vadd.f32 %v379, %v474
        %v476 = vpop.f32.mrb[0].mxu0
        %477 = vmatprep.mubr.bf16.mxu0 0
        %478 = vmatmul.mubr.bf16.gmra.mrb[0].mxu0 %v352
        %v479 = vpop.f32.mrb[0].mxu0
        %v480 = vadd.f32 %v379, %v479
        %v481 = vpop.f32.mrb[0].mxu0
        %v482 = vpop.f32.mrb[0].mxu0
        %v483 = vadd.f32 %v379, %v482
        %v484 = vpop.f32.mrb[0].mxu0
        %485 = vmatprep.mubr.bf16.mxu0 0
        %486 = vmatmul.mubr.bf16.gmra.mrb[0].mxu0 %v353
        %v487 = vpop.f32.mrb[0].mxu0
        %v488 = vadd.f32 %v379, %v487
        %v489 = vpop.f32.mrb[0].mxu0
        %v490 = vpop.f32.mrb[0].mxu0
        %v491 = vadd.f32 %v379, %v490
        %v492 = vpop.f32.mrb[0].mxu0
        %493 = vmatprep.mubr.bf16.mxu0 0
        %494 = vmatmul.mubr.bf16.gmra.mrb[0].mxu0 %v354
        %v495 = vpop.f32.mrb[0].mxu0
        %v496 = vadd.f32 %v379, %v495
        %v497 = vpop.f32.mrb[0].mxu0
        %v498 = vpop.f32.mrb[0].mxu0
        %v499 = vadd.f32 %v379, %v498
        %v500 = vpop.f32.mrb[0].mxu0
        %501 = vmatprep.mubr.bf16.mxu0 0
        %502 = vmatmul.mubr.bf16.gmra.mrb[0].mxu0 %v355
        %v503 = vpop.f32.mrb[0].mxu0
        %v504 = vadd.f32 %v379, %v503
        %v505 = vpop.f32.mrb[0].mxu0
        %v506 = vpop.f32.mrb[0].mxu0
        %v507 = vadd.f32 %v379, %v506
        %v508 = vpop.f32.mrb[0].mxu0
        %509 = vmatprep.mubr.bf16.mxu0 0
        %510 = vmatmul.mubr.bf16.gmra.mrb[0].mxu0 %v356
        %v511 = vpop.f32.mrb[0].mxu0
        %v512 = vadd.f32 %v379, %v511
        %v513 = vpop.f32.mrb[0].mxu0
        %v514 = vpop.f32.mrb[0].mxu0
        %v515 = vadd.f32 %v379, %v514
        %v516 = vpop.f32.mrb[0].mxu0
        %517 = vmatprep.mubr.bf16.mxu0 0
        %518 = vmatmul.mubr.bf16.gmra.mrb[0].mxu0 %v357
        %v519 = vpop.f32.mrb[0].mxu0
        %v520 = vadd.f32 %v379, %v519
        %v521 = vpop.f32.mrb[0].mxu0
        %v522 = vpop.f32.mrb[0].mxu0
        %v523 = vadd.f32 %v379, %v522
        %v524 = vpop.f32.mrb[0].mxu0
        %525 = vdwg.mxu0
        %vm526 = vcmp.ge.f32.partialorder %v464, 0.0
        %vm527 = vcmp.ge.f32.partialorder %v467, 0.0
        %vm528 = vcmp.ge.f32.partialorder %v472, 0.0
        %vm529 = vcmp.ge.f32.partialorder %v475, 0.0
        %vm530 = vcmp.ge.f32.partialorder %v480, 0.0
        %vm531 = vcmp.ge.f32.partialorder %v483, 0.0
        %vm532 = vcmp.ge.f32.partialorder %v488, 0.0
        %vm533 = vcmp.ge.f32.partialorder %v491, 0.0
        %vm534 = vcmp.ge.f32.partialorder %v496, 0.0
        %vm535 = vcmp.ge.f32.partialorder %v499, 0.0
        %vm536 = vcmp.ge.f32.partialorder %v504, 0.0
        %vm537 = vcmp.ge.f32.partialorder %v507, 0.0
        %vm538 = vcmp.ge.f32.partialorder %v512, 0.0
        %vm539 = vcmp.ge.f32.partialorder %v515, 0.0
        %vm540 = vcmp.ge.f32.partialorder %v520, 0.0
        %vm541 = vcmp.ge.f32.partialorder %v523, 0.0
        %v542 = vmul.f32 %v464, 0.2
        %v543 = vmul.f32 %v467, 0.2
        %v544 = vmul.f32 %v472, 0.2
        %v545 = vmul.f32 %v475, 0.2
        %v546 = vmul.f32 %v480, 0.2
        %v547 = vmul.f32 %v483, 0.2
        %v548 = vmul.f32 %v488, 0.2
        %v549 = vmul.f32 %v491, 0.2
        %v550 = vmul.f32 %v496, 0.2
        %v551 = vmul.f32 %v499, 0.2
        %v552 = vmul.f32 %v504, 0.2
        %v553 = vmul.f32 %v507, 0.2
        %v554 = vmul.f32 %v512, 0.2
        %v555 = vmul.f32 %v515, 0.2
        %v556 = vmul.f32 %v520, 0.2
        %v557 = vmul.f32 %v523, 0.2
        %v558 = vsel %vm526, %v464, %v542
        %v559 = vsel %vm527, %v467, %v543
        %v560 = vsel %vm528, %v472, %v544
        %v561 = vsel %vm529, %v475, %v545
        %v562 = vsel %vm530, %v480, %v546
        %v563 = vsel %vm531, %v483, %v547
        %v564 = vsel %vm532, %v488, %v548
        %v565 = vsel %vm533, %v491, %v549
        %v566 = vsel %vm534, %v496, %v550
        %v567 = vsel %vm535, %v499, %v551
        %v568 = vsel %vm536, %v504, %v552
        %v569 = vsel %vm537, %v507, %v553
        %v570 = vsel %vm538, %v512, %v554
        %v571 = vsel %vm539, %v515, %v555
        %v572 = vsel %vm540, %v520, %v556
        %v573 = vsel %vm541, %v523, %v557
        %v574 = vmul.f32 %v558, 1.4142135
        %v575 = vmul.f32 %v559, 1.4142135
        %v576 = vmul.f32 %v560, 1.4142135
        %v577 = vmul.f32 %v561, 1.4142135
        %v578 = vmul.f32 %v562, 1.4142135
        %v579 = vmul.f32 %v563, 1.4142135
        %v580 = vmul.f32 %v564, 1.4142135
        %v581 = vmul.f32 %v565, 1.4142135
        %v582 = vmul.f32 %v566, 1.4142135
        %v583 = vmul.f32 %v567, 1.4142135
        %v584 = vmul.f32 %v568, 1.4142135
        %v585 = vmul.f32 %v569, 1.4142135
        %v586 = vmul.f32 %v570, 1.4142135
        %v587 = vmul.f32 %v571, 1.4142135
        %v588 = vmul.f32 %v572, 1.4142135
        %v589 = vmul.f32 %v573, 1.4142135
        %v590 = vpack.c.bf16 %v575, %v574
        %v591 = vpack.c.bf16 %v577, %v576
        %v592 = vpack.c.bf16 %v579, %v578
        %v593 = vpack.c.bf16 %v581, %v580
        %v594 = vpack.c.bf16 %v583, %v582
        %v595 = vpack.c.bf16 %v585, %v584
        %v596 = vpack.c.bf16 %v587, %v586
        %v597 = vpack.c.bf16 %v589, %v588
        %s598 = scalar_lea.vmem [#allocation5], 64
        %v599 = vld [vmem:[%s598] sm:$0xf]
        %v600 = vld [vmem:[%s598 + $0x4] sm:$0xf]
        %v601 = vld [vmem:[%s598 + $0x8] sm:$0xf]
        %v602 = vld [vmem:[%s598 + $0xc] sm:$0xf]
        %v603 = vld [vmem:[%s598 + $0x10] sm:$0xf]
        %v604 = vld [vmem:[%s598 + $0x14] sm:$0xf]
        %v605 = vld [vmem:[%s598 + $0x18] sm:$0xf]
        %v606 = vld [vmem:[%s598 + $0x1c] sm:$0xf]
        %v607 = vld [vmem:[%s598 + $0x20] sm:$0xf]
        %v608 = vld [vmem:[%s598 + $0x24] sm:$0xf]
        %v609 = vld [vmem:[%s598 + $0x28] sm:$0xf]
        %v610 = vld [vmem:[%s598 + $0x2c] sm:$0xf]
        %v611 = vld [vmem:[%s598 + $0x30] sm:$0xf]
        %v612 = vld [vmem:[%s598 + $0x34] sm:$0xf]
        %v613 = vld [vmem:[%s598 + $0x38] sm:$0xf]
        %v614 = vld [vmem:[%s598 + $0x3c] sm:$0xf]
        %s615 = scalar_lea.vmem [#allocation7], 1
        %v616 = vld [vmem:[%s615] sm:$0x1]
        %v618 = vlaneseq
        %v619 = vshrl.u32 %v618, 7
        %v620 = vsub.s32 0, %v619
        %v621 = vrot.slane %v616, %v620
        %v639 = vunpack.c.l.b16 %v599
        %v640 = vunpack.c.l.b16 %v600
        %v641 = vunpack.c.l.b16 %v601
        %v642 = vunpack.c.l.b16 %v602
        %v643 = vunpack.c.l.b16 %v603
        %v644 = vunpack.c.l.b16 %v604
        %v645 = vunpack.c.l.b16 %v605
        %v646 = vunpack.c.l.b16 %v606
        %v647 = vunpack.c.l.b16 %v607
        %v648 = vunpack.c.l.b16 %v608
        %v649 = vunpack.c.l.b16 %v609
        %v650 = vunpack.c.l.b16 %v610
        %v651 = vunpack.c.l.b16 %v611
        %v652 = vunpack.c.l.b16 %v612
        %v653 = vunpack.c.l.b16 %v613
        %v654 = vunpack.c.l.b16 %v614
        %v655 = vpack.c.b16 %v640, %v639
        %v656 = vpack.c.b16 %v642, %v641
        %v657 = vpack.c.b16 %v644, %v643
        %v658 = vpack.c.b16 %v646, %v645
        %v659 = vpack.c.b16 %v648, %v647
        %v660 = vpack.c.b16 %v650, %v649
        %v661 = vpack.c.b16 %v652, %v651
        %v662 = vpack.c.b16 %v654, %v653
        %671 = vmatprep.subr.bf16.mxu0 0
        %672 = vmatpush1.bf16.msra.mxu0 %v655
        %673 = vmatprep.subr.bf16.mxu0 0
        %674 = vmatpush1.bf16.msra.mxu0 %v656
        %675 = vmatprep.subr.bf16.mxu0 0
        %676 = vmatpush1.bf16.msra.mxu0 %v657
        %677 = vmatprep.subr.bf16.mxu0 0
        %678 = vmatpush1.bf16.msra.mxu0 %v658
        %679 = vmatprep.subr.bf16.mxu0 0
        %680 = vmatpush1.bf16.msra.mxu0 %v659
        %681 = vmatprep.subr.bf16.mxu0 0
        %682 = vmatpush1.bf16.msra.mxu0 %v660
        %683 = vmatprep.subr.bf16.mxu0 0
        %684 = vmatpush1.bf16.msra.mxu0 %v661
        %685 = vmatprep.subr.bf16.mxu0 0
        %686 = vmatpush1.bf16.msra.mxu0 %v662
        %687 = vmatprep.subr.bf16.mxu0 0
        %688 = vmatpush1.bf16.msra.mxu0 0
        %689 = vmatprep.subr.bf16.mxu0 0
        %690 = vmatpush1.bf16.msra.mxu0 0
        %691 = vmatprep.subr.bf16.mxu0 0
        %692 = vmatpush1.bf16.msra.mxu0 0
        %693 = vmatprep.subr.bf16.mxu0 0
        %694 = vmatpush1.bf16.msra.mxu0 0
        %695 = vmatprep.subr.bf16.mxu0 0
        %696 = vmatpush1.bf16.msra.mxu0 0
        %697 = vmatprep.subr.bf16.mxu0 0
        %698 = vmatpush1.bf16.msra.mxu0 0
        %699 = vmatprep.subr.bf16.mxu0 0
        %700 = vmatpush1.bf16.msra.mxu0 0
        %701 = vmatprep.subr.bf16.mxu0 0
        %702 = vmatpush1.bf16.msra.mxu0 0
        %703 = vmatprep.mubr.bf16.mxu0 0
        %704 = vmatmul.mubr.bf16.gmra.mrb[0].mxu0 %v590
        %v705 = vpop.f32.mrb[0].mxu0
        %v706 = vadd.f32 %v621, %v705
        %v707 = vpop.f32.mrb[0].mxu0
        %v708 = vpop.f32.mrb[0].mxu0
        %v709 = vadd.f32 %v621, %v708
        %v710 = vpop.f32.mrb[0].mxu0
        %711 = vmatprep.mubr.bf16.mxu0 0
        %712 = vmatmul.mubr.bf16.gmra.mrb[0].mxu0 %v591
        %v713 = vpop.f32.mrb[0].mxu0
        %v714 = vadd.f32 %v621, %v713
        %v715 = vpop.f32.mrb[0].mxu0
        %v716 = vpop.f32.mrb[0].mxu0
        %v717 = vadd.f32 %v621, %v716
        %v718 = vpop.f32.mrb[0].mxu0
        %719 = vmatprep.mubr.bf16.mxu0 0
        %720 = vmatmul.mubr.bf16.gmra.mrb[0].mxu0 %v592
        %v721 = vpop.f32.mrb[0].mxu0
        %v722 = vadd.f32 %v621, %v721
        %v723 = vpop.f32.mrb[0].mxu0
        %v724 = vpop.f32.mrb[0].mxu0
        %v725 = vadd.f32 %v621, %v724
        %v726 = vpop.f32.mrb[0].mxu0
        %727 = vmatprep.mubr.bf16.mxu0 0
        %728 = vmatmul.mubr.bf16.gmra.mrb[0].mxu0 %v593
        %v729 = vpop.f32.mrb[0].mxu0
        %v730 = vadd.f32 %v621, %v729
        %v731 = vpop.f32.mrb[0].mxu0
        %v732 = vpop.f32.mrb[0].mxu0
        %v733 = vadd.f32 %v621, %v732
        %v734 = vpop.f32.mrb[0].mxu0
        %735 = vmatprep.mubr.bf16.mxu0 0
        %736 = vmatmul.mubr.bf16.gmra.mrb[0].mxu0 %v594
        %v737 = vpop.f32.mrb[0].mxu0
        %v738 = vadd.f32 %v621, %v737
        %v739 = vpop.f32.mrb[0].mxu0
        %v740 = vpop.f32.mrb[0].mxu0
        %v741 = vadd.f32 %v621, %v740
        %v742 = vpop.f32.mrb[0].mxu0
        %743 = vmatprep.mubr.bf16.mxu0 0
        %744 = vmatmul.mubr.bf16.gmra.mrb[0].mxu0 %v595
        %v745 = vpop.f32.mrb[0].mxu0
        %v746 = vadd.f32 %v621, %v745
        %v747 = vpop.f32.mrb[0].mxu0
        %v748 = vpop.f32.mrb[0].mxu0
        %v749 = vadd.f32 %v621, %v748
        %v750 = vpop.f32.mrb[0].mxu0
        %751 = vmatprep.mubr.bf16.mxu0 0
        %752 = vmatmul.mubr.bf16.gmra.mrb[0].mxu0 %v596
        %v753 = vpop.f32.mrb[0].mxu0
        %v754 = vadd.f32 %v621, %v753
        %v755 = vpop.f32.mrb[0].mxu0
        %v756 = vpop.f32.mrb[0].mxu0
        %v757 = vadd.f32 %v621, %v756
        %v758 = vpop.f32.mrb[0].mxu0
        %759 = vmatprep.mubr.bf16.mxu0 0
        %760 = vmatmul.mubr.bf16.gmra.mrb[0].mxu0 %v597
        %v761 = vpop.f32.mrb[0].mxu0
        %v762 = vadd.f32 %v621, %v761
        %v763 = vpop.f32.mrb[0].mxu0
        %v764 = vpop.f32.mrb[0].mxu0
        %v765 = vadd.f32 %v621, %v764
        %v766 = vpop.f32.mrb[0].mxu0
        %767 = vdwg.mxu0
        %vm768 = vcmp.ge.f32.partialorder %v706, 0.0
        %vm769 = vcmp.ge.f32.partialorder %v709, 0.0
        %vm770 = vcmp.ge.f32.partialorder %v714, 0.0
        %vm771 = vcmp.ge.f32.partialorder %v717, 0.0
        %vm772 = vcmp.ge.f32.partialorder %v722, 0.0
        %vm773 = vcmp.ge.f32.partialorder %v725, 0.0
        %vm774 = vcmp.ge.f32.partialorder %v730, 0.0
        %vm775 = vcmp.ge.f32.partialorder %v733, 0.0
        %vm776 = vcmp.ge.f32.partialorder %v738, 0.0
        %vm777 = vcmp.ge.f32.partialorder %v741, 0.0
        %vm778 = vcmp.ge.f32.partialorder %v746, 0.0
        %vm779 = vcmp.ge.f32.partialorder %v749, 0.0
        %vm780 = vcmp.ge.f32.partialorder %v754, 0.0
        %vm781 = vcmp.ge.f32.partialorder %v757, 0.0
        %vm782 = vcmp.ge.f32.partialorder %v762, 0.0
        %vm783 = vcmp.ge.f32.partialorder %v765, 0.0
        %v784 = vmul.f32 %v706, 0.2
        %v785 = vmul.f32 %v709, 0.2
        %v786 = vmul.f32 %v714, 0.2
        %v787 = vmul.f32 %v717, 0.2
        %v788 = vmul.f32 %v722, 0.2
        %v789 = vmul.f32 %v725, 0.2
        %v790 = vmul.f32 %v730, 0.2
        %v791 = vmul.f32 %v733, 0.2
        %v792 = vmul.f32 %v738, 0.2
        %v793 = vmul.f32 %v741, 0.2
        %v794 = vmul.f32 %v746, 0.2
        %v795 = vmul.f32 %v749, 0.2
        %v796 = vmul.f32 %v754, 0.2
        %v797 = vmul.f32 %v757, 0.2
        %v798 = vmul.f32 %v762, 0.2
        %v799 = vmul.f32 %v765, 0.2
        %v800 = vsel %vm768, %v706, %v784
        %v801 = vsel %vm769, %v709, %v785
        %v802 = vsel %vm770, %v714, %v786
        %v803 = vsel %vm771, %v717, %v787
        %v804 = vsel %vm772, %v722, %v788
        %v805 = vsel %vm773, %v725, %v789
        %v806 = vsel %vm774, %v730, %v790
        %v807 = vsel %vm775, %v733, %v791
        %v808 = vsel %vm776, %v738, %v792
        %v809 = vsel %vm777, %v741, %v793
        %v810 = vsel %vm778, %v746, %v794
        %v811 = vsel %vm779, %v749, %v795
        %v812 = vsel %vm780, %v754, %v796
        %v813 = vsel %vm781, %v757, %v797
        %v814 = vsel %vm782, %v762, %v798
        %v815 = vsel %vm783, %v765, %v799
        %v816 = vmul.f32 %v800, 1.4142135
        %v817 = vmul.f32 %v801, 1.4142135
        %v818 = vmul.f32 %v802, 1.4142135
        %v819 = vmul.f32 %v803, 1.4142135
        %v820 = vmul.f32 %v804, 1.4142135
        %v821 = vmul.f32 %v805, 1.4142135
        %v822 = vmul.f32 %v806, 1.4142135
        %v823 = vmul.f32 %v807, 1.4142135
        %v824 = vmul.f32 %v808, 1.4142135
        %v825 = vmul.f32 %v809, 1.4142135
        %v826 = vmul.f32 %v810, 1.4142135
        %v827 = vmul.f32 %v811, 1.4142135
        %v828 = vmul.f32 %v812, 1.4142135
        %v829 = vmul.f32 %v813, 1.4142135
        %v830 = vmul.f32 %v814, 1.4142135
        %v831 = vmul.f32 %v815, 1.4142135
        %v832 = vpack.c.bf16 %v817, %v816
        %v833 = vpack.c.bf16 %v819, %v818
        %v834 = vpack.c.bf16 %v821, %v820
        %v835 = vpack.c.bf16 %v823, %v822
        %v836 = vpack.c.bf16 %v825, %v824
        %v837 = vpack.c.bf16 %v827, %v826
        %v838 = vpack.c.bf16 %v829, %v828
        %v839 = vpack.c.bf16 %v831, %v830
        %s840 = scalar_lea.vmem [#allocation5], 128
        %v841 = vld [vmem:[%s840] sm:$0xf]
        %v842 = vld [vmem:[%s840 + $0x4] sm:$0xf]
        %v843 = vld [vmem:[%s840 + $0x8] sm:$0xf]
        %v844 = vld [vmem:[%s840 + $0xc] sm:$0xf]
        %v845 = vld [vmem:[%s840 + $0x10] sm:$0xf]
        %v846 = vld [vmem:[%s840 + $0x14] sm:$0xf]
        %v847 = vld [vmem:[%s840 + $0x18] sm:$0xf]
        %v848 = vld [vmem:[%s840 + $0x1c] sm:$0xf]
        %v849 = vld [vmem:[%s840 + $0x20] sm:$0xf]
        %v850 = vld [vmem:[%s840 + $0x24] sm:$0xf]
        %v851 = vld [vmem:[%s840 + $0x28] sm:$0xf]
        %v852 = vld [vmem:[%s840 + $0x2c] sm:$0xf]
        %v853 = vld [vmem:[%s840 + $0x30] sm:$0xf]
        %v854 = vld [vmem:[%s840 + $0x34] sm:$0xf]
        %v855 = vld [vmem:[%s840 + $0x38] sm:$0xf]
        %v856 = vld [vmem:[%s840 + $0x3c] sm:$0xf]
        %s857 = scalar_lea.vmem [#allocation7], 2
        %v858 = vld [vmem:[%s857] sm:$0x1]
        %v860 = vlaneseq
        %v861 = vshrl.u32 %v860, 7
        %v862 = vsub.s32 0, %v861
        %v863 = vrot.slane %v858, %v862
        %v881 = vunpack.c.l.b16 %v841
        %v882 = vunpack.c.l.b16 %v842
        %v883 = vunpack.c.l.b16 %v843
        %v884 = vunpack.c.l.b16 %v844
        %v885 = vunpack.c.l.b16 %v845
        %v886 = vunpack.c.l.b16 %v846
        %v887 = vunpack.c.l.b16 %v847
        %v888 = vunpack.c.l.b16 %v848
        %v889 = vunpack.c.l.b16 %v849
        %v890 = vunpack.c.l.b16 %v850
        %v891 = vunpack.c.l.b16 %v851
        %v892 = vunpack.c.l.b16 %v852
        %v893 = vunpack.c.l.b16 %v853
        %v894 = vunpack.c.l.b16 %v854
        %v895 = vunpack.c.l.b16 %v855
        %v896 = vunpack.c.l.b16 %v856
        %v897 = vpack.c.b16 %v882, %v881
        %v898 = vpack.c.b16 %v884, %v883
        %v899 = vpack.c.b16 %v886, %v885
        %v900 = vpack.c.b16 %v888, %v887
        %v901 = vpack.c.b16 %v890, %v889
        %v902 = vpack.c.b16 %v892, %v891
        %v903 = vpack.c.b16 %v894, %v893
        %v904 = vpack.c.b16 %v896, %v895
        %913 = vmatprep.subr.bf16.mxu0 0
        %914 = vmatpush1.bf16.msra.mxu0 %v897
        %915 = vmatprep.subr.bf16.mxu0 0
        %916 = vmatpush1.bf16.msra.mxu0 %v898
        %917 = vmatprep.subr.bf16.mxu0 0
        %918 = vmatpush1.bf16.msra.mxu0 %v899
        %919 = vmatprep.subr.bf16.mxu0 0
        %920 = vmatpush1.bf16.msra.mxu0 %v900
        %921 = vmatprep.subr.bf16.mxu0 0
        %922 = vmatpush1.bf16.msra.mxu0 %v901
        %923 = vmatprep.subr.bf16.mxu0 0
        %924 = vmatpush1.bf16.msra.mxu0 %v902
        %925 = vmatprep.subr.bf16.mxu0 0
        %926 = vmatpush1.bf16.msra.mxu0 %v903
        %927 = vmatprep.subr.bf16.mxu0 0
        %928 = vmatpush1.bf16.msra.mxu0 %v904
        %929 = vmatprep.subr.bf16.mxu0 0
        %930 = vmatpush1.bf16.msra.mxu0 0
        %931 = vmatprep.subr.bf16.mxu0 0
        %932 = vmatpush1.bf16.msra.mxu0 0
        %933 = vmatprep.subr.bf16.mxu0 0
        %934 = vmatpush1.bf16.msra.mxu0 0
        %935 = vmatprep.subr.bf16.mxu0 0
        %936 = vmatpush1.bf16.msra.mxu0 0
        %937 = vmatprep.subr.bf16.mxu0 0
        %938 = vmatpush1.bf16.msra.mxu0 0
        %939 = vmatprep.subr.bf16.mxu0 0
        %940 = vmatpush1.bf16.msra.mxu0 0
        %941 = vmatprep.subr.bf16.mxu0 0
        %942 = vmatpush1.bf16.msra.mxu0 0
        %943 = vmatprep.subr.bf16.mxu0 0
        %944 = vmatpush1.bf16.msra.mxu0 0
        %945 = vmatprep.mubr.bf16.mxu0 0
        %946 = vmatmul.mubr.bf16.gmra.mrb[0].mxu0 %v832
        %v947 = vpop.f32.mrb[0].mxu0
        %v948 = vadd.f32 %v863, %v947
        %v949 = vpop.f32.mrb[0].mxu0
        %v950 = vpop.f32.mrb[0].mxu0
        %v951 = vadd.f32 %v863, %v950
        %v952 = vpop.f32.mrb[0].mxu0
        %953 = vmatprep.mubr.bf16.mxu0 0
        %954 = vmatmul.mubr.bf16.gmra.mrb[0].mxu0 %v833
        %v955 = vpop.f32.mrb[0].mxu0
        %v956 = vadd.f32 %v863, %v955
        %v957 = vpop.f32.mrb[0].mxu0
        %v958 = vpop.f32.mrb[0].mxu0
        %v959 = vadd.f32 %v863, %v958
        %v960 = vpop.f32.mrb[0].mxu0
        %961 = vmatprep.mubr.bf16.mxu0 0
        %962 = vmatmul.mubr.bf16.gmra.mrb[0].mxu0 %v834
        %v963 = vpop.f32.mrb[0].mxu0
        %v964 = vadd.f32 %v863, %v963
        %v965 = vpop.f32.mrb[0].mxu0
        %v966 = vpop.f32.mrb[0].mxu0
        %v967 = vadd.f32 %v863, %v966
        %v968 = vpop.f32.mrb[0].mxu0
        %969 = vmatprep.mubr.bf16.mxu0 0
        %970 = vmatmul.mubr.bf16.gmra.mrb[0].mxu0 %v835
        %v971 = vpop.f32.mrb[0].mxu0
        %v972 = vadd.f32 %v863, %v971
        %v973 = vpop.f32.mrb[0].mxu0
        %v974 = vpop.f32.mrb[0].mxu0
        %v975 = vadd.f32 %v863, %v974
        %v976 = vpop.f32.mrb[0].mxu0
        %977 = vmatprep.mubr.bf16.mxu0 0
        %978 = vmatmul.mubr.bf16.gmra.mrb[0].mxu0 %v836
        %v979 = vpop.f32.mrb[0].mxu0
        %v980 = vadd.f32 %v863, %v979
        %v981 = vpop.f32.mrb[0].mxu0
        %v982 = vpop.f32.mrb[0].mxu0
        %v983 = vadd.f32 %v863, %v982
        %v984 = vpop.f32.mrb[0].mxu0
        %985 = vmatprep.mubr.bf16.mxu0 0
        %986 = vmatmul.mubr.bf16.gmra.mrb[0].mxu0 %v837
        %v987 = vpop.f32.mrb[0].mxu0
        %v988 = vadd.f32 %v863, %v987
        %v989 = vpop.f32.mrb[0].mxu0
        %v990 = vpop.f32.mrb[0].mxu0
        %v991 = vadd.f32 %v863, %v990
        %v992 = vpop.f32.mrb[0].mxu0
        %993 = vmatprep.mubr.bf16.mxu0 0
        %994 = vmatmul.mubr.bf16.gmra.mrb[0].mxu0 %v838
        %v995 = vpop.f32.mrb[0].mxu0
        %v996 = vadd.f32 %v863, %v995
        %v997 = vpop.f32.mrb[0].mxu0
        %v998 = vpop.f32.mrb[0].mxu0
        %v999 = vadd.f32 %v863, %v998
        %v1000 = vpop.f32.mrb[0].mxu0
        %1001 = vmatprep.mubr.bf16.mxu0 0
        %1002 = vmatmul.mubr.bf16.gmra.mrb[0].mxu0 %v839
        %v1003 = vpop.f32.mrb[0].mxu0
        %v1004 = vadd.f32 %v863, %v1003
        %v1005 = vpop.f32.mrb[0].mxu0
        %v1006 = vpop.f32.mrb[0].mxu0
        %v1007 = vadd.f32 %v863, %v1006
        %v1008 = vpop.f32.mrb[0].mxu0
        %1009 = vdwg.mxu0
        %vm1010 = vcmp.ge.f32.partialorder %v948, 0.0
        %vm1011 = vcmp.ge.f32.partialorder %v951, 0.0
        %vm1012 = vcmp.ge.f32.partialorder %v956, 0.0
        %vm1013 = vcmp.ge.f32.partialorder %v959, 0.0
        %vm1014 = vcmp.ge.f32.partialorder %v964, 0.0
        %vm1015 = vcmp.ge.f32.partialorder %v967, 0.0
        %vm1016 = vcmp.ge.f32.partialorder %v972, 0.0
        %vm1017 = vcmp.ge.f32.partialorder %v975, 0.0
        %vm1018 = vcmp.ge.f32.partialorder %v980, 0.0
        %vm1019 = vcmp.ge.f32.partialorder %v983, 0.0
        %vm1020 = vcmp.ge.f32.partialorder %v988, 0.0
        %vm1021 = vcmp.ge.f32.partialorder %v991, 0.0
        %vm1022 = vcmp.ge.f32.partialorder %v996, 0.0
        %vm1023 = vcmp.ge.f32.partialorder %v999, 0.0
        %vm1024 = vcmp.ge.f32.partialorder %v1004, 0.0
        %vm1025 = vcmp.ge.f32.partialorder %v1007, 0.0
        %v1026 = vmul.f32 %v948, 0.2
        %v1027 = vmul.f32 %v951, 0.2
        %v1028 = vmul.f32 %v956, 0.2
        %v1029 = vmul.f32 %v959, 0.2
        %v1030 = vmul.f32 %v964, 0.2
        %v1031 = vmul.f32 %v967, 0.2
        %v1032 = vmul.f32 %v972, 0.2
        %v1033 = vmul.f32 %v975, 0.2
        %v1034 = vmul.f32 %v980, 0.2
        %v1035 = vmul.f32 %v983, 0.2
        %v1036 = vmul.f32 %v988, 0.2
        %v1037 = vmul.f32 %v991, 0.2
        %v1038 = vmul.f32 %v996, 0.2
        %v1039 = vmul.f32 %v999, 0.2
        %v1040 = vmul.f32 %v1004, 0.2
        %v1041 = vmul.f32 %v1007, 0.2
        %v1042 = vsel %vm1010, %v948, %v1026
        %v1043 = vsel %vm1011, %v951, %v1027
        %v1044 = vsel %vm1012, %v956, %v1028
        %v1045 = vsel %vm1013, %v959, %v1029
        %v1046 = vsel %vm1014, %v964, %v1030
        %v1047 = vsel %vm1015, %v967, %v1031
        %v1048 = vsel %vm1016, %v972, %v1032
        %v1049 = vsel %vm1017, %v975, %v1033
        %v1050 = vsel %vm1018, %v980, %v1034
        %v1051 = vsel %vm1019, %v983, %v1035
        %v1052 = vsel %vm1020, %v988, %v1036
        %v1053 = vsel %vm1021, %v991, %v1037
        %v1054 = vsel %vm1022, %v996, %v1038
        %v1055 = vsel %vm1023, %v999, %v1039
        %v1056 = vsel %vm1024, %v1004, %v1040
        %v1057 = vsel %vm1025, %v1007, %v1041
        %v1058 = vmul.f32 %v1042, 1.4142135
        %v1059 = vmul.f32 %v1043, 1.4142135
        %v1060 = vmul.f32 %v1044, 1.4142135
        %v1061 = vmul.f32 %v1045, 1.4142135
        %v1062 = vmul.f32 %v1046, 1.4142135
        %v1063 = vmul.f32 %v1047, 1.4142135
        %v1064 = vmul.f32 %v1048, 1.4142135
        %v1065 = vmul.f32 %v1049, 1.4142135
        %v1066 = vmul.f32 %v1050, 1.4142135
        %v1067 = vmul.f32 %v1051, 1.4142135
        %v1068 = vmul.f32 %v1052, 1.4142135
        %v1069 = vmul.f32 %v1053, 1.4142135
        %v1070 = vmul.f32 %v1054, 1.4142135
        %v1071 = vmul.f32 %v1055, 1.4142135
        %v1072 = vmul.f32 %v1056, 1.4142135
        %v1073 = vmul.f32 %v1057, 1.4142135
        %v1074 = vpack.c.bf16 %v1059, %v1058
        %v1075 = vpack.c.bf16 %v1061, %v1060
        %v1076 = vpack.c.bf16 %v1063, %v1062
        %v1077 = vpack.c.bf16 %v1065, %v1064
        %v1078 = vpack.c.bf16 %v1067, %v1066
        %v1079 = vpack.c.bf16 %v1069, %v1068
        %v1080 = vpack.c.bf16 %v1071, %v1070
        %v1081 = vpack.c.bf16 %v1073, %v1072
        %s1082 = scalar_lea.vmem [#allocation5], 192
        %v1083 = vld [vmem:[%s1082] sm:$0xf]
        %v1084 = vld [vmem:[%s1082 + $0x4] sm:$0xf]
        %v1085 = vld [vmem:[%s1082 + $0x8] sm:$0xf]
        %v1086 = vld [vmem:[%s1082 + $0xc] sm:$0xf]
        %v1087 = vld [vmem:[%s1082 + $0x10] sm:$0xf]
        %v1088 = vld [vmem:[%s1082 + $0x14] sm:$0xf]
        %v1089 = vld [vmem:[%s1082 + $0x18] sm:$0xf]
        %v1090 = vld [vmem:[%s1082 + $0x1c] sm:$0xf]
        %v1091 = vld [vmem:[%s1082 + $0x20] sm:$0xf]
        %v1092 = vld [vmem:[%s1082 + $0x24] sm:$0xf]
        %v1093 = vld [vmem:[%s1082 + $0x28] sm:$0xf]
        %v1094 = vld [vmem:[%s1082 + $0x2c] sm:$0xf]
        %v1095 = vld [vmem:[%s1082 + $0x30] sm:$0xf]
        %v1096 = vld [vmem:[%s1082 + $0x34] sm:$0xf]
        %v1097 = vld [vmem:[%s1082 + $0x38] sm:$0xf]
        %v1098 = vld [vmem:[%s1082 + $0x3c] sm:$0xf]
        %s1099 = scalar_lea.vmem [#allocation7], 3
        %v1100 = vld [vmem:[%s1099] sm:$0x1]
        %v1102 = vlaneseq
        %v1103 = vshrl.u32 %v1102, 7
        %v1104 = vsub.s32 0, %v1103
        %v1105 = vrot.slane %v1100, %v1104
        %v1123 = vunpack.c.l.b16 %v1083
        %v1124 = vunpack.c.l.b16 %v1084
        %v1125 = vunpack.c.l.b16 %v1085
        %v1126 = vunpack.c.l.b16 %v1086
        %v1127 = vunpack.c.l.b16 %v1087
        %v1128 = vunpack.c.l.b16 %v1088
        %v1129 = vunpack.c.l.b16 %v1089
        %v1130 = vunpack.c.l.b16 %v1090
        %v1131 = vunpack.c.l.b16 %v1091
        %v1132 = vunpack.c.l.b16 %v1092
        %v1133 = vunpack.c.l.b16 %v1093
        %v1134 = vunpack.c.l.b16 %v1094
        %v1135 = vunpack.c.l.b16 %v1095
        %v1136 = vunpack.c.l.b16 %v1096
        %v1137 = vunpack.c.l.b16 %v1097
        %v1138 = vunpack.c.l.b16 %v1098
        %v1139 = vpack.c.b16 %v1124, %v1123
        %v1140 = vpack.c.b16 %v1126, %v1125
        %v1141 = vpack.c.b16 %v1128, %v1127
        %v1142 = vpack.c.b16 %v1130, %v1129
        %v1143 = vpack.c.b16 %v1132, %v1131
        %v1144 = vpack.c.b16 %v1134, %v1133
        %v1145 = vpack.c.b16 %v1136, %v1135
        %v1146 = vpack.c.b16 %v1138, %v1137
        %1155 = vmatprep.subr.bf16.mxu0 0
        %1156 = vmatpush1.bf16.msra.mxu0 %v1139
        %1157 = vmatprep.subr.bf16.mxu0 0
        %1158 = vmatpush1.bf16.msra.mxu0 %v1140
        %1159 = vmatprep.subr.bf16.mxu0 0
        %1160 = vmatpush1.bf16.msra.mxu0 %v1141
        %1161 = vmatprep.subr.bf16.mxu0 0
        %1162 = vmatpush1.bf16.msra.mxu0 %v1142
        %1163 = vmatprep.subr.bf16.mxu0 0
        %1164 = vmatpush1.bf16.msra.mxu0 %v1143
        %1165 = vmatprep.subr.bf16.mxu0 0
        %1166 = vmatpush1.bf16.msra.mxu0 %v1144
        %1167 = vmatprep.subr.bf16.mxu0 0
        %1168 = vmatpush1.bf16.msra.mxu0 %v1145
        %1169 = vmatprep.subr.bf16.mxu0 0
        %1170 = vmatpush1.bf16.msra.mxu0 %v1146
        %1171 = vmatprep.subr.bf16.mxu0 0
        %1172 = vmatpush1.bf16.msra.mxu0 0
        %1173 = vmatprep.subr.bf16.mxu0 0
        %1174 = vmatpush1.bf16.msra.mxu0 0
        %1175 = vmatprep.subr.bf16.mxu0 0
        %1176 = vmatpush1.bf16.msra.mxu0 0
        %1177 = vmatprep.subr.bf16.mxu0 0
        %1178 = vmatpush1.bf16.msra.mxu0 0
        %1179 = vmatprep.subr.bf16.mxu0 0
        %1180 = vmatpush1.bf16.msra.mxu0 0
        %1181 = vmatprep.subr.bf16.mxu0 0
        %1182 = vmatpush1.bf16.msra.mxu0 0
        %1183 = vmatprep.subr.bf16.mxu0 0
        %1184 = vmatpush1.bf16.msra.mxu0 0
        %1185 = vmatprep.subr.bf16.mxu0 0
        %1186 = vmatpush1.bf16.msra.mxu0 0
        %1187 = vmatprep.mubr.bf16.mxu0 0
        %1188 = vmatmul.mubr.bf16.gmra.mrb[0].mxu0 %v1074
        %v1189 = vpop.f32.mrb[0].mxu0
        %v1190 = vadd.f32 %v1105, %v1189
        %v1191 = vpop.f32.mrb[0].mxu0
        %v1192 = vpop.f32.mrb[0].mxu0
        %v1193 = vadd.f32 %v1105, %v1192
        %v1194 = vpop.f32.mrb[0].mxu0
        %1195 = vmatprep.mubr.bf16.mxu0 0
        %1196 = vmatmul.mubr.bf16.gmra.mrb[0].mxu0 %v1075
        %v1197 = vpop.f32.mrb[0].mxu0
        %v1198 = vadd.f32 %v1105, %v1197
        %v1199 = vpop.f32.mrb[0].mxu0
        %v1200 = vpop.f32.mrb[0].mxu0
        %v1201 = vadd.f32 %v1105, %v1200
        %v1202 = vpop.f32.mrb[0].mxu0
        %1203 = vmatprep.mubr.bf16.mxu0 0
        %1204 = vmatmul.mubr.bf16.gmra.mrb[0].mxu0 %v1076
        %v1205 = vpop.f32.mrb[0].mxu0
        %v1206 = vadd.f32 %v1105, %v1205
        %v1207 = vpop.f32.mrb[0].mxu0
        %v1208 = vpop.f32.mrb[0].mxu0
        %v1209 = vadd.f32 %v1105, %v1208
        %v1210 = vpop.f32.mrb[0].mxu0
        %1211 = vmatprep.mubr.bf16.mxu0 0
        %1212 = vmatmul.mubr.bf16.gmra.mrb[0].mxu0 %v1077
        %v1213 = vpop.f32.mrb[0].mxu0
        %v1214 = vadd.f32 %v1105, %v1213
        %v1215 = vpop.f32.mrb[0].mxu0
        %v1216 = vpop.f32.mrb[0].mxu0
        %v1217 = vadd.f32 %v1105, %v1216
        %v1218 = vpop.f32.mrb[0].mxu0
        %1219 = vmatprep.mubr.bf16.mxu0 0
        %1220 = vmatmul.mubr.bf16.gmra.mrb[0].mxu0 %v1078
        %v1221 = vpop.f32.mrb[0].mxu0
        %v1222 = vadd.f32 %v1105, %v1221
        %v1223 = vpop.f32.mrb[0].mxu0
        %v1224 = vpop.f32.mrb[0].mxu0
        %v1225 = vadd.f32 %v1105, %v1224
        %v1226 = vpop.f32.mrb[0].mxu0
        %1227 = vmatprep.mubr.bf16.mxu0 0
        %1228 = vmatmul.mubr.bf16.gmra.mrb[0].mxu0 %v1079
        %v1229 = vpop.f32.mrb[0].mxu0
        %v1230 = vadd.f32 %v1105, %v1229
        %v1231 = vpop.f32.mrb[0].mxu0
        %v1232 = vpop.f32.mrb[0].mxu0
        %v1233 = vadd.f32 %v1105, %v1232
        %v1234 = vpop.f32.mrb[0].mxu0
        %1235 = vmatprep.mubr.bf16.mxu0 0
        %1236 = vmatmul.mubr.bf16.gmra.mrb[0].mxu0 %v1080
        %v1237 = vpop.f32.mrb[0].mxu0
        %v1238 = vadd.f32 %v1105, %v1237
        %v1239 = vpop.f32.mrb[0].mxu0
        %v1240 = vpop.f32.mrb[0].mxu0
        %v1241 = vadd.f32 %v1105, %v1240
        %v1242 = vpop.f32.mrb[0].mxu0
        %1243 = vmatprep.mubr.bf16.mxu0 0
        %1244 = vmatmul.mubr.bf16.gmra.mrb[0].mxu0 %v1081
        %v1245 = vpop.f32.mrb[0].mxu0
        %v1246 = vadd.f32 %v1105, %v1245
        %v1247 = vpop.f32.mrb[0].mxu0
        %v1248 = vpop.f32.mrb[0].mxu0
        %v1249 = vadd.f32 %v1105, %v1248
        %v1250 = vpop.f32.mrb[0].mxu0
        %1251 = vdwg.mxu0
        %vm1252 = vcmp.ge.f32.partialorder %v1190, 0.0
        %vm1253 = vcmp.ge.f32.partialorder %v1193, 0.0
        %vm1254 = vcmp.ge.f32.partialorder %v1198, 0.0
        %vm1255 = vcmp.ge.f32.partialorder %v1201, 0.0
        %vm1256 = vcmp.ge.f32.partialorder %v1206, 0.0
        %vm1257 = vcmp.ge.f32.partialorder %v1209, 0.0
        %vm1258 = vcmp.ge.f32.partialorder %v1214, 0.0
        %vm1259 = vcmp.ge.f32.partialorder %v1217, 0.0
        %vm1260 = vcmp.ge.f32.partialorder %v1222, 0.0
        %vm1261 = vcmp.ge.f32.partialorder %v1225, 0.0
        %vm1262 = vcmp.ge.f32.partialorder %v1230, 0.0
        %vm1263 = vcmp.ge.f32.partialorder %v1233, 0.0
        %vm1264 = vcmp.ge.f32.partialorder %v1238, 0.0
        %vm1265 = vcmp.ge.f32.partialorder %v1241, 0.0
        %vm1266 = vcmp.ge.f32.partialorder %v1246, 0.0
        %vm1267 = vcmp.ge.f32.partialorder %v1249, 0.0
        %v1268 = vmul.f32 %v1190, 0.2
        %v1269 = vmul.f32 %v1193, 0.2
        %v1270 = vmul.f32 %v1198, 0.2
        %v1271 = vmul.f32 %v1201, 0.2
        %v1272 = vmul.f32 %v1206, 0.2
        %v1273 = vmul.f32 %v1209, 0.2
        %v1274 = vmul.f32 %v1214, 0.2
        %v1275 = vmul.f32 %v1217, 0.2
        %v1276 = vmul.f32 %v1222, 0.2
        %v1277 = vmul.f32 %v1225, 0.2
        %v1278 = vmul.f32 %v1230, 0.2
        %v1279 = vmul.f32 %v1233, 0.2
        %v1280 = vmul.f32 %v1238, 0.2
        %v1281 = vmul.f32 %v1241, 0.2
        %v1282 = vmul.f32 %v1246, 0.2
        %v1283 = vmul.f32 %v1249, 0.2
        %v1284 = vsel %vm1252, %v1190, %v1268
        %v1285 = vsel %vm1253, %v1193, %v1269
        %v1286 = vsel %vm1254, %v1198, %v1270
        %v1287 = vsel %vm1255, %v1201, %v1271
        %v1288 = vsel %vm1256, %v1206, %v1272
        %v1289 = vsel %vm1257, %v1209, %v1273
        %v1290 = vsel %vm1258, %v1214, %v1274
        %v1291 = vsel %vm1259, %v1217, %v1275
        %v1292 = vsel %vm1260, %v1222, %v1276
        %v1293 = vsel %vm1261, %v1225, %v1277
        %v1294 = vsel %vm1262, %v1230, %v1278
        %v1295 = vsel %vm1263, %v1233, %v1279
        %v1296 = vsel %vm1264, %v1238, %v1280
        %v1297 = vsel %vm1265, %v1241, %v1281
        %v1298 = vsel %vm1266, %v1246, %v1282
        %v1299 = vsel %vm1267, %v1249, %v1283
        %v1300 = vmul.f32 %v1284, 1.4142135
        %v1301 = vmul.f32 %v1285, 1.4142135
        %v1302 = vmul.f32 %v1286, 1.4142135
        %v1303 = vmul.f32 %v1287, 1.4142135
        %v1304 = vmul.f32 %v1288, 1.4142135
        %v1305 = vmul.f32 %v1289, 1.4142135
        %v1306 = vmul.f32 %v1290, 1.4142135
        %v1307 = vmul.f32 %v1291, 1.4142135
        %v1308 = vmul.f32 %v1292, 1.4142135
        %v1309 = vmul.f32 %v1293, 1.4142135
        %v1310 = vmul.f32 %v1294, 1.4142135
        %v1311 = vmul.f32 %v1295, 1.4142135
        %v1312 = vmul.f32 %v1296, 1.4142135
        %v1313 = vmul.f32 %v1297, 1.4142135
        %v1314 = vmul.f32 %v1298, 1.4142135
        %v1315 = vmul.f32 %v1299, 1.4142135
        %v1316 = vpack.c.bf16 %v1301, %v1300
        %v1317 = vpack.c.bf16 %v1303, %v1302
        %v1318 = vpack.c.bf16 %v1305, %v1304
        %v1319 = vpack.c.bf16 %v1307, %v1306
        %v1320 = vpack.c.bf16 %v1309, %v1308
        %v1321 = vpack.c.bf16 %v1311, %v1310
        %v1322 = vpack.c.bf16 %v1313, %v1312
        %v1323 = vpack.c.bf16 %v1315, %v1314
        %s1324 = scalar_lea.vmem [#allocation5], 256
        %v1325 = vld [vmem:[%s1324] sm:$0xf]
        %v1326 = vld [vmem:[%s1324 + $0x4] sm:$0xf]
        %v1327 = vld [vmem:[%s1324 + $0x8] sm:$0xf]
        %v1328 = vld [vmem:[%s1324 + $0xc] sm:$0xf]
        %v1329 = vld [vmem:[%s1324 + $0x10] sm:$0xf]
        %v1330 = vld [vmem:[%s1324 + $0x14] sm:$0xf]
        %v1331 = vld [vmem:[%s1324 + $0x18] sm:$0xf]
        %v1332 = vld [vmem:[%s1324 + $0x1c] sm:$0xf]
        %v1333 = vld [vmem:[%s1324 + $0x20] sm:$0xf]
        %v1334 = vld [vmem:[%s1324 + $0x24] sm:$0xf]
        %v1335 = vld [vmem:[%s1324 + $0x28] sm:$0xf]
        %v1336 = vld [vmem:[%s1324 + $0x2c] sm:$0xf]
        %v1337 = vld [vmem:[%s1324 + $0x30] sm:$0xf]
        %v1338 = vld [vmem:[%s1324 + $0x34] sm:$0xf]
        %v1339 = vld [vmem:[%s1324 + $0x38] sm:$0xf]
        %v1340 = vld [vmem:[%s1324 + $0x3c] sm:$0xf]
        %s1341 = scalar_lea.vmem [#allocation7], 4
        %v1342 = vld [vmem:[%s1341] sm:$0x1]
        %v1344 = vlaneseq
        %v1345 = vshrl.u32 %v1344, 7
        %v1346 = vsub.s32 0, %v1345
        %v1347 = vrot.slane %v1342, %v1346
        %v1365 = vunpack.c.l.b16 %v1325
        %v1366 = vunpack.c.l.b16 %v1326
        %v1367 = vunpack.c.l.b16 %v1327
        %v1368 = vunpack.c.l.b16 %v1328
        %v1369 = vunpack.c.l.b16 %v1329
        %v1370 = vunpack.c.l.b16 %v1330
        %v1371 = vunpack.c.l.b16 %v1331
        %v1372 = vunpack.c.l.b16 %v1332
        %v1373 = vunpack.c.l.b16 %v1333
        %v1374 = vunpack.c.l.b16 %v1334
        %v1375 = vunpack.c.l.b16 %v1335
        %v1376 = vunpack.c.l.b16 %v1336
        %v1377 = vunpack.c.l.b16 %v1337
        %v1378 = vunpack.c.l.b16 %v1338
        %v1379 = vunpack.c.l.b16 %v1339
        %v1380 = vunpack.c.l.b16 %v1340
        %v1381 = vpack.c.b16 %v1366, %v1365
        %v1382 = vpack.c.b16 %v1368, %v1367
        %v1383 = vpack.c.b16 %v1370, %v1369
        %v1384 = vpack.c.b16 %v1372, %v1371
        %v1385 = vpack.c.b16 %v1374, %v1373
        %v1386 = vpack.c.b16 %v1376, %v1375
        %v1387 = vpack.c.b16 %v1378, %v1377
        %v1388 = vpack.c.b16 %v1380, %v1379
        %1397 = vmatprep.subr.bf16.mxu0 0
        %1398 = vmatpush1.bf16.msra.mxu0 %v1381
        %1399 = vmatprep.subr.bf16.mxu0 0
        %1400 = vmatpush1.bf16.msra.mxu0 %v1382
        %1401 = vmatprep.subr.bf16.mxu0 0
        %1402 = vmatpush1.bf16.msra.mxu0 %v1383
        %1403 = vmatprep.subr.bf16.mxu0 0
        %1404 = vmatpush1.bf16.msra.mxu0 %v1384
        %1405 = vmatprep.subr.bf16.mxu0 0
        %1406 = vmatpush1.bf16.msra.mxu0 %v1385
        %1407 = vmatprep.subr.bf16.mxu0 0
        %1408 = vmatpush1.bf16.msra.mxu0 %v1386
        %1409 = vmatprep.subr.bf16.mxu0 0
        %1410 = vmatpush1.bf16.msra.mxu0 %v1387
        %1411 = vmatprep.subr.bf16.mxu0 0
        %1412 = vmatpush1.bf16.msra.mxu0 %v1388
        %1413 = vmatprep.subr.bf16.mxu0 0
        %1414 = vmatpush1.bf16.msra.mxu0 0
        %1415 = vmatprep.subr.bf16.mxu0 0
        %1416 = vmatpush1.bf16.msra.mxu0 0
        %1417 = vmatprep.subr.bf16.mxu0 0
        %1418 = vmatpush1.bf16.msra.mxu0 0
        %1419 = vmatprep.subr.bf16.mxu0 0
        %1420 = vmatpush1.bf16.msra.mxu0 0
        %1421 = vmatprep.subr.bf16.mxu0 0
        %1422 = vmatpush1.bf16.msra.mxu0 0
        %1423 = vmatprep.subr.bf16.mxu0 0
        %1424 = vmatpush1.bf16.msra.mxu0 0
        %1425 = vmatprep.subr.bf16.mxu0 0
        %1426 = vmatpush1.bf16.msra.mxu0 0
        %1427 = vmatprep.subr.bf16.mxu0 0
        %1428 = vmatpush1.bf16.msra.mxu0 0
        %1429 = vmatprep.mubr.bf16.mxu0 0
        %1430 = vmatmul.mubr.bf16.gmra.mrb[0].mxu0 %v1316
        %v1431 = vpop.f32.mrb[0].mxu0
        %v1432 = vadd.f32 %v1347, %v1431
        %v1433 = vpop.f32.mrb[0].mxu0
        %v1434 = vpop.f32.mrb[0].mxu0
        %v1435 = vadd.f32 %v1347, %v1434
        %v1436 = vpop.f32.mrb[0].mxu0
        %1437 = vmatprep.mubr.bf16.mxu0 0
        %1438 = vmatmul.mubr.bf16.gmra.mrb[0].mxu0 %v1317
        %v1439 = vpop.f32.mrb[0].mxu0
        %v1440 = vadd.f32 %v1347, %v1439
        %v1441 = vpop.f32.mrb[0].mxu0
        %v1442 = vpop.f32.mrb[0].mxu0
        %v1443 = vadd.f32 %v1347, %v1442
        %v1444 = vpop.f32.mrb[0].mxu0
        %1445 = vmatprep.mubr.bf16.mxu0 0
        %1446 = vmatmul.mubr.bf16.gmra.mrb[0].mxu0 %v1318
        %v1447 = vpop.f32.mrb[0].mxu0
        %v1448 = vadd.f32 %v1347, %v1447
        %v1449 = vpop.f32.mrb[0].mxu0
        %v1450 = vpop.f32.mrb[0].mxu0
        %v1451 = vadd.f32 %v1347, %v1450
        %v1452 = vpop.f32.mrb[0].mxu0
        %1453 = vmatprep.mubr.bf16.mxu0 0
        %1454 = vmatmul.mubr.bf16.gmra.mrb[0].mxu0 %v1319
        %v1455 = vpop.f32.mrb[0].mxu0
        %v1456 = vadd.f32 %v1347, %v1455
        %v1457 = vpop.f32.mrb[0].mxu0
        %v1458 = vpop.f32.mrb[0].mxu0
        %v1459 = vadd.f32 %v1347, %v1458
        %v1460 = vpop.f32.mrb[0].mxu0
        %1461 = vmatprep.mubr.bf16.mxu0 0
        %1462 = vmatmul.mubr.bf16.gmra.mrb[0].mxu0 %v1320
        %v1463 = vpop.f32.mrb[0].mxu0
        %v1464 = vadd.f32 %v1347, %v1463
        %v1465 = vpop.f32.mrb[0].mxu0
        %v1466 = vpop.f32.mrb[0].mxu0
        %v1467 = vadd.f32 %v1347, %v1466
        %v1468 = vpop.f32.mrb[0].mxu0
        %1469 = vmatprep.mubr.bf16.mxu0 0
        %1470 = vmatmul.mubr.bf16.gmra.mrb[0].mxu0 %v1321
        %v1471 = vpop.f32.mrb[0].mxu0
        %v1472 = vadd.f32 %v1347, %v1471
        %v1473 = vpop.f32.mrb[0].mxu0
        %v1474 = vpop.f32.mrb[0].mxu0
        %v1475 = vadd.f32 %v1347, %v1474
        %v1476 = vpop.f32.mrb[0].mxu0
        %1477 = vmatprep.mubr.bf16.mxu0 0
        %1478 = vmatmul.mubr.bf16.gmra.mrb[0].mxu0 %v1322
        %v1479 = vpop.f32.mrb[0].mxu0
        %v1480 = vadd.f32 %v1347, %v1479
        %v1481 = vpop.f32.mrb[0].mxu0
        %v1482 = vpop.f32.mrb[0].mxu0
        %v1483 = vadd.f32 %v1347, %v1482
        %v1484 = vpop.f32.mrb[0].mxu0
        %1485 = vmatprep.mubr.bf16.mxu0 0
        %1486 = vmatmul.mubr.bf16.gmra.mrb[0].mxu0 %v1323
        %v1487 = vpop.f32.mrb[0].mxu0
        %v1488 = vadd.f32 %v1347, %v1487
        %v1489 = vpop.f32.mrb[0].mxu0
        %v1490 = vpop.f32.mrb[0].mxu0
        %v1491 = vadd.f32 %v1347, %v1490
        %v1492 = vpop.f32.mrb[0].mxu0
        %1493 = vdwg.mxu0
        %vm1494 = vcmp.ge.f32.partialorder %v1432, 0.0
        %vm1495 = vcmp.ge.f32.partialorder %v1435, 0.0
        %vm1496 = vcmp.ge.f32.partialorder %v1440, 0.0
        %vm1497 = vcmp.ge.f32.partialorder %v1443, 0.0
        %vm1498 = vcmp.ge.f32.partialorder %v1448, 0.0
        %vm1499 = vcmp.ge.f32.partialorder %v1451, 0.0
        %vm1500 = vcmp.ge.f32.partialorder %v1456, 0.0
        %vm1501 = vcmp.ge.f32.partialorder %v1459, 0.0
        %vm1502 = vcmp.ge.f32.partialorder %v1464, 0.0
        %vm1503 = vcmp.ge.f32.partialorder %v1467, 0.0
        %vm1504 = vcmp.ge.f32.partialorder %v1472, 0.0
        %vm1505 = vcmp.ge.f32.partialorder %v1475, 0.0
        %vm1506 = vcmp.ge.f32.partialorder %v1480, 0.0
        %vm1507 = vcmp.ge.f32.partialorder %v1483, 0.0
        %vm1508 = vcmp.ge.f32.partialorder %v1488, 0.0
        %vm1509 = vcmp.ge.f32.partialorder %v1491, 0.0
        %v1510 = vmul.f32 %v1432, 0.2
        %v1511 = vmul.f32 %v1435, 0.2
        %v1512 = vmul.f32 %v1440, 0.2
        %v1513 = vmul.f32 %v1443, 0.2
        %v1514 = vmul.f32 %v1448, 0.2
        %v1515 = vmul.f32 %v1451, 0.2
        %v1516 = vmul.f32 %v1456, 0.2
        %v1517 = vmul.f32 %v1459, 0.2
        %v1518 = vmul.f32 %v1464, 0.2
        %v1519 = vmul.f32 %v1467, 0.2
        %v1520 = vmul.f32 %v1472, 0.2
        %v1521 = vmul.f32 %v1475, 0.2
        %v1522 = vmul.f32 %v1480, 0.2
        %v1523 = vmul.f32 %v1483, 0.2
        %v1524 = vmul.f32 %v1488, 0.2
        %v1525 = vmul.f32 %v1491, 0.2
        %v1526 = vsel %vm1494, %v1432, %v1510
        %v1527 = vsel %vm1495, %v1435, %v1511
        %v1528 = vsel %vm1496, %v1440, %v1512
        %v1529 = vsel %vm1497, %v1443, %v1513
        %v1530 = vsel %vm1498, %v1448, %v1514
        %v1531 = vsel %vm1499, %v1451, %v1515
        %v1532 = vsel %vm1500, %v1456, %v1516
        %v1533 = vsel %vm1501, %v1459, %v1517
        %v1534 = vsel %vm1502, %v1464, %v1518
        %v1535 = vsel %vm1503, %v1467, %v1519
        %v1536 = vsel %vm1504, %v1472, %v1520
        %v1537 = vsel %vm1505, %v1475, %v1521
        %v1538 = vsel %vm1506, %v1480, %v1522
        %v1539 = vsel %vm1507, %v1483, %v1523
        %v1540 = vsel %vm1508, %v1488, %v1524
        %v1541 = vsel %vm1509, %v1491, %v1525
        %v1542 = vmul.f32 %v1526, 1.4142135
        %v1543 = vmul.f32 %v1527, 1.4142135
        %v1544 = vmul.f32 %v1528, 1.4142135
        %v1545 = vmul.f32 %v1529, 1.4142135
        %v1546 = vmul.f32 %v1530, 1.4142135
        %v1547 = vmul.f32 %v1531, 1.4142135
        %v1548 = vmul.f32 %v1532, 1.4142135
        %v1549 = vmul.f32 %v1533, 1.4142135
        %v1550 = vmul.f32 %v1534, 1.4142135
        %v1551 = vmul.f32 %v1535, 1.4142135
        %v1552 = vmul.f32 %v1536, 1.4142135
        %v1553 = vmul.f32 %v1537, 1.4142135
        %v1554 = vmul.f32 %v1538, 1.4142135
        %v1555 = vmul.f32 %v1539, 1.4142135
        %v1556 = vmul.f32 %v1540, 1.4142135
        %v1557 = vmul.f32 %v1541, 1.4142135
        %v1558 = vpack.c.bf16 %v1543, %v1542
        %v1559 = vpack.c.bf16 %v1545, %v1544
        %v1560 = vpack.c.bf16 %v1547, %v1546
        %v1561 = vpack.c.bf16 %v1549, %v1548
        %v1562 = vpack.c.bf16 %v1551, %v1550
        %v1563 = vpack.c.bf16 %v1553, %v1552
        %v1564 = vpack.c.bf16 %v1555, %v1554
        %v1565 = vpack.c.bf16 %v1557, %v1556
        %s1566 = scalar_lea.vmem [#allocation5], 320
        %v1567 = vld [vmem:[%s1566] sm:$0xf]
        %v1568 = vld [vmem:[%s1566 + $0x4] sm:$0xf]
        %v1569 = vld [vmem:[%s1566 + $0x8] sm:$0xf]
        %v1570 = vld [vmem:[%s1566 + $0xc] sm:$0xf]
        %v1571 = vld [vmem:[%s1566 + $0x10] sm:$0xf]
        %v1572 = vld [vmem:[%s1566 + $0x14] sm:$0xf]
        %v1573 = vld [vmem:[%s1566 + $0x18] sm:$0xf]
        %v1574 = vld [vmem:[%s1566 + $0x1c] sm:$0xf]
        %v1575 = vld [vmem:[%s1566 + $0x20] sm:$0xf]
        %v1576 = vld [vmem:[%s1566 + $0x24] sm:$0xf]
        %v1577 = vld [vmem:[%s1566 + $0x28] sm:$0xf]
        %v1578 = vld [vmem:[%s1566 + $0x2c] sm:$0xf]
        %v1579 = vld [vmem:[%s1566 + $0x30] sm:$0xf]
        %v1580 = vld [vmem:[%s1566 + $0x34] sm:$0xf]
        %v1581 = vld [vmem:[%s1566 + $0x38] sm:$0xf]
        %v1582 = vld [vmem:[%s1566 + $0x3c] sm:$0xf]
        %s1583 = scalar_lea.vmem [#allocation7], 5
        %v1584 = vld [vmem:[%s1583] sm:$0x1]
        %v1586 = vlaneseq
        %v1587 = vshrl.u32 %v1586, 7
        %v1588 = vsub.s32 0, %v1587
        %v1589 = vrot.slane %v1584, %v1588
        %v1607 = vunpack.c.l.b16 %v1567
        %v1608 = vunpack.c.l.b16 %v1568
        %v1609 = vunpack.c.l.b16 %v1569
        %v1610 = vunpack.c.l.b16 %v1570
        %v1611 = vunpack.c.l.b16 %v1571
        %v1612 = vunpack.c.l.b16 %v1572
        %v1613 = vunpack.c.l.b16 %v1573
        %v1614 = vunpack.c.l.b16 %v1574
        %v1615 = vunpack.c.l.b16 %v1575
        %v1616 = vunpack.c.l.b16 %v1576
        %v1617 = vunpack.c.l.b16 %v1577
        %v1618 = vunpack.c.l.b16 %v1578
        %v1619 = vunpack.c.l.b16 %v1579
        %v1620 = vunpack.c.l.b16 %v1580
        %v1621 = vunpack.c.l.b16 %v1581
        %v1622 = vunpack.c.l.b16 %v1582
        %v1623 = vpack.c.b16 %v1608, %v1607
        %v1624 = vpack.c.b16 %v1610, %v1609
        %v1625 = vpack.c.b16 %v1612, %v1611
        %v1626 = vpack.c.b16 %v1614, %v1613
        %v1627 = vpack.c.b16 %v1616, %v1615
        %v1628 = vpack.c.b16 %v1618, %v1617
        %v1629 = vpack.c.b16 %v1620, %v1619
        %v1630 = vpack.c.b16 %v1622, %v1621
        %1639 = vmatprep.subr.bf16.mxu0 0
        %1640 = vmatpush1.bf16.msra.mxu0 %v1623
        %1641 = vmatprep.subr.bf16.mxu0 0
        %1642 = vmatpush1.bf16.msra.mxu0 %v1624
        %1643 = vmatprep.subr.bf16.mxu0 0
        %1644 = vmatpush1.bf16.msra.mxu0 %v1625
        %1645 = vmatprep.subr.bf16.mxu0 0
        %1646 = vmatpush1.bf16.msra.mxu0 %v1626
        %1647 = vmatprep.subr.bf16.mxu0 0
        %1648 = vmatpush1.bf16.msra.mxu0 %v1627
        %1649 = vmatprep.subr.bf16.mxu0 0
        %1650 = vmatpush1.bf16.msra.mxu0 %v1628
        %1651 = vmatprep.subr.bf16.mxu0 0
        %1652 = vmatpush1.bf16.msra.mxu0 %v1629
        %1653 = vmatprep.subr.bf16.mxu0 0
        %1654 = vmatpush1.bf16.msra.mxu0 %v1630
        %1655 = vmatprep.subr.bf16.mxu0 0
        %1656 = vmatpush1.bf16.msra.mxu0 0
        %1657 = vmatprep.subr.bf16.mxu0 0
        %1658 = vmatpush1.bf16.msra.mxu0 0
        %1659 = vmatprep.subr.bf16.mxu0 0
        %1660 = vmatpush1.bf16.msra.mxu0 0
        %1661 = vmatprep.subr.bf16.mxu0 0
        %1662 = vmatpush1.bf16.msra.mxu0 0
        %1663 = vmatprep.subr.bf16.mxu0 0
        %1664 = vmatpush1.bf16.msra.mxu0 0
        %1665 = vmatprep.subr.bf16.mxu0 0
        %1666 = vmatpush1.bf16.msra.mxu0 0
        %1667 = vmatprep.subr.bf16.mxu0 0
        %1668 = vmatpush1.bf16.msra.mxu0 0
        %1669 = vmatprep.subr.bf16.mxu0 0
        %1670 = vmatpush1.bf16.msra.mxu0 0
        %1671 = vmatprep.mubr.bf16.mxu0 0
        %1672 = vmatmul.mubr.bf16.gmra.mrb[0].mxu0 %v1558
        %v1673 = vpop.f32.mrb[0].mxu0
        %v1674 = vadd.f32 %v1589, %v1673
        %v1675 = vpop.f32.mrb[0].mxu0
        %v1676 = vpop.f32.mrb[0].mxu0
        %v1677 = vadd.f32 %v1589, %v1676
        %v1678 = vpop.f32.mrb[0].mxu0
        %1679 = vmatprep.mubr.bf16.mxu0 0
        %1680 = vmatmul.mubr.bf16.gmra.mrb[0].mxu0 %v1559
        %v1681 = vpop.f32.mrb[0].mxu0
        %v1682 = vadd.f32 %v1589, %v1681
        %v1683 = vpop.f32.mrb[0].mxu0
        %v1684 = vpop.f32.mrb[0].mxu0
        %v1685 = vadd.f32 %v1589, %v1684
        %v1686 = vpop.f32.mrb[0].mxu0
        %1687 = vmatprep.mubr.bf16.mxu0 0
        %1688 = vmatmul.mubr.bf16.gmra.mrb[0].mxu0 %v1560
        %v1689 = vpop.f32.mrb[0].mxu0
        %v1690 = vadd.f32 %v1589, %v1689
        %v1691 = vpop.f32.mrb[0].mxu0
        %v1692 = vpop.f32.mrb[0].mxu0
        %v1693 = vadd.f32 %v1589, %v1692
        %v1694 = vpop.f32.mrb[0].mxu0
        %1695 = vmatprep.mubr.bf16.mxu0 0
        %1696 = vmatmul.mubr.bf16.gmra.mrb[0].mxu0 %v1561
        %v1697 = vpop.f32.mrb[0].mxu0
        %v1698 = vadd.f32 %v1589, %v1697
        %v1699 = vpop.f32.mrb[0].mxu0
        %v1700 = vpop.f32.mrb[0].mxu0
        %v1701 = vadd.f32 %v1589, %v1700
        %v1702 = vpop.f32.mrb[0].mxu0
        %1703 = vmatprep.mubr.bf16.mxu0 0
        %1704 = vmatmul.mubr.bf16.gmra.mrb[0].mxu0 %v1562
        %v1705 = vpop.f32.mrb[0].mxu0
        %v1706 = vadd.f32 %v1589, %v1705
        %v1707 = vpop.f32.mrb[0].mxu0
        %v1708 = vpop.f32.mrb[0].mxu0
        %v1709 = vadd.f32 %v1589, %v1708
        %v1710 = vpop.f32.mrb[0].mxu0
        %1711 = vmatprep.mubr.bf16.mxu0 0
        %1712 = vmatmul.mubr.bf16.gmra.mrb[0].mxu0 %v1563
        %v1713 = vpop.f32.mrb[0].mxu0
        %v1714 = vadd.f32 %v1589, %v1713
        %v1715 = vpop.f32.mrb[0].mxu0
        %v1716 = vpop.f32.mrb[0].mxu0
        %v1717 = vadd.f32 %v1589, %v1716
        %v1718 = vpop.f32.mrb[0].mxu0
        %1719 = vmatprep.mubr.bf16.mxu0 0
        %1720 = vmatmul.mubr.bf16.gmra.mrb[0].mxu0 %v1564
        %v1721 = vpop.f32.mrb[0].mxu0
        %v1722 = vadd.f32 %v1589, %v1721
        %v1723 = vpop.f32.mrb[0].mxu0
        %v1724 = vpop.f32.mrb[0].mxu0
        %v1725 = vadd.f32 %v1589, %v1724
        %v1726 = vpop.f32.mrb[0].mxu0
        %1727 = vmatprep.mubr.bf16.mxu0 0
        %1728 = vmatmul.mubr.bf16.gmra.mrb[0].mxu0 %v1565
        %v1729 = vpop.f32.mrb[0].mxu0
        %v1730 = vadd.f32 %v1589, %v1729
        %v1731 = vpop.f32.mrb[0].mxu0
        %v1732 = vpop.f32.mrb[0].mxu0
        %v1733 = vadd.f32 %v1589, %v1732
        %v1734 = vpop.f32.mrb[0].mxu0
        %1735 = vdwg.mxu0
        %vm1736 = vcmp.ge.f32.partialorder %v1674, 0.0
        %vm1737 = vcmp.ge.f32.partialorder %v1677, 0.0
        %vm1738 = vcmp.ge.f32.partialorder %v1682, 0.0
        %vm1739 = vcmp.ge.f32.partialorder %v1685, 0.0
        %vm1740 = vcmp.ge.f32.partialorder %v1690, 0.0
        %vm1741 = vcmp.ge.f32.partialorder %v1693, 0.0
        %vm1742 = vcmp.ge.f32.partialorder %v1698, 0.0
        %vm1743 = vcmp.ge.f32.partialorder %v1701, 0.0
        %vm1744 = vcmp.ge.f32.partialorder %v1706, 0.0
        %vm1745 = vcmp.ge.f32.partialorder %v1709, 0.0
        %vm1746 = vcmp.ge.f32.partialorder %v1714, 0.0
        %vm1747 = vcmp.ge.f32.partialorder %v1717, 0.0
        %vm1748 = vcmp.ge.f32.partialorder %v1722, 0.0
        %vm1749 = vcmp.ge.f32.partialorder %v1725, 0.0
        %vm1750 = vcmp.ge.f32.partialorder %v1730, 0.0
        %vm1751 = vcmp.ge.f32.partialorder %v1733, 0.0
        %v1752 = vmul.f32 %v1674, 0.2
        %v1753 = vmul.f32 %v1677, 0.2
        %v1754 = vmul.f32 %v1682, 0.2
        %v1755 = vmul.f32 %v1685, 0.2
        %v1756 = vmul.f32 %v1690, 0.2
        %v1757 = vmul.f32 %v1693, 0.2
        %v1758 = vmul.f32 %v1698, 0.2
        %v1759 = vmul.f32 %v1701, 0.2
        %v1760 = vmul.f32 %v1706, 0.2
        %v1761 = vmul.f32 %v1709, 0.2
        %v1762 = vmul.f32 %v1714, 0.2
        %v1763 = vmul.f32 %v1717, 0.2
        %v1764 = vmul.f32 %v1722, 0.2
        %v1765 = vmul.f32 %v1725, 0.2
        %v1766 = vmul.f32 %v1730, 0.2
        %v1767 = vmul.f32 %v1733, 0.2
        %v1768 = vsel %vm1736, %v1674, %v1752
        %v1769 = vsel %vm1737, %v1677, %v1753
        %v1770 = vsel %vm1738, %v1682, %v1754
        %v1771 = vsel %vm1739, %v1685, %v1755
        %v1772 = vsel %vm1740, %v1690, %v1756
        %v1773 = vsel %vm1741, %v1693, %v1757
        %v1774 = vsel %vm1742, %v1698, %v1758
        %v1775 = vsel %vm1743, %v1701, %v1759
        %v1776 = vsel %vm1744, %v1706, %v1760
        %v1777 = vsel %vm1745, %v1709, %v1761
        %v1778 = vsel %vm1746, %v1714, %v1762
        %v1779 = vsel %vm1747, %v1717, %v1763
        %v1780 = vsel %vm1748, %v1722, %v1764
        %v1781 = vsel %vm1749, %v1725, %v1765
        %v1782 = vsel %vm1750, %v1730, %v1766
        %v1783 = vsel %vm1751, %v1733, %v1767
        %v1784 = vmul.f32 %v1768, 1.4142135
        %v1785 = vmul.f32 %v1769, 1.4142135
        %v1786 = vmul.f32 %v1770, 1.4142135
        %v1787 = vmul.f32 %v1771, 1.4142135
        %v1788 = vmul.f32 %v1772, 1.4142135
        %v1789 = vmul.f32 %v1773, 1.4142135
        %v1790 = vmul.f32 %v1774, 1.4142135
        %v1791 = vmul.f32 %v1775, 1.4142135
        %v1792 = vmul.f32 %v1776, 1.4142135
        %v1793 = vmul.f32 %v1777, 1.4142135
        %v1794 = vmul.f32 %v1778, 1.4142135
        %v1795 = vmul.f32 %v1779, 1.4142135
        %v1796 = vmul.f32 %v1780, 1.4142135
        %v1797 = vmul.f32 %v1781, 1.4142135
        %v1798 = vmul.f32 %v1782, 1.4142135
        %v1799 = vmul.f32 %v1783, 1.4142135
        %v1800 = vpack.c.bf16 %v1785, %v1784
        %v1801 = vpack.c.bf16 %v1787, %v1786
        %v1802 = vpack.c.bf16 %v1789, %v1788
        %v1803 = vpack.c.bf16 %v1791, %v1790
        %v1804 = vpack.c.bf16 %v1793, %v1792
        %v1805 = vpack.c.bf16 %v1795, %v1794
        %v1806 = vpack.c.bf16 %v1797, %v1796
        %v1807 = vpack.c.bf16 %v1799, %v1798
        %s1808 = scalar_lea.vmem [#allocation5], 384
        %v1809 = vld [vmem:[%s1808] sm:$0xf]
        %v1810 = vld [vmem:[%s1808 + $0x4] sm:$0xf]
        %v1811 = vld [vmem:[%s1808 + $0x8] sm:$0xf]
        %v1812 = vld [vmem:[%s1808 + $0xc] sm:$0xf]
        %v1813 = vld [vmem:[%s1808 + $0x10] sm:$0xf]
        %v1814 = vld [vmem:[%s1808 + $0x14] sm:$0xf]
        %v1815 = vld [vmem:[%s1808 + $0x18] sm:$0xf]
        %v1816 = vld [vmem:[%s1808 + $0x1c] sm:$0xf]
        %v1817 = vld [vmem:[%s1808 + $0x20] sm:$0xf]
        %v1818 = vld [vmem:[%s1808 + $0x24] sm:$0xf]
        %v1819 = vld [vmem:[%s1808 + $0x28] sm:$0xf]
        %v1820 = vld [vmem:[%s1808 + $0x2c] sm:$0xf]
        %v1821 = vld [vmem:[%s1808 + $0x30] sm:$0xf]
        %v1822 = vld [vmem:[%s1808 + $0x34] sm:$0xf]
        %v1823 = vld [vmem:[%s1808 + $0x38] sm:$0xf]
        %v1824 = vld [vmem:[%s1808 + $0x3c] sm:$0xf]
        %s1825 = scalar_lea.vmem [#allocation7], 6
        %v1826 = vld [vmem:[%s1825] sm:$0x1]
        %v1828 = vlaneseq
        %v1829 = vshrl.u32 %v1828, 7
        %v1830 = vsub.s32 0, %v1829
        %v1831 = vrot.slane %v1826, %v1830
        %v1849 = vunpack.c.l.b16 %v1809
        %v1850 = vunpack.c.l.b16 %v1810
        %v1851 = vunpack.c.l.b16 %v1811
        %v1852 = vunpack.c.l.b16 %v1812
        %v1853 = vunpack.c.l.b16 %v1813
        %v1854 = vunpack.c.l.b16 %v1814
        %v1855 = vunpack.c.l.b16 %v1815
        %v1856 = vunpack.c.l.b16 %v1816
        %v1857 = vunpack.c.l.b16 %v1817
        %v1858 = vunpack.c.l.b16 %v1818
        %v1859 = vunpack.c.l.b16 %v1819
        %v1860 = vunpack.c.l.b16 %v1820
        %v1861 = vunpack.c.l.b16 %v1821
        %v1862 = vunpack.c.l.b16 %v1822
        %v1863 = vunpack.c.l.b16 %v1823
        %v1864 = vunpack.c.l.b16 %v1824
        %v1865 = vpack.c.b16 %v1850, %v1849
        %v1866 = vpack.c.b16 %v1852, %v1851
        %v1867 = vpack.c.b16 %v1854, %v1853
        %v1868 = vpack.c.b16 %v1856, %v1855
        %v1869 = vpack.c.b16 %v1858, %v1857
        %v1870 = vpack.c.b16 %v1860, %v1859
        %v1871 = vpack.c.b16 %v1862, %v1861
        %v1872 = vpack.c.b16 %v1864, %v1863
        %1881 = vmatprep.subr.bf16.mxu0 0
        %1882 = vmatpush1.bf16.msra.mxu0 %v1865
        %1883 = vmatprep.subr.bf16.mxu0 0
        %1884 = vmatpush1.bf16.msra.mxu0 %v1866
        %1885 = vmatprep.subr.bf16.mxu0 0
        %1886 = vmatpush1.bf16.msra.mxu0 %v1867
        %1887 = vmatprep.subr.bf16.mxu0 0
        %1888 = vmatpush1.bf16.msra.mxu0 %v1868
        %1889 = vmatprep.subr.bf16.mxu0 0
        %1890 = vmatpush1.bf16.msra.mxu0 %v1869
        %1891 = vmatprep.subr.bf16.mxu0 0
        %1892 = vmatpush1.bf16.msra.mxu0 %v1870
        %1893 = vmatprep.subr.bf16.mxu0 0
        %1894 = vmatpush1.bf16.msra.mxu0 %v1871
        %1895 = vmatprep.subr.bf16.mxu0 0
        %1896 = vmatpush1.bf16.msra.mxu0 %v1872
        %1897 = vmatprep.subr.bf16.mxu0 0
        %1898 = vmatpush1.bf16.msra.mxu0 0
        %1899 = vmatprep.subr.bf16.mxu0 0
        %1900 = vmatpush1.bf16.msra.mxu0 0
        %1901 = vmatprep.subr.bf16.mxu0 0
        %1902 = vmatpush1.bf16.msra.mxu0 0
        %1903 = vmatprep.subr.bf16.mxu0 0
        %1904 = vmatpush1.bf16.msra.mxu0 0
        %1905 = vmatprep.subr.bf16.mxu0 0
        %1906 = vmatpush1.bf16.msra.mxu0 0
        %1907 = vmatprep.subr.bf16.mxu0 0
        %1908 = vmatpush1.bf16.msra.mxu0 0
        %1909 = vmatprep.subr.bf16.mxu0 0
        %1910 = vmatpush1.bf16.msra.mxu0 0
        %1911 = vmatprep.subr.bf16.mxu0 0
        %1912 = vmatpush1.bf16.msra.mxu0 0
        %1913 = vmatprep.mubr.bf16.mxu0 0
        %1914 = vmatmul.mubr.bf16.gmra.mrb[0].mxu0 %v1800
        %v1915 = vpop.f32.mrb[0].mxu0
        %v1916 = vadd.f32 %v1831, %v1915
        %v1917 = vpop.f32.mrb[0].mxu0
        %v1918 = vpop.f32.mrb[0].mxu0
        %v1919 = vadd.f32 %v1831, %v1918
        %v1920 = vpop.f32.mrb[0].mxu0
        %1921 = vmatprep.mubr.bf16.mxu0 0
        %1922 = vmatmul.mubr.bf16.gmra.mrb[0].mxu0 %v1801
        %v1923 = vpop.f32.mrb[0].mxu0
        %v1924 = vadd.f32 %v1831, %v1923
        %v1925 = vpop.f32.mrb[0].mxu0
        %v1926 = vpop.f32.mrb[0].mxu0
        %v1927 = vadd.f32 %v1831, %v1926
        %v1928 = vpop.f32.mrb[0].mxu0
        %1929 = vmatprep.mubr.bf16.mxu0 0
        %1930 = vmatmul.mubr.bf16.gmra.mrb[0].mxu0 %v1802
        %v1931 = vpop.f32.mrb[0].mxu0
        %v1932 = vadd.f32 %v1831, %v1931
        %v1933 = vpop.f32.mrb[0].mxu0
        %v1934 = vpop.f32.mrb[0].mxu0
        %v1935 = vadd.f32 %v1831, %v1934
        %v1936 = vpop.f32.mrb[0].mxu0
        %1937 = vmatprep.mubr.bf16.mxu0 0
        %1938 = vmatmul.mubr.bf16.gmra.mrb[0].mxu0 %v1803
        %v1939 = vpop.f32.mrb[0].mxu0
        %v1940 = vadd.f32 %v1831, %v1939
        %v1941 = vpop.f32.mrb[0].mxu0
        %v1942 = vpop.f32.mrb[0].mxu0
        %v1943 = vadd.f32 %v1831, %v1942
        %v1944 = vpop.f32.mrb[0].mxu0
        %1945 = vmatprep.mubr.bf16.mxu0 0
        %1946 = vmatmul.mubr.bf16.gmra.mrb[0].mxu0 %v1804
        %v1947 = vpop.f32.mrb[0].mxu0
        %v1948 = vadd.f32 %v1831, %v1947
        %v1949 = vpop.f32.mrb[0].mxu0
        %v1950 = vpop.f32.mrb[0].mxu0
        %v1951 = vadd.f32 %v1831, %v1950
        %v1952 = vpop.f32.mrb[0].mxu0
        %1953 = vmatprep.mubr.bf16.mxu0 0
        %1954 = vmatmul.mubr.bf16.gmra.mrb[0].mxu0 %v1805
        %v1955 = vpop.f32.mrb[0].mxu0
        %v1956 = vadd.f32 %v1831, %v1955
        %v1957 = vpop.f32.mrb[0].mxu0
        %v1958 = vpop.f32.mrb[0].mxu0
        %v1959 = vadd.f32 %v1831, %v1958
        %v1960 = vpop.f32.mrb[0].mxu0
        %1961 = vmatprep.mubr.bf16.mxu0 0
        %1962 = vmatmul.mubr.bf16.gmra.mrb[0].mxu0 %v1806
        %v1963 = vpop.f32.mrb[0].mxu0
        %v1964 = vadd.f32 %v1831, %v1963
        %v1965 = vpop.f32.mrb[0].mxu0
        %v1966 = vpop.f32.mrb[0].mxu0
        %v1967 = vadd.f32 %v1831, %v1966
        %v1968 = vpop.f32.mrb[0].mxu0
        %1969 = vmatprep.mubr.bf16.mxu0 0
        %1970 = vmatmul.mubr.bf16.gmra.mrb[0].mxu0 %v1807
        %v1971 = vpop.f32.mrb[0].mxu0
        %v1972 = vadd.f32 %v1831, %v1971
        %v1973 = vpop.f32.mrb[0].mxu0
        %v1974 = vpop.f32.mrb[0].mxu0
        %v1975 = vadd.f32 %v1831, %v1974
        %v1976 = vpop.f32.mrb[0].mxu0
        %1977 = vdwg.mxu0
        %vm1978 = vcmp.ge.f32.partialorder %v1916, 0.0
        %vm1979 = vcmp.ge.f32.partialorder %v1919, 0.0
        %vm1980 = vcmp.ge.f32.partialorder %v1924, 0.0
        %vm1981 = vcmp.ge.f32.partialorder %v1927, 0.0
        %vm1982 = vcmp.ge.f32.partialorder %v1932, 0.0
        %vm1983 = vcmp.ge.f32.partialorder %v1935, 0.0
        %vm1984 = vcmp.ge.f32.partialorder %v1940, 0.0
        %vm1985 = vcmp.ge.f32.partialorder %v1943, 0.0
        %vm1986 = vcmp.ge.f32.partialorder %v1948, 0.0
        %vm1987 = vcmp.ge.f32.partialorder %v1951, 0.0
        %vm1988 = vcmp.ge.f32.partialorder %v1956, 0.0
        %vm1989 = vcmp.ge.f32.partialorder %v1959, 0.0
        %vm1990 = vcmp.ge.f32.partialorder %v1964, 0.0
        %vm1991 = vcmp.ge.f32.partialorder %v1967, 0.0
        %vm1992 = vcmp.ge.f32.partialorder %v1972, 0.0
        %vm1993 = vcmp.ge.f32.partialorder %v1975, 0.0
        %v1994 = vmul.f32 %v1916, 0.2
        %v1995 = vmul.f32 %v1919, 0.2
        %v1996 = vmul.f32 %v1924, 0.2
        %v1997 = vmul.f32 %v1927, 0.2
        %v1998 = vmul.f32 %v1932, 0.2
        %v1999 = vmul.f32 %v1935, 0.2
        %v2000 = vmul.f32 %v1940, 0.2
        %v2001 = vmul.f32 %v1943, 0.2
        %v2002 = vmul.f32 %v1948, 0.2
        %v2003 = vmul.f32 %v1951, 0.2
        %v2004 = vmul.f32 %v1956, 0.2
        %v2005 = vmul.f32 %v1959, 0.2
        %v2006 = vmul.f32 %v1964, 0.2
        %v2007 = vmul.f32 %v1967, 0.2
        %v2008 = vmul.f32 %v1972, 0.2
        %v2009 = vmul.f32 %v1975, 0.2
        %v2010 = vsel %vm1978, %v1916, %v1994
        %v2011 = vsel %vm1979, %v1919, %v1995
        %v2012 = vsel %vm1980, %v1924, %v1996
        %v2013 = vsel %vm1981, %v1927, %v1997
        %v2014 = vsel %vm1982, %v1932, %v1998
        %v2015 = vsel %vm1983, %v1935, %v1999
        %v2016 = vsel %vm1984, %v1940, %v2000
        %v2017 = vsel %vm1985, %v1943, %v2001
        %v2018 = vsel %vm1986, %v1948, %v2002
        %v2019 = vsel %vm1987, %v1951, %v2003
        %v2020 = vsel %vm1988, %v1956, %v2004
        %v2021 = vsel %vm1989, %v1959, %v2005
        %v2022 = vsel %vm1990, %v1964, %v2006
        %v2023 = vsel %vm1991, %v1967, %v2007
        %v2024 = vsel %vm1992, %v1972, %v2008
        %v2025 = vsel %vm1993, %v1975, %v2009
        %v2026 = vmul.f32 %v2010, 1.4142135
        %v2027 = vmul.f32 %v2011, 1.4142135
        %v2028 = vmul.f32 %v2012, 1.4142135
        %v2029 = vmul.f32 %v2013, 1.4142135
        %v2030 = vmul.f32 %v2014, 1.4142135
        %v2031 = vmul.f32 %v2015, 1.4142135
        %v2032 = vmul.f32 %v2016, 1.4142135
        %v2033 = vmul.f32 %v2017, 1.4142135
        %v2034 = vmul.f32 %v2018, 1.4142135
        %v2035 = vmul.f32 %v2019, 1.4142135
        %v2036 = vmul.f32 %v2020, 1.4142135
        %v2037 = vmul.f32 %v2021, 1.4142135
        %v2038 = vmul.f32 %v2022, 1.4142135
        %v2039 = vmul.f32 %v2023, 1.4142135
        %v2040 = vmul.f32 %v2024, 1.4142135
        %v2041 = vmul.f32 %v2025, 1.4142135
        %v2042 = vpack.c.bf16 %v2027, %v2026
        %v2043 = vpack.c.bf16 %v2029, %v2028
        %v2044 = vpack.c.bf16 %v2031, %v2030
        %v2045 = vpack.c.bf16 %v2033, %v2032
        %v2046 = vpack.c.bf16 %v2035, %v2034
        %v2047 = vpack.c.bf16 %v2037, %v2036
        %v2048 = vpack.c.bf16 %v2039, %v2038
        %v2049 = vpack.c.bf16 %v2041, %v2040
        %s2050 = scalar_lea.vmem [#allocation5], 448
        %v2051 = vld [vmem:[%s2050] sm:$0xf]
        %v2052 = vld [vmem:[%s2050 + $0x4] sm:$0xf]
        %v2053 = vld [vmem:[%s2050 + $0x8] sm:$0xf]
        %v2054 = vld [vmem:[%s2050 + $0xc] sm:$0xf]
        %v2055 = vld [vmem:[%s2050 + $0x10] sm:$0xf]
        %v2056 = vld [vmem:[%s2050 + $0x14] sm:$0xf]
        %v2057 = vld [vmem:[%s2050 + $0x18] sm:$0xf]
        %v2058 = vld [vmem:[%s2050 + $0x1c] sm:$0xf]
        %v2059 = vld [vmem:[%s2050 + $0x20] sm:$0xf]
        %v2060 = vld [vmem:[%s2050 + $0x24] sm:$0xf]
        %v2061 = vld [vmem:[%s2050 + $0x28] sm:$0xf]
        %v2062 = vld [vmem:[%s2050 + $0x2c] sm:$0xf]
        %v2063 = vld [vmem:[%s2050 + $0x30] sm:$0xf]
        %v2064 = vld [vmem:[%s2050 + $0x34] sm:$0xf]
        %v2065 = vld [vmem:[%s2050 + $0x38] sm:$0xf]
        %v2066 = vld [vmem:[%s2050 + $0x3c] sm:$0xf]
        %s2067 = scalar_lea.vmem [#allocation7], 7
        %v2068 = vld [vmem:[%s2067] sm:$0x1]
        %v2070 = vlaneseq
        %v2071 = vshrl.u32 %v2070, 7
        %v2072 = vsub.s32 0, %v2071
        %v2073 = vrot.slane %v2068, %v2072
        %v2091 = vunpack.c.l.b16 %v2051
        %v2092 = vunpack.c.l.b16 %v2052
        %v2093 = vunpack.c.l.b16 %v2053
        %v2094 = vunpack.c.l.b16 %v2054
        %v2095 = vunpack.c.l.b16 %v2055
        %v2096 = vunpack.c.l.b16 %v2056
        %v2097 = vunpack.c.l.b16 %v2057
        %v2098 = vunpack.c.l.b16 %v2058
        %v2099 = vunpack.c.l.b16 %v2059
        %v2100 = vunpack.c.l.b16 %v2060
        %v2101 = vunpack.c.l.b16 %v2061
        %v2102 = vunpack.c.l.b16 %v2062
        %v2103 = vunpack.c.l.b16 %v2063
        %v2104 = vunpack.c.l.b16 %v2064
        %v2105 = vunpack.c.l.b16 %v2065
        %v2106 = vunpack.c.l.b16 %v2066
        %v2107 = vpack.c.b16 %v2092, %v2091
        %v2108 = vpack.c.b16 %v2094, %v2093
        %v2109 = vpack.c.b16 %v2096, %v2095
        %v2110 = vpack.c.b16 %v2098, %v2097
        %v2111 = vpack.c.b16 %v2100, %v2099
        %v2112 = vpack.c.b16 %v2102, %v2101
        %v2113 = vpack.c.b16 %v2104, %v2103
        %v2114 = vpack.c.b16 %v2106, %v2105
        %2123 = vmatprep.subr.bf16.mxu0 0
        %2124 = vmatpush1.bf16.msra.mxu0 %v2107
        %2125 = vmatprep.subr.bf16.mxu0 0
        %2126 = vmatpush1.bf16.msra.mxu0 %v2108
        %2127 = vmatprep.subr.bf16.mxu0 0
        %2128 = vmatpush1.bf16.msra.mxu0 %v2109
        %2129 = vmatprep.subr.bf16.mxu0 0
        %2130 = vmatpush1.bf16.msra.mxu0 %v2110
        %2131 = vmatprep.subr.bf16.mxu0 0
        %2132 = vmatpush1.bf16.msra.mxu0 %v2111
        %2133 = vmatprep.subr.bf16.mxu0 0
        %2134 = vmatpush1.bf16.msra.mxu0 %v2112
        %2135 = vmatprep.subr.bf16.mxu0 0
        %2136 = vmatpush1.bf16.msra.mxu0 %v2113
        %2137 = vmatprep.subr.bf16.mxu0 0
        %2138 = vmatpush1.bf16.msra.mxu0 %v2114
        %2139 = vmatprep.subr.bf16.mxu0 0
        %2140 = vmatpush1.bf16.msra.mxu0 0
        %2141 = vmatprep.subr.bf16.mxu0 0
        %2142 = vmatpush1.bf16.msra.mxu0 0
        %2143 = vmatprep.subr.bf16.mxu0 0
        %2144 = vmatpush1.bf16.msra.mxu0 0
        %2145 = vmatprep.subr.bf16.mxu0 0
        %2146 = vmatpush1.bf16.msra.mxu0 0
        %2147 = vmatprep.subr.bf16.mxu0 0
        %2148 = vmatpush1.bf16.msra.mxu0 0
        %2149 = vmatprep.subr.bf16.mxu0 0
        %2150 = vmatpush1.bf16.msra.mxu0 0
        %2151 = vmatprep.subr.bf16.mxu0 0
        %2152 = vmatpush1.bf16.msra.mxu0 0
        %2153 = vmatprep.subr.bf16.mxu0 0
        %2154 = vmatpush1.bf16.msra.mxu0 0
        %2155 = vmatprep.mubr.bf16.mxu0 0
        %2156 = vmatmul.mubr.bf16.gmra.mrb[0].mxu0 %v2042
        %v2157 = vpop.f32.mrb[0].mxu0
        %v2158 = vadd.f32 %v2073, %v2157
        %v2159 = vpop.f32.mrb[0].mxu0
        %v2160 = vpop.f32.mrb[0].mxu0
        %v2161 = vadd.f32 %v2073, %v2160
        %v2162 = vpop.f32.mrb[0].mxu0
        %2163 = vmatprep.mubr.bf16.mxu0 0
        %2164 = vmatmul.mubr.bf16.gmra.mrb[0].mxu0 %v2043
        %v2165 = vpop.f32.mrb[0].mxu0
        %v2166 = vadd.f32 %v2073, %v2165
        %v2167 = vpop.f32.mrb[0].mxu0
        %v2168 = vpop.f32.mrb[0].mxu0
        %v2169 = vadd.f32 %v2073, %v2168
        %v2170 = vpop.f32.mrb[0].mxu0
        %2171 = vmatprep.mubr.bf16.mxu0 0
        %2172 = vmatmul.mubr.bf16.gmra.mrb[0].mxu0 %v2044
        %v2173 = vpop.f32.mrb[0].mxu0
        %v2174 = vadd.f32 %v2073, %v2173
        %v2175 = vpop.f32.mrb[0].mxu0
        %v2176 = vpop.f32.mrb[0].mxu0
        %v2177 = vadd.f32 %v2073, %v2176
        %v2178 = vpop.f32.mrb[0].mxu0
        %2179 = vmatprep.mubr.bf16.mxu0 0
        %2180 = vmatmul.mubr.bf16.gmra.mrb[0].mxu0 %v2045
        %v2181 = vpop.f32.mrb[0].mxu0
        %v2182 = vadd.f32 %v2073, %v2181
        %v2183 = vpop.f32.mrb[0].mxu0
        %v2184 = vpop.f32.mrb[0].mxu0
        %v2185 = vadd.f32 %v2073, %v2184
        %v2186 = vpop.f32.mrb[0].mxu0
        %2187 = vmatprep.mubr.bf16.mxu0 0
        %2188 = vmatmul.mubr.bf16.gmra.mrb[0].mxu0 %v2046
        %v2189 = vpop.f32.mrb[0].mxu0
        %v2190 = vadd.f32 %v2073, %v2189
        %v2191 = vpop.f32.mrb[0].mxu0
        %v2192 = vpop.f32.mrb[0].mxu0
        %v2193 = vadd.f32 %v2073, %v2192
        %v2194 = vpop.f32.mrb[0].mxu0
        %2195 = vmatprep.mubr.bf16.mxu0 0
        %2196 = vmatmul.mubr.bf16.gmra.mrb[0].mxu0 %v2047
        %v2197 = vpop.f32.mrb[0].mxu0
        %v2198 = vadd.f32 %v2073, %v2197
        %v2199 = vpop.f32.mrb[0].mxu0
        %v2200 = vpop.f32.mrb[0].mxu0
        %v2201 = vadd.f32 %v2073, %v2200
        %v2202 = vpop.f32.mrb[0].mxu0
        %2203 = vmatprep.mubr.bf16.mxu0 0
        %2204 = vmatmul.mubr.bf16.gmra.mrb[0].mxu0 %v2048
        %v2205 = vpop.f32.mrb[0].mxu0
        %v2206 = vadd.f32 %v2073, %v2205
        %v2207 = vpop.f32.mrb[0].mxu0
        %v2208 = vpop.f32.mrb[0].mxu0
        %v2209 = vadd.f32 %v2073, %v2208
        %v2210 = vpop.f32.mrb[0].mxu0
        %2211 = vmatprep.mubr.bf16.mxu0 0
        %2212 = vmatmul.mubr.bf16.gmra.mrb[0].mxu0 %v2049
        %v2213 = vpop.f32.mrb[0].mxu0
        %v2214 = vadd.f32 %v2073, %v2213
        %v2215 = vpop.f32.mrb[0].mxu0
        %v2216 = vpop.f32.mrb[0].mxu0
        %v2217 = vadd.f32 %v2073, %v2216
        %v2218 = vpop.f32.mrb[0].mxu0
        %2219 = vdwg.mxu0
        %vm2220 = vcmp.ge.f32.partialorder %v2158, 0.0
        %vm2221 = vcmp.ge.f32.partialorder %v2161, 0.0
        %vm2222 = vcmp.ge.f32.partialorder %v2166, 0.0
        %vm2223 = vcmp.ge.f32.partialorder %v2169, 0.0
        %vm2224 = vcmp.ge.f32.partialorder %v2174, 0.0
        %vm2225 = vcmp.ge.f32.partialorder %v2177, 0.0
        %vm2226 = vcmp.ge.f32.partialorder %v2182, 0.0
        %vm2227 = vcmp.ge.f32.partialorder %v2185, 0.0
        %vm2228 = vcmp.ge.f32.partialorder %v2190, 0.0
        %vm2229 = vcmp.ge.f32.partialorder %v2193, 0.0
        %vm2230 = vcmp.ge.f32.partialorder %v2198, 0.0
        %vm2231 = vcmp.ge.f32.partialorder %v2201, 0.0
        %vm2232 = vcmp.ge.f32.partialorder %v2206, 0.0
        %vm2233 = vcmp.ge.f32.partialorder %v2209, 0.0
        %vm2234 = vcmp.ge.f32.partialorder %v2214, 0.0
        %vm2235 = vcmp.ge.f32.partialorder %v2217, 0.0
        %v2236 = vmul.f32 %v2158, 0.2
        %v2237 = vmul.f32 %v2161, 0.2
        %v2238 = vmul.f32 %v2166, 0.2
        %v2239 = vmul.f32 %v2169, 0.2
        %v2240 = vmul.f32 %v2174, 0.2
        %v2241 = vmul.f32 %v2177, 0.2
        %v2242 = vmul.f32 %v2182, 0.2
        %v2243 = vmul.f32 %v2185, 0.2
        %v2244 = vmul.f32 %v2190, 0.2
        %v2245 = vmul.f32 %v2193, 0.2
        %v2246 = vmul.f32 %v2198, 0.2
        %v2247 = vmul.f32 %v2201, 0.2
        %v2248 = vmul.f32 %v2206, 0.2
        %v2249 = vmul.f32 %v2209, 0.2
        %v2250 = vmul.f32 %v2214, 0.2
        %v2251 = vmul.f32 %v2217, 0.2
        %v2252 = vsel %vm2220, %v2158, %v2236
        %v2253 = vsel %vm2221, %v2161, %v2237
        %v2254 = vsel %vm2222, %v2166, %v2238
        %v2255 = vsel %vm2223, %v2169, %v2239
        %v2256 = vsel %vm2224, %v2174, %v2240
        %v2257 = vsel %vm2225, %v2177, %v2241
        %v2258 = vsel %vm2226, %v2182, %v2242
        %v2259 = vsel %vm2227, %v2185, %v2243
        %v2260 = vsel %vm2228, %v2190, %v2244
        %v2261 = vsel %vm2229, %v2193, %v2245
        %v2262 = vsel %vm2230, %v2198, %v2246
        %v2263 = vsel %vm2231, %v2201, %v2247
        %v2264 = vsel %vm2232, %v2206, %v2248
        %v2265 = vsel %vm2233, %v2209, %v2249
        %v2266 = vsel %vm2234, %v2214, %v2250
        %v2267 = vsel %vm2235, %v2217, %v2251
        %v2268 = vmul.f32 %v2252, 1.4142135
        %v2269 = vmul.f32 %v2253, 1.4142135
        %v2270 = vmul.f32 %v2254, 1.4142135
        %v2271 = vmul.f32 %v2255, 1.4142135
        %v2272 = vmul.f32 %v2256, 1.4142135
        %v2273 = vmul.f32 %v2257, 1.4142135
        %v2274 = vmul.f32 %v2258, 1.4142135
        %v2275 = vmul.f32 %v2259, 1.4142135
        %v2276 = vmul.f32 %v2260, 1.4142135
        %v2277 = vmul.f32 %v2261, 1.4142135
        %v2278 = vmul.f32 %v2262, 1.4142135
        %v2279 = vmul.f32 %v2263, 1.4142135
        %v2280 = vmul.f32 %v2264, 1.4142135
        %v2281 = vmul.f32 %v2265, 1.4142135
        %v2282 = vmul.f32 %v2266, 1.4142135
        %v2283 = vmul.f32 %v2267, 1.4142135
        %v2300 = vcombine.high %v2268, %v2268
        %v2302 = vunpack.c.l.s4 1966171168
        %v2303 = vunpack.c.0.s8 %v2302
        %v2304 = vlaneseq
        %v2305 = vshrl.u32 %v2304, 7
        %v2306 = vsub.s32 %v2303, %v2305
        %v2307 = vrot.slane %v2268, %v2306
        %v2309 = vunpack.c.l.s4 1966171168
        %v2310 = vunpack.c.0.s8 %v2309
        %v2311 = vlaneseq
        %v2312 = vshrl.u32 %v2311, 7
        %v2313 = vsub.s32 %v2310, %v2312
        %v2314 = vrot.slane %v2300, %v2313
        %v2315 = vcombine.high %v2307, %v2307
        %v2316 = vcombine.high %v2314, %v2314
        %v2318 = vunpack.c.l.s4 1966171168
        %v2319 = vunpack.c.0.s8 %v2318
        %v2320 = vlaneseq
        %v2321 = vshrl.u32 %v2320, 7
        %v2322 = vsub.s32 %v2319, %v2321
        %v2323 = vrot.slane %v2307, %v2322
        %v2325 = vunpack.c.l.s4 1966171168
        %v2326 = vunpack.c.0.s8 %v2325
        %v2327 = vlaneseq
        %v2328 = vshrl.u32 %v2327, 7
        %v2329 = vsub.s32 %v2326, %v2328
        %v2330 = vrot.slane %v2314, %v2329
        %v2332 = vunpack.c.l.s4 1966171168
        %v2333 = vunpack.c.0.s8 %v2332
        %v2334 = vlaneseq
        %v2335 = vshrl.u32 %v2334, 7
        %v2336 = vsub.s32 %v2333, %v2335
        %v2337 = vrot.slane %v2315, %v2336
        %v2339 = vunpack.c.l.s4 1966171168
        %v2340 = vunpack.c.0.s8 %v2339
        %v2341 = vlaneseq
        %v2342 = vshrl.u32 %v2341, 7
        %v2343 = vsub.s32 %v2340, %v2342
        %v2344 = vrot.slane %v2316, %v2343
        %v2345 = vcombine.high %v2323, %v2323
        %v2346 = vcombine.high %v2330, %v2330
        %v2347 = vcombine.high %v2337, %v2337
        %v2348 = vcombine.high %v2344, %v2344
        %v2349 = vcombine.high %v2269, %v2269
        %v2351 = vunpack.c.l.s4 1966171168
        %v2352 = vunpack.c.0.s8 %v2351
        %v2353 = vlaneseq
        %v2354 = vshrl.u32 %v2353, 7
        %v2355 = vsub.s32 %v2352, %v2354
        %v2356 = vrot.slane %v2269, %v2355
        %v2358 = vunpack.c.l.s4 1966171168
        %v2359 = vunpack.c.0.s8 %v2358
        %v2360 = vlaneseq
        %v2361 = vshrl.u32 %v2360, 7
        %v2362 = vsub.s32 %v2359, %v2361
        %v2363 = vrot.slane %v2349, %v2362
        %v2364 = vcombine.high %v2356, %v2356
        %v2365 = vcombine.high %v2363, %v2363
        %v2367 = vunpack.c.l.s4 1966171168
        %v2368 = vunpack.c.0.s8 %v2367
        %v2369 = vlaneseq
        %v2370 = vshrl.u32 %v2369, 7
        %v2371 = vsub.s32 %v2368, %v2370
        %v2372 = vrot.slane %v2356, %v2371
        %v2374 = vunpack.c.l.s4 1966171168
        %v2375 = vunpack.c.0.s8 %v2374
        %v2376 = vlaneseq
        %v2377 = vshrl.u32 %v2376, 7
        %v2378 = vsub.s32 %v2375, %v2377
        %v2379 = vrot.slane %v2363, %v2378
        %v2381 = vunpack.c.l.s4 1966171168
        %v2382 = vunpack.c.0.s8 %v2381
        %v2383 = vlaneseq
        %v2384 = vshrl.u32 %v2383, 7
        %v2385 = vsub.s32 %v2382, %v2384
        %v2386 = vrot.slane %v2364, %v2385
        %v2388 = vunpack.c.l.s4 1966171168
        %v2389 = vunpack.c.0.s8 %v2388
        %v2390 = vlaneseq
        %v2391 = vshrl.u32 %v2390, 7
        %v2392 = vsub.s32 %v2389, %v2391
        %v2393 = vrot.slane %v2365, %v2392
        %v2394 = vcombine.high %v2372, %v2372
        %v2395 = vcombine.high %v2379, %v2379
        %v2396 = vcombine.high %v2386, %v2386
        %v2397 = vcombine.high %v2393, %v2393
        %v2398 = vcombine.high %v2270, %v2270
        %v2400 = vunpack.c.l.s4 1966171168
        %v2401 = vunpack.c.0.s8 %v2400
        %v2402 = vlaneseq
        %v2403 = vshrl.u32 %v2402, 7
        %v2404 = vsub.s32 %v2401, %v2403
        %v2405 = vrot.slane %v2270, %v2404
        %v2407 = vunpack.c.l.s4 1966171168
        %v2408 = vunpack.c.0.s8 %v2407
        %v2409 = vlaneseq
        %v2410 = vshrl.u32 %v2409, 7
        %v2411 = vsub.s32 %v2408, %v2410
        %v2412 = vrot.slane %v2398, %v2411
        %v2413 = vcombine.high %v2405, %v2405
        %v2414 = vcombine.high %v2412, %v2412
        %v2416 = vunpack.c.l.s4 1966171168
        %v2417 = vunpack.c.0.s8 %v2416
        %v2418 = vlaneseq
        %v2419 = vshrl.u32 %v2418, 7
        %v2420 = vsub.s32 %v2417, %v2419
        %v2421 = vrot.slane %v2405, %v2420
        %v2423 = vunpack.c.l.s4 1966171168
        %v2424 = vunpack.c.0.s8 %v2423
        %v2425 = vlaneseq
        %v2426 = vshrl.u32 %v2425, 7
        %v2427 = vsub.s32 %v2424, %v2426
        %v2428 = vrot.slane %v2412, %v2427
        %v2430 = vunpack.c.l.s4 1966171168
        %v2431 = vunpack.c.0.s8 %v2430
        %v2432 = vlaneseq
        %v2433 = vshrl.u32 %v2432, 7
        %v2434 = vsub.s32 %v2431, %v2433
        %v2435 = vrot.slane %v2413, %v2434
        %v2437 = vunpack.c.l.s4 1966171168
        %v2438 = vunpack.c.0.s8 %v2437
        %v2439 = vlaneseq
        %v2440 = vshrl.u32 %v2439, 7
        %v2441 = vsub.s32 %v2438, %v2440
        %v2442 = vrot.slane %v2414, %v2441
        %v2443 = vcombine.high %v2421, %v2421
        %v2444 = vcombine.high %v2428, %v2428
        %v2445 = vcombine.high %v2435, %v2435
        %v2446 = vcombine.high %v2442, %v2442
        %v2447 = vcombine.high %v2271, %v2271
        %v2449 = vunpack.c.l.s4 1966171168
        %v2450 = vunpack.c.0.s8 %v2449
        %v2451 = vlaneseq
        %v2452 = vshrl.u32 %v2451, 7
        %v2453 = vsub.s32 %v2450, %v2452
        %v2454 = vrot.slane %v2271, %v2453
        %v2456 = vunpack.c.l.s4 1966171168
        %v2457 = vunpack.c.0.s8 %v2456
        %v2458 = vlaneseq
        %v2459 = vshrl.u32 %v2458, 7
        %v2460 = vsub.s32 %v2457, %v2459
        %v2461 = vrot.slane %v2447, %v2460
        %v2462 = vcombine.high %v2454, %v2454
        %v2463 = vcombine.high %v2461, %v2461
        %v2465 = vunpack.c.l.s4 1966171168
        %v2466 = vunpack.c.0.s8 %v2465
        %v2467 = vlaneseq
        %v2468 = vshrl.u32 %v2467, 7
        %v2469 = vsub.s32 %v2466, %v2468
        %v2470 = vrot.slane %v2454, %v2469
        %v2472 = vunpack.c.l.s4 1966171168
        %v2473 = vunpack.c.0.s8 %v2472
        %v2474 = vlaneseq
        %v2475 = vshrl.u32 %v2474, 7
        %v2476 = vsub.s32 %v2473, %v2475
        %v2477 = vrot.slane %v2461, %v2476
        %v2479 = vunpack.c.l.s4 1966171168
        %v2480 = vunpack.c.0.s8 %v2479
        %v2481 = vlaneseq
        %v2482 = vshrl.u32 %v2481, 7
        %v2483 = vsub.s32 %v2480, %v2482
        %v2484 = vrot.slane %v2462, %v2483
        %v2486 = vunpack.c.l.s4 1966171168
        %v2487 = vunpack.c.0.s8 %v2486
        %v2488 = vlaneseq
        %v2489 = vshrl.u32 %v2488, 7
        %v2490 = vsub.s32 %v2487, %v2489
        %v2491 = vrot.slane %v2463, %v2490
        %v2492 = vcombine.high %v2470, %v2470
        %v2493 = vcombine.high %v2477, %v2477
        %v2494 = vcombine.high %v2484, %v2484
        %v2495 = vcombine.high %v2491, %v2491
        %v2496 = vcombine.high %v2272, %v2272
        %v2498 = vunpack.c.l.s4 1966171168
        %v2499 = vunpack.c.0.s8 %v2498
        %v2500 = vlaneseq
        %v2501 = vshrl.u32 %v2500, 7
        %v2502 = vsub.s32 %v2499, %v2501
        %v2503 = vrot.slane %v2272, %v2502
        %v2505 = vunpack.c.l.s4 1966171168
        %v2506 = vunpack.c.0.s8 %v2505
        %v2507 = vlaneseq
        %v2508 = vshrl.u32 %v2507, 7
        %v2509 = vsub.s32 %v2506, %v2508
        %v2510 = vrot.slane %v2496, %v2509
        %v2511 = vcombine.high %v2503, %v2503
        %v2512 = vcombine.high %v2510, %v2510
        %v2514 = vunpack.c.l.s4 1966171168
        %v2515 = vunpack.c.0.s8 %v2514
        %v2516 = vlaneseq
        %v2517 = vshrl.u32 %v2516, 7
        %v2518 = vsub.s32 %v2515, %v2517
        %v2519 = vrot.slane %v2503, %v2518
        %v2521 = vunpack.c.l.s4 1966171168
        %v2522 = vunpack.c.0.s8 %v2521
        %v2523 = vlaneseq
        %v2524 = vshrl.u32 %v2523, 7
        %v2525 = vsub.s32 %v2522, %v2524
        %v2526 = vrot.slane %v2510, %v2525
        %v2528 = vunpack.c.l.s4 1966171168
        %v2529 = vunpack.c.0.s8 %v2528
        %v2530 = vlaneseq
        %v2531 = vshrl.u32 %v2530, 7
        %v2532 = vsub.s32 %v2529, %v2531
        %v2533 = vrot.slane %v2511, %v2532
        %v2535 = vunpack.c.l.s4 1966171168
        %v2536 = vunpack.c.0.s8 %v2535
        %v2537 = vlaneseq
        %v2538 = vshrl.u32 %v2537, 7
        %v2539 = vsub.s32 %v2536, %v2538
        %v2540 = vrot.slane %v2512, %v2539
        %v2541 = vcombine.high %v2519, %v2519
        %v2542 = vcombine.high %v2526, %v2526
        %v2543 = vcombine.high %v2533, %v2533
        %v2544 = vcombine.high %v2540, %v2540
        %v2545 = vcombine.high %v2273, %v2273
        %v2547 = vunpack.c.l.s4 1966171168
        %v2548 = vunpack.c.0.s8 %v2547
        %v2549 = vlaneseq
        %v2550 = vshrl.u32 %v2549, 7
        %v2551 = vsub.s32 %v2548, %v2550
        %v2552 = vrot.slane %v2273, %v2551
        %v2554 = vunpack.c.l.s4 1966171168
        %v2555 = vunpack.c.0.s8 %v2554
        %v2556 = vlaneseq
        %v2557 = vshrl.u32 %v2556, 7
        %v2558 = vsub.s32 %v2555, %v2557
        %v2559 = vrot.slane %v2545, %v2558
        %v2560 = vcombine.high %v2552, %v2552
        %v2561 = vcombine.high %v2559, %v2559
        %v2563 = vunpack.c.l.s4 1966171168
        %v2564 = vunpack.c.0.s8 %v2563
        %v2565 = vlaneseq
        %v2566 = vshrl.u32 %v2565, 7
        %v2567 = vsub.s32 %v2564, %v2566
        %v2568 = vrot.slane %v2552, %v2567
        %v2570 = vunpack.c.l.s4 1966171168
        %v2571 = vunpack.c.0.s8 %v2570
        %v2572 = vlaneseq
        %v2573 = vshrl.u32 %v2572, 7
        %v2574 = vsub.s32 %v2571, %v2573
        %v2575 = vrot.slane %v2559, %v2574
        %v2577 = vunpack.c.l.s4 1966171168
        %v2578 = vunpack.c.0.s8 %v2577
        %v2579 = vlaneseq
        %v2580 = vshrl.u32 %v2579, 7
        %v2581 = vsub.s32 %v2578, %v2580
        %v2582 = vrot.slane %v2560, %v2581
        %v2584 = vunpack.c.l.s4 1966171168
        %v2585 = vunpack.c.0.s8 %v2584
        %v2586 = vlaneseq
        %v2587 = vshrl.u32 %v2586, 7
        %v2588 = vsub.s32 %v2585, %v2587
        %v2589 = vrot.slane %v2561, %v2588
        %v2590 = vcombine.high %v2568, %v2568
        %v2591 = vcombine.high %v2575, %v2575
        %v2592 = vcombine.high %v2582, %v2582
        %v2593 = vcombine.high %v2589, %v2589
        %v2594 = vcombine.high %v2274, %v2274
        %v2596 = vunpack.c.l.s4 1966171168
        %v2597 = vunpack.c.0.s8 %v2596
        %v2598 = vlaneseq
        %v2599 = vshrl.u32 %v2598, 7
        %v2600 = vsub.s32 %v2597, %v2599
        %v2601 = vrot.slane %v2274, %v2600
        %v2603 = vunpack.c.l.s4 1966171168
        %v2604 = vunpack.c.0.s8 %v2603
        %v2605 = vlaneseq
        %v2606 = vshrl.u32 %v2605, 7
        %v2607 = vsub.s32 %v2604, %v2606
        %v2608 = vrot.slane %v2594, %v2607
        %v2609 = vcombine.high %v2601, %v2601
        %v2610 = vcombine.high %v2608, %v2608
        %v2612 = vunpack.c.l.s4 1966171168
        %v2613 = vunpack.c.0.s8 %v2612
        %v2614 = vlaneseq
        %v2615 = vshrl.u32 %v2614, 7
        %v2616 = vsub.s32 %v2613, %v2615
        %v2617 = vrot.slane %v2601, %v2616
        %v2619 = vunpack.c.l.s4 1966171168
        %v2620 = vunpack.c.0.s8 %v2619
        %v2621 = vlaneseq
        %v2622 = vshrl.u32 %v2621, 7
        %v2623 = vsub.s32 %v2620, %v2622
        %v2624 = vrot.slane %v2608, %v2623
        %v2626 = vunpack.c.l.s4 1966171168
        %v2627 = vunpack.c.0.s8 %v2626
        %v2628 = vlaneseq
        %v2629 = vshrl.u32 %v2628, 7
        %v2630 = vsub.s32 %v2627, %v2629
        %v2631 = vrot.slane %v2609, %v2630
        %v2633 = vunpack.c.l.s4 1966171168
        %v2634 = vunpack.c.0.s8 %v2633
        %v2635 = vlaneseq
        %v2636 = vshrl.u32 %v2635, 7
        %v2637 = vsub.s32 %v2634, %v2636
        %v2638 = vrot.slane %v2610, %v2637
        %v2639 = vcombine.high %v2617, %v2617
        %v2640 = vcombine.high %v2624, %v2624
        %v2641 = vcombine.high %v2631, %v2631
        %v2642 = vcombine.high %v2638, %v2638
        %v2643 = vcombine.high %v2275, %v2275
        %v2645 = vunpack.c.l.s4 1966171168
        %v2646 = vunpack.c.0.s8 %v2645
        %v2647 = vlaneseq
        %v2648 = vshrl.u32 %v2647, 7
        %v2649 = vsub.s32 %v2646, %v2648
        %v2650 = vrot.slane %v2275, %v2649
        %v2652 = vunpack.c.l.s4 1966171168
        %v2653 = vunpack.c.0.s8 %v2652
        %v2654 = vlaneseq
        %v2655 = vshrl.u32 %v2654, 7
        %v2656 = vsub.s32 %v2653, %v2655
        %v2657 = vrot.slane %v2643, %v2656
        %v2658 = vcombine.high %v2650, %v2650
        %v2659 = vcombine.high %v2657, %v2657
        %v2661 = vunpack.c.l.s4 1966171168
        %v2662 = vunpack.c.0.s8 %v2661
        %v2663 = vlaneseq
        %v2664 = vshrl.u32 %v2663, 7
        %v2665 = vsub.s32 %v2662, %v2664
        %v2666 = vrot.slane %v2650, %v2665
        %v2668 = vunpack.c.l.s4 1966171168
        %v2669 = vunpack.c.0.s8 %v2668
        %v2670 = vlaneseq
        %v2671 = vshrl.u32 %v2670, 7
        %v2672 = vsub.s32 %v2669, %v2671
        %v2673 = vrot.slane %v2657, %v2672
        %v2675 = vunpack.c.l.s4 1966171168
        %v2676 = vunpack.c.0.s8 %v2675
        %v2677 = vlaneseq
        %v2678 = vshrl.u32 %v2677, 7
        %v2679 = vsub.s32 %v2676, %v2678
        %v2680 = vrot.slane %v2658, %v2679
        %v2682 = vunpack.c.l.s4 1966171168
        %v2683 = vunpack.c.0.s8 %v2682
        %v2684 = vlaneseq
        %v2685 = vshrl.u32 %v2684, 7
        %v2686 = vsub.s32 %v2683, %v2685
        %v2687 = vrot.slane %v2659, %v2686
        %v2688 = vcombine.high %v2666, %v2666
        %v2689 = vcombine.high %v2673, %v2673
        %v2690 = vcombine.high %v2680, %v2680
        %v2691 = vcombine.high %v2687, %v2687
        %v2692 = vcombine.high %v2276, %v2276
        %v2694 = vunpack.c.l.s4 1966171168
        %v2695 = vunpack.c.0.s8 %v2694
        %v2696 = vlaneseq
        %v2697 = vshrl.u32 %v2696, 7
        %v2698 = vsub.s32 %v2695, %v2697
        %v2699 = vrot.slane %v2276, %v2698
        %v2701 = vunpack.c.l.s4 1966171168
        %v2702 = vunpack.c.0.s8 %v2701
        %v2703 = vlaneseq
        %v2704 = vshrl.u32 %v2703, 7
        %v2705 = vsub.s32 %v2702, %v2704
        %v2706 = vrot.slane %v2692, %v2705
        %v2707 = vcombine.high %v2699, %v2699
        %v2708 = vcombine.high %v2706, %v2706
        %v2710 = vunpack.c.l.s4 1966171168
        %v2711 = vunpack.c.0.s8 %v2710
        %v2712 = vlaneseq
        %v2713 = vshrl.u32 %v2712, 7
        %v2714 = vsub.s32 %v2711, %v2713
        %v2715 = vrot.slane %v2699, %v2714
        %v2717 = vunpack.c.l.s4 1966171168
        %v2718 = vunpack.c.0.s8 %v2717
        %v2719 = vlaneseq
        %v2720 = vshrl.u32 %v2719, 7
        %v2721 = vsub.s32 %v2718, %v2720
        %v2722 = vrot.slane %v2706, %v2721
        %v2724 = vunpack.c.l.s4 1966171168
        %v2725 = vunpack.c.0.s8 %v2724
        %v2726 = vlaneseq
        %v2727 = vshrl.u32 %v2726, 7
        %v2728 = vsub.s32 %v2725, %v2727
        %v2729 = vrot.slane %v2707, %v2728
        %v2731 = vunpack.c.l.s4 1966171168
        %v2732 = vunpack.c.0.s8 %v2731
        %v2733 = vlaneseq
        %v2734 = vshrl.u32 %v2733, 7
        %v2735 = vsub.s32 %v2732, %v2734
        %v2736 = vrot.slane %v2708, %v2735
        %v2737 = vcombine.high %v2715, %v2715
        %v2738 = vcombine.high %v2722, %v2722
        %v2739 = vcombine.high %v2729, %v2729
        %v2740 = vcombine.high %v2736, %v2736
        %v2741 = vcombine.high %v2277, %v2277
        %v2743 = vunpack.c.l.s4 1966171168
        %v2744 = vunpack.c.0.s8 %v2743
        %v2745 = vlaneseq
        %v2746 = vshrl.u32 %v2745, 7
        %v2747 = vsub.s32 %v2744, %v2746
        %v2748 = vrot.slane %v2277, %v2747
        %v2750 = vunpack.c.l.s4 1966171168
        %v2751 = vunpack.c.0.s8 %v2750
        %v2752 = vlaneseq
        %v2753 = vshrl.u32 %v2752, 7
        %v2754 = vsub.s32 %v2751, %v2753
        %v2755 = vrot.slane %v2741, %v2754
        %v2756 = vcombine.high %v2748, %v2748
        %v2757 = vcombine.high %v2755, %v2755
        %v2759 = vunpack.c.l.s4 1966171168
        %v2760 = vunpack.c.0.s8 %v2759
        %v2761 = vlaneseq
        %v2762 = vshrl.u32 %v2761, 7
        %v2763 = vsub.s32 %v2760, %v2762
        %v2764 = vrot.slane %v2748, %v2763
        %v2766 = vunpack.c.l.s4 1966171168
        %v2767 = vunpack.c.0.s8 %v2766
        %v2768 = vlaneseq
        %v2769 = vshrl.u32 %v2768, 7
        %v2770 = vsub.s32 %v2767, %v2769
        %v2771 = vrot.slane %v2755, %v2770
        %v2773 = vunpack.c.l.s4 1966171168
        %v2774 = vunpack.c.0.s8 %v2773
        %v2775 = vlaneseq
        %v2776 = vshrl.u32 %v2775, 7
        %v2777 = vsub.s32 %v2774, %v2776
        %v2778 = vrot.slane %v2756, %v2777
        %v2780 = vunpack.c.l.s4 1966171168
        %v2781 = vunpack.c.0.s8 %v2780
        %v2782 = vlaneseq
        %v2783 = vshrl.u32 %v2782, 7
        %v2784 = vsub.s32 %v2781, %v2783
        %v2785 = vrot.slane %v2757, %v2784
        %v2786 = vcombine.high %v2764, %v2764
        %v2787 = vcombine.high %v2771, %v2771
        %v2788 = vcombine.high %v2778, %v2778
        %v2789 = vcombine.high %v2785, %v2785
        %v2790 = vcombine.high %v2278, %v2278
        %v2792 = vunpack.c.l.s4 1966171168
        %v2793 = vunpack.c.0.s8 %v2792
        %v2794 = vlaneseq
        %v2795 = vshrl.u32 %v2794, 7
        %v2796 = vsub.s32 %v2793, %v2795
        %v2797 = vrot.slane %v2278, %v2796
        %v2799 = vunpack.c.l.s4 1966171168
        %v2800 = vunpack.c.0.s8 %v2799
        %v2801 = vlaneseq
        %v2802 = vshrl.u32 %v2801, 7
        %v2803 = vsub.s32 %v2800, %v2802
        %v2804 = vrot.slane %v2790, %v2803
        %v2805 = vcombine.high %v2797, %v2797
        %v2806 = vcombine.high %v2804, %v2804
        %v2808 = vunpack.c.l.s4 1966171168
        %v2809 = vunpack.c.0.s8 %v2808
        %v2810 = vlaneseq
        %v2811 = vshrl.u32 %v2810, 7
        %v2812 = vsub.s32 %v2809, %v2811
        %v2813 = vrot.slane %v2797, %v2812
        %v2815 = vunpack.c.l.s4 1966171168
        %v2816 = vunpack.c.0.s8 %v2815
        %v2817 = vlaneseq
        %v2818 = vshrl.u32 %v2817, 7
        %v2819 = vsub.s32 %v2816, %v2818
        %v2820 = vrot.slane %v2804, %v2819
        %v2822 = vunpack.c.l.s4 1966171168
        %v2823 = vunpack.c.0.s8 %v2822
        %v2824 = vlaneseq
        %v2825 = vshrl.u32 %v2824, 7
        %v2826 = vsub.s32 %v2823, %v2825
        %v2827 = vrot.slane %v2805, %v2826
        %v2829 = vunpack.c.l.s4 1966171168
        %v2830 = vunpack.c.0.s8 %v2829
        %v2831 = vlaneseq
        %v2832 = vshrl.u32 %v2831, 7
        %v2833 = vsub.s32 %v2830, %v2832
        %v2834 = vrot.slane %v2806, %v2833
        %v2835 = vcombine.high %v2813, %v2813
        %v2836 = vcombine.high %v2820, %v2820
        %v2837 = vcombine.high %v2827, %v2827
        %v2838 = vcombine.high %v2834, %v2834
        %v2839 = vcombine.high %v2279, %v2279
        %v2841 = vunpack.c.l.s4 1966171168
        %v2842 = vunpack.c.0.s8 %v2841
        %v2843 = vlaneseq
        %v2844 = vshrl.u32 %v2843, 7
        %v2845 = vsub.s32 %v2842, %v2844
        %v2846 = vrot.slane %v2279, %v2845
        %v2848 = vunpack.c.l.s4 1966171168
        %v2849 = vunpack.c.0.s8 %v2848
        %v2850 = vlaneseq
        %v2851 = vshrl.u32 %v2850, 7
        %v2852 = vsub.s32 %v2849, %v2851
        %v2853 = vrot.slane %v2839, %v2852
        %v2854 = vcombine.high %v2846, %v2846
        %v2855 = vcombine.high %v2853, %v2853
        %v2857 = vunpack.c.l.s4 1966171168
        %v2858 = vunpack.c.0.s8 %v2857
        %v2859 = vlaneseq
        %v2860 = vshrl.u32 %v2859, 7
        %v2861 = vsub.s32 %v2858, %v2860
        %v2862 = vrot.slane %v2846, %v2861
        %v2864 = vunpack.c.l.s4 1966171168
        %v2865 = vunpack.c.0.s8 %v2864
        %v2866 = vlaneseq
        %v2867 = vshrl.u32 %v2866, 7
        %v2868 = vsub.s32 %v2865, %v2867
        %v2869 = vrot.slane %v2853, %v2868
        %v2871 = vunpack.c.l.s4 1966171168
        %v2872 = vunpack.c.0.s8 %v2871
        %v2873 = vlaneseq
        %v2874 = vshrl.u32 %v2873, 7
        %v2875 = vsub.s32 %v2872, %v2874
        %v2876 = vrot.slane %v2854, %v2875
        %v2878 = vunpack.c.l.s4 1966171168
        %v2879 = vunpack.c.0.s8 %v2878
        %v2880 = vlaneseq
        %v2881 = vshrl.u32 %v2880, 7
        %v2882 = vsub.s32 %v2879, %v2881
        %v2883 = vrot.slane %v2855, %v2882
        %v2884 = vcombine.high %v2862, %v2862
        %v2885 = vcombine.high %v2869, %v2869
        %v2886 = vcombine.high %v2876, %v2876
        %v2887 = vcombine.high %v2883, %v2883
        %v2888 = vcombine.high %v2280, %v2280
        %v2890 = vunpack.c.l.s4 1966171168
        %v2891 = vunpack.c.0.s8 %v2890
        %v2892 = vlaneseq
        %v2893 = vshrl.u32 %v2892, 7
        %v2894 = vsub.s32 %v2891, %v2893
        %v2895 = vrot.slane %v2280, %v2894
        %v2897 = vunpack.c.l.s4 1966171168
        %v2898 = vunpack.c.0.s8 %v2897
        %v2899 = vlaneseq
        %v2900 = vshrl.u32 %v2899, 7
        %v2901 = vsub.s32 %v2898, %v2900
        %v2902 = vrot.slane %v2888, %v2901
        %v2903 = vcombine.high %v2895, %v2895
        %v2904 = vcombine.high %v2902, %v2902
        %v2906 = vunpack.c.l.s4 1966171168
        %v2907 = vunpack.c.0.s8 %v2906
        %v2908 = vlaneseq
        %v2909 = vshrl.u32 %v2908, 7
        %v2910 = vsub.s32 %v2907, %v2909
        %v2911 = vrot.slane %v2895, %v2910
        %v2913 = vunpack.c.l.s4 1966171168
        %v2914 = vunpack.c.0.s8 %v2913
        %v2915 = vlaneseq
        %v2916 = vshrl.u32 %v2915, 7
        %v2917 = vsub.s32 %v2914, %v2916
        %v2918 = vrot.slane %v2902, %v2917
        %v2920 = vunpack.c.l.s4 1966171168
        %v2921 = vunpack.c.0.s8 %v2920
        %v2922 = vlaneseq
        %v2923 = vshrl.u32 %v2922, 7
        %v2924 = vsub.s32 %v2921, %v2923
        %v2925 = vrot.slane %v2903, %v2924
        %v2927 = vunpack.c.l.s4 1966171168
        %v2928 = vunpack.c.0.s8 %v2927
        %v2929 = vlaneseq
        %v2930 = vshrl.u32 %v2929, 7
        %v2931 = vsub.s32 %v2928, %v2930
        %v2932 = vrot.slane %v2904, %v2931
        %v2933 = vcombine.high %v2911, %v2911
        %v2934 = vcombine.high %v2918, %v2918
        %v2935 = vcombine.high %v2925, %v2925
        %v2936 = vcombine.high %v2932, %v2932
        %v2937 = vcombine.high %v2281, %v2281
        %v2939 = vunpack.c.l.s4 1966171168
        %v2940 = vunpack.c.0.s8 %v2939
        %v2941 = vlaneseq
        %v2942 = vshrl.u32 %v2941, 7
        %v2943 = vsub.s32 %v2940, %v2942
        %v2944 = vrot.slane %v2281, %v2943
        %v2946 = vunpack.c.l.s4 1966171168
        %v2947 = vunpack.c.0.s8 %v2946
        %v2948 = vlaneseq
        %v2949 = vshrl.u32 %v2948, 7
        %v2950 = vsub.s32 %v2947, %v2949
        %v2951 = vrot.slane %v2937, %v2950
        %v2952 = vcombine.high %v2944, %v2944
        %v2953 = vcombine.high %v2951, %v2951
        %v2955 = vunpack.c.l.s4 1966171168
        %v2956 = vunpack.c.0.s8 %v2955
        %v2957 = vlaneseq
        %v2958 = vshrl.u32 %v2957, 7
        %v2959 = vsub.s32 %v2956, %v2958
        %v2960 = vrot.slane %v2944, %v2959
        %v2962 = vunpack.c.l.s4 1966171168
        %v2963 = vunpack.c.0.s8 %v2962
        %v2964 = vlaneseq
        %v2965 = vshrl.u32 %v2964, 7
        %v2966 = vsub.s32 %v2963, %v2965
        %v2967 = vrot.slane %v2951, %v2966
        %v2969 = vunpack.c.l.s4 1966171168
        %v2970 = vunpack.c.0.s8 %v2969
        %v2971 = vlaneseq
        %v2972 = vshrl.u32 %v2971, 7
        %v2973 = vsub.s32 %v2970, %v2972
        %v2974 = vrot.slane %v2952, %v2973
        %v2976 = vunpack.c.l.s4 1966171168
        %v2977 = vunpack.c.0.s8 %v2976
        %v2978 = vlaneseq
        %v2979 = vshrl.u32 %v2978, 7
        %v2980 = vsub.s32 %v2977, %v2979
        %v2981 = vrot.slane %v2953, %v2980
        %v2982 = vcombine.high %v2960, %v2960
        %v2983 = vcombine.high %v2967, %v2967
        %v2984 = vcombine.high %v2974, %v2974
        %v2985 = vcombine.high %v2981, %v2981
        %v2986 = vcombine.high %v2282, %v2282
        %v2988 = vunpack.c.l.s4 1966171168
        %v2989 = vunpack.c.0.s8 %v2988
        %v2990 = vlaneseq
        %v2991 = vshrl.u32 %v2990, 7
        %v2992 = vsub.s32 %v2989, %v2991
        %v2993 = vrot.slane %v2282, %v2992
        %v2995 = vunpack.c.l.s4 1966171168
        %v2996 = vunpack.c.0.s8 %v2995
        %v2997 = vlaneseq
        %v2998 = vshrl.u32 %v2997, 7
        %v2999 = vsub.s32 %v2996, %v2998
        %v3000 = vrot.slane %v2986, %v2999
        %v3001 = vcombine.high %v2993, %v2993
        %v3002 = vcombine.high %v3000, %v3000
        %v3004 = vunpack.c.l.s4 1966171168
        %v3005 = vunpack.c.0.s8 %v3004
        %v3006 = vlaneseq
        %v3007 = vshrl.u32 %v3006, 7
        %v3008 = vsub.s32 %v3005, %v3007
        %v3009 = vrot.slane %v2993, %v3008
        %v3011 = vunpack.c.l.s4 1966171168
        %v3012 = vunpack.c.0.s8 %v3011
        %v3013 = vlaneseq
        %v3014 = vshrl.u32 %v3013, 7
        %v3015 = vsub.s32 %v3012, %v3014
        %v3016 = vrot.slane %v3000, %v3015
        %v3018 = vunpack.c.l.s4 1966171168
        %v3019 = vunpack.c.0.s8 %v3018
        %v3020 = vlaneseq
        %v3021 = vshrl.u32 %v3020, 7
        %v3022 = vsub.s32 %v3019, %v3021
        %v3023 = vrot.slane %v3001, %v3022
        %v3025 = vunpack.c.l.s4 1966171168
        %v3026 = vunpack.c.0.s8 %v3025
        %v3027 = vlaneseq
        %v3028 = vshrl.u32 %v3027, 7
        %v3029 = vsub.s32 %v3026, %v3028
        %v3030 = vrot.slane %v3002, %v3029
        %v3031 = vcombine.high %v3009, %v3009
        %v3032 = vcombine.high %v3016, %v3016
        %v3033 = vcombine.high %v3023, %v3023
        %v3034 = vcombine.high %v3030, %v3030
        %v3035 = vcombine.high %v2283, %v2283
        %v3037 = vunpack.c.l.s4 1966171168
        %v3038 = vunpack.c.0.s8 %v3037
        %v3039 = vlaneseq
        %v3040 = vshrl.u32 %v3039, 7
        %v3041 = vsub.s32 %v3038, %v3040
        %v3042 = vrot.slane %v2283, %v3041
        %v3044 = vunpack.c.l.s4 1966171168
        %v3045 = vunpack.c.0.s8 %v3044
        %v3046 = vlaneseq
        %v3047 = vshrl.u32 %v3046, 7
        %v3048 = vsub.s32 %v3045, %v3047
        %v3049 = vrot.slane %v3035, %v3048
        %v3050 = vcombine.high %v3042, %v3042
        %v3051 = vcombine.high %v3049, %v3049
        %v3053 = vunpack.c.l.s4 1966171168
        %v3054 = vunpack.c.0.s8 %v3053
        %v3055 = vlaneseq
        %v3056 = vshrl.u32 %v3055, 7
        %v3057 = vsub.s32 %v3054, %v3056
        %v3058 = vrot.slane %v3042, %v3057
        %v3060 = vunpack.c.l.s4 1966171168
        %v3061 = vunpack.c.0.s8 %v3060
        %v3062 = vlaneseq
        %v3063 = vshrl.u32 %v3062, 7
        %v3064 = vsub.s32 %v3061, %v3063
        %v3065 = vrot.slane %v3049, %v3064
        %v3067 = vunpack.c.l.s4 1966171168
        %v3068 = vunpack.c.0.s8 %v3067
        %v3069 = vlaneseq
        %v3070 = vshrl.u32 %v3069, 7
        %v3071 = vsub.s32 %v3068, %v3070
        %v3072 = vrot.slane %v3050, %v3071
        %v3074 = vunpack.c.l.s4 1966171168
        %v3075 = vunpack.c.0.s8 %v3074
        %v3076 = vlaneseq
        %v3077 = vshrl.u32 %v3076, 7
        %v3078 = vsub.s32 %v3075, %v3077
        %v3079 = vrot.slane %v3051, %v3078
        %v3080 = vcombine.high %v3058, %v3058
        %v3081 = vcombine.high %v3065, %v3065
        %v3082 = vcombine.high %v3072, %v3072
        %v3083 = vcombine.high %v3079, %v3079
        %v3084 = vlaneseq
        %v3085 = vshrl.u32 %v3084, 7
        %v3086 = vsub.s32 0, %v3085
        %v3087 = vrot.slane %v2323, %v3086
        %v3088 = vlaneseq
        %v3089 = vshrl.u32 %v3088, 7
        %v3090 = vsub.s32 0, %v3089
        %v3091 = vrot.slane %v2337, %v3090
        %v3092 = vlaneseq
        %v3093 = vshrl.u32 %v3092, 7
        %v3094 = vsub.s32 0, %v3093
        %v3095 = vrot.slane %v2345, %v3094
        %v3096 = vlaneseq
        %v3097 = vshrl.u32 %v3096, 7
        %v3098 = vsub.s32 0, %v3097
        %v3099 = vrot.slane %v2347, %v3098
        %v3100 = vlaneseq
        %v3101 = vshrl.u32 %v3100, 7
        %v3102 = vsub.s32 0, %v3101
        %v3103 = vrot.slane %v2330, %v3102
        %v3104 = vlaneseq
        %v3105 = vshrl.u32 %v3104, 7
        %v3106 = vsub.s32 0, %v3105
        %v3107 = vrot.slane %v2344, %v3106
        %v3108 = vlaneseq
        %v3109 = vshrl.u32 %v3108, 7
        %v3110 = vsub.s32 0, %v3109
        %v3111 = vrot.slane %v2346, %v3110
        %v3112 = vlaneseq
        %v3113 = vshrl.u32 %v3112, 7
        %v3114 = vsub.s32 0, %v3113
        %v3115 = vrot.slane %v2348, %v3114
        %v3116 = vlaneseq
        %v3117 = vshrl.u32 %v3116, 7
        %v3118 = vsub.s32 0, %v3117
        %v3119 = vrot.slane %v2372, %v3118
        %v3120 = vlaneseq
        %v3121 = vshrl.u32 %v3120, 7
        %v3122 = vsub.s32 0, %v3121
        %v3123 = vrot.slane %v2386, %v3122
        %v3124 = vlaneseq
        %v3125 = vshrl.u32 %v3124, 7
        %v3126 = vsub.s32 0, %v3125
        %v3127 = vrot.slane %v2394, %v3126
        %v3128 = vlaneseq
        %v3129 = vshrl.u32 %v3128, 7
        %v3130 = vsub.s32 0, %v3129
        %v3131 = vrot.slane %v2396, %v3130
        %v3132 = vlaneseq
        %v3133 = vshrl.u32 %v3132, 7
        %v3134 = vsub.s32 0, %v3133
        %v3135 = vrot.slane %v2379, %v3134
        %v3136 = vlaneseq
        %v3137 = vshrl.u32 %v3136, 7
        %v3138 = vsub.s32 0, %v3137
        %v3139 = vrot.slane %v2393, %v3138
        %v3140 = vlaneseq
        %v3141 = vshrl.u32 %v3140, 7
        %v3142 = vsub.s32 0, %v3141
        %v3143 = vrot.slane %v2395, %v3142
        %v3144 = vlaneseq
        %v3145 = vshrl.u32 %v3144, 7
        %v3146 = vsub.s32 0, %v3145
        %v3147 = vrot.slane %v2397, %v3146
        %v3148 = vlaneseq
        %v3149 = vshrl.u32 %v3148, 7
        %v3150 = vsub.s32 0, %v3149
        %v3151 = vrot.slane %v2421, %v3150
        %v3152 = vlaneseq
        %v3153 = vshrl.u32 %v3152, 7
        %v3154 = vsub.s32 0, %v3153
        %v3155 = vrot.slane %v2435, %v3154
        %v3156 = vlaneseq
        %v3157 = vshrl.u32 %v3156, 7
        %v3158 = vsub.s32 0, %v3157
        %v3159 = vrot.slane %v2443, %v3158
        %v3160 = vlaneseq
        %v3161 = vshrl.u32 %v3160, 7
        %v3162 = vsub.s32 0, %v3161
        %v3163 = vrot.slane %v2445, %v3162
        %v3164 = vlaneseq
        %v3165 = vshrl.u32 %v3164, 7
        %v3166 = vsub.s32 0, %v3165
        %v3167 = vrot.slane %v2428, %v3166
        %v3168 = vlaneseq
        %v3169 = vshrl.u32 %v3168, 7
        %v3170 = vsub.s32 0, %v3169
        %v3171 = vrot.slane %v2442, %v3170
        %v3172 = vlaneseq
        %v3173 = vshrl.u32 %v3172, 7
        %v3174 = vsub.s32 0, %v3173
        %v3175 = vrot.slane %v2444, %v3174
        %v3176 = vlaneseq
        %v3177 = vshrl.u32 %v3176, 7
        %v3178 = vsub.s32 0, %v3177
        %v3179 = vrot.slane %v2446, %v3178
        %v3180 = vlaneseq
        %v3181 = vshrl.u32 %v3180, 7
        %v3182 = vsub.s32 0, %v3181
        %v3183 = vrot.slane %v2470, %v3182
        %v3184 = vlaneseq
        %v3185 = vshrl.u32 %v3184, 7
        %v3186 = vsub.s32 0, %v3185
        %v3187 = vrot.slane %v2484, %v3186
        %v3188 = vlaneseq
        %v3189 = vshrl.u32 %v3188, 7
        %v3190 = vsub.s32 0, %v3189
        %v3191 = vrot.slane %v2492, %v3190
        %v3192 = vlaneseq
        %v3193 = vshrl.u32 %v3192, 7
        %v3194 = vsub.s32 0, %v3193
        %v3195 = vrot.slane %v2494, %v3194
        %v3196 = vlaneseq
        %v3197 = vshrl.u32 %v3196, 7
        %v3198 = vsub.s32 0, %v3197
        %v3199 = vrot.slane %v2477, %v3198
        %v3200 = vlaneseq
        %v3201 = vshrl.u32 %v3200, 7
        %v3202 = vsub.s32 0, %v3201
        %v3203 = vrot.slane %v2491, %v3202
        %v3204 = vlaneseq
        %v3205 = vshrl.u32 %v3204, 7
        %v3206 = vsub.s32 0, %v3205
        %v3207 = vrot.slane %v2493, %v3206
        %v3208 = vlaneseq
        %v3209 = vshrl.u32 %v3208, 7
        %v3210 = vsub.s32 0, %v3209
        %v3211 = vrot.slane %v2495, %v3210
        %v3212 = vlaneseq
        %v3213 = vshrl.u32 %v3212, 7
        %v3214 = vsub.s32 0, %v3213
        %v3215 = vrot.slane %v2519, %v3214
        %v3216 = vlaneseq
        %v3217 = vshrl.u32 %v3216, 7
        %v3218 = vsub.s32 0, %v3217
        %v3219 = vrot.slane %v2533, %v3218
        %v3220 = vlaneseq
        %v3221 = vshrl.u32 %v3220, 7
        %v3222 = vsub.s32 0, %v3221
        %v3223 = vrot.slane %v2541, %v3222
        %v3224 = vlaneseq
        %v3225 = vshrl.u32 %v3224, 7
        %v3226 = vsub.s32 0, %v3225
        %v3227 = vrot.slane %v2543, %v3226
        %v3228 = vlaneseq
        %v3229 = vshrl.u32 %v3228, 7
        %v3230 = vsub.s32 0, %v3229
        %v3231 = vrot.slane %v2526, %v3230
        %v3232 = vlaneseq
        %v3233 = vshrl.u32 %v3232, 7
        %v3234 = vsub.s32 0, %v3233
        %v3235 = vrot.slane %v2540, %v3234
        %v3236 = vlaneseq
        %v3237 = vshrl.u32 %v3236, 7
        %v3238 = vsub.s32 0, %v3237
        %v3239 = vrot.slane %v2542, %v3238
        %v3240 = vlaneseq
        %v3241 = vshrl.u32 %v3240, 7
        %v3242 = vsub.s32 0, %v3241
        %v3243 = vrot.slane %v2544, %v3242
        %v3244 = vlaneseq
        %v3245 = vshrl.u32 %v3244, 7
        %v3246 = vsub.s32 0, %v3245
        %v3247 = vrot.slane %v2568, %v3246
        %v3248 = vlaneseq
        %v3249 = vshrl.u32 %v3248, 7
        %v3250 = vsub.s32 0, %v3249
        %v3251 = vrot.slane %v2582, %v3250
        %v3252 = vlaneseq
        %v3253 = vshrl.u32 %v3252, 7
        %v3254 = vsub.s32 0, %v3253
        %v3255 = vrot.slane %v2590, %v3254
        %v3256 = vlaneseq
        %v3257 = vshrl.u32 %v3256, 7
        %v3258 = vsub.s32 0, %v3257
        %v3259 = vrot.slane %v2592, %v3258
        %v3260 = vlaneseq
        %v3261 = vshrl.u32 %v3260, 7
        %v3262 = vsub.s32 0, %v3261
        %v3263 = vrot.slane %v2575, %v3262
        %v3264 = vlaneseq
        %v3265 = vshrl.u32 %v3264, 7
        %v3266 = vsub.s32 0, %v3265
        %v3267 = vrot.slane %v2589, %v3266
        %v3268 = vlaneseq
        %v3269 = vshrl.u32 %v3268, 7
        %v3270 = vsub.s32 0, %v3269
        %v3271 = vrot.slane %v2591, %v3270
        %v3272 = vlaneseq
        %v3273 = vshrl.u32 %v3272, 7
        %v3274 = vsub.s32 0, %v3273
        %v3275 = vrot.slane %v2593, %v3274
        %v3276 = vlaneseq
        %v3277 = vshrl.u32 %v3276, 7
        %v3278 = vsub.s32 0, %v3277
        %v3279 = vrot.slane %v2617, %v3278
        %v3280 = vlaneseq
        %v3281 = vshrl.u32 %v3280, 7
        %v3282 = vsub.s32 0, %v3281
        %v3283 = vrot.slane %v2631, %v3282
        %v3284 = vlaneseq
        %v3285 = vshrl.u32 %v3284, 7
        %v3286 = vsub.s32 0, %v3285
        %v3287 = vrot.slane %v2639, %v3286
        %v3288 = vlaneseq
        %v3289 = vshrl.u32 %v3288, 7
        %v3290 = vsub.s32 0, %v3289
        %v3291 = vrot.slane %v2641, %v3290
        %v3292 = vlaneseq
        %v3293 = vshrl.u32 %v3292, 7
        %v3294 = vsub.s32 0, %v3293
        %v3295 = vrot.slane %v2624, %v3294
        %v3296 = vlaneseq
        %v3297 = vshrl.u32 %v3296, 7
        %v3298 = vsub.s32 0, %v3297
        %v3299 = vrot.slane %v2638, %v3298
        %v3300 = vlaneseq
        %v3301 = vshrl.u32 %v3300, 7
        %v3302 = vsub.s32 0, %v3301
        %v3303 = vrot.slane %v2640, %v3302
        %v3304 = vlaneseq
        %v3305 = vshrl.u32 %v3304, 7
        %v3306 = vsub.s32 0, %v3305
        %v3307 = vrot.slane %v2642, %v3306
        %v3308 = vlaneseq
        %v3309 = vshrl.u32 %v3308, 7
        %v3310 = vsub.s32 0, %v3309
        %v3311 = vrot.slane %v2666, %v3310
        %v3312 = vlaneseq
        %v3313 = vshrl.u32 %v3312, 7
        %v3314 = vsub.s32 0, %v3313
        %v3315 = vrot.slane %v2680, %v3314
        %v3316 = vlaneseq
        %v3317 = vshrl.u32 %v3316, 7
        %v3318 = vsub.s32 0, %v3317
        %v3319 = vrot.slane %v2688, %v3318
        %v3320 = vlaneseq
        %v3321 = vshrl.u32 %v3320, 7
        %v3322 = vsub.s32 0, %v3321
        %v3323 = vrot.slane %v2690, %v3322
        %v3324 = vlaneseq
        %v3325 = vshrl.u32 %v3324, 7
        %v3326 = vsub.s32 0, %v3325
        %v3327 = vrot.slane %v2673, %v3326
        %v3328 = vlaneseq
        %v3329 = vshrl.u32 %v3328, 7
        %v3330 = vsub.s32 0, %v3329
        %v3331 = vrot.slane %v2687, %v3330
        %v3332 = vlaneseq
        %v3333 = vshrl.u32 %v3332, 7
        %v3334 = vsub.s32 0, %v3333
        %v3335 = vrot.slane %v2689, %v3334
        %v3336 = vlaneseq
        %v3337 = vshrl.u32 %v3336, 7
        %v3338 = vsub.s32 0, %v3337
        %v3339 = vrot.slane %v2691, %v3338
        %v3340 = vlaneseq
        %v3341 = vshrl.u32 %v3340, 7
        %v3342 = vsub.s32 0, %v3341
        %v3343 = vrot.slane %v2715, %v3342
        %v3344 = vlaneseq
        %v3345 = vshrl.u32 %v3344, 7
        %v3346 = vsub.s32 0, %v3345
        %v3347 = vrot.slane %v2729, %v3346
        %v3348 = vlaneseq
        %v3349 = vshrl.u32 %v3348, 7
        %v3350 = vsub.s32 0, %v3349
        %v3351 = vrot.slane %v2737, %v3350
        %v3352 = vlaneseq
        %v3353 = vshrl.u32 %v3352, 7
        %v3354 = vsub.s32 0, %v3353
        %v3355 = vrot.slane %v2739, %v3354
        %v3356 = vlaneseq
        %v3357 = vshrl.u32 %v3356, 7
        %v3358 = vsub.s32 0, %v3357
        %v3359 = vrot.slane %v2722, %v3358
        %v3360 = vlaneseq
        %v3361 = vshrl.u32 %v3360, 7
        %v3362 = vsub.s32 0, %v3361
        %v3363 = vrot.slane %v2736, %v3362
        %v3364 = vlaneseq
        %v3365 = vshrl.u32 %v3364, 7
        %v3366 = vsub.s32 0, %v3365
        %v3367 = vrot.slane %v2738, %v3366
        %v3368 = vlaneseq
        %v3369 = vshrl.u32 %v3368, 7
        %v3370 = vsub.s32 0, %v3369
        %v3371 = vrot.slane %v2740, %v3370
        %v3372 = vlaneseq
        %v3373 = vshrl.u32 %v3372, 7
        %v3374 = vsub.s32 0, %v3373
        %v3375 = vrot.slane %v2764, %v3374
        %v3376 = vlaneseq
        %v3377 = vshrl.u32 %v3376, 7
        %v3378 = vsub.s32 0, %v3377
        %v3379 = vrot.slane %v2778, %v3378
        %v3380 = vlaneseq
        %v3381 = vshrl.u32 %v3380, 7
        %v3382 = vsub.s32 0, %v3381
        %v3383 = vrot.slane %v2786, %v3382
        %v3384 = vlaneseq
        %v3385 = vshrl.u32 %v3384, 7
        %v3386 = vsub.s32 0, %v3385
        %v3387 = vrot.slane %v2788, %v3386
        %v3388 = vlaneseq
        %v3389 = vshrl.u32 %v3388, 7
        %v3390 = vsub.s32 0, %v3389
        %v3391 = vrot.slane %v2771, %v3390
        %v3392 = vlaneseq
        %v3393 = vshrl.u32 %v3392, 7
        %v3394 = vsub.s32 0, %v3393
        %v3395 = vrot.slane %v2785, %v3394
        %v3396 = vlaneseq
        %v3397 = vshrl.u32 %v3396, 7
        %v3398 = vsub.s32 0, %v3397
        %v3399 = vrot.slane %v2787, %v3398
        %v3400 = vlaneseq
        %v3401 = vshrl.u32 %v3400, 7
        %v3402 = vsub.s32 0, %v3401
        %v3403 = vrot.slane %v2789, %v3402
        %v3404 = vlaneseq
        %v3405 = vshrl.u32 %v3404, 7
        %v3406 = vsub.s32 0, %v3405
        %v3407 = vrot.slane %v2813, %v3406
        %v3408 = vlaneseq
        %v3409 = vshrl.u32 %v3408, 7
        %v3410 = vsub.s32 0, %v3409
        %v3411 = vrot.slane %v2827, %v3410
        %v3412 = vlaneseq
        %v3413 = vshrl.u32 %v3412, 7
        %v3414 = vsub.s32 0, %v3413
        %v3415 = vrot.slane %v2835, %v3414
        %v3416 = vlaneseq
        %v3417 = vshrl.u32 %v3416, 7
        %v3418 = vsub.s32 0, %v3417
        %v3419 = vrot.slane %v2837, %v3418
        %v3420 = vlaneseq
        %v3421 = vshrl.u32 %v3420, 7
        %v3422 = vsub.s32 0, %v3421
        %v3423 = vrot.slane %v2820, %v3422
        %v3424 = vlaneseq
        %v3425 = vshrl.u32 %v3424, 7
        %v3426 = vsub.s32 0, %v3425
        %v3427 = vrot.slane %v2834, %v3426
        %v3428 = vlaneseq
        %v3429 = vshrl.u32 %v3428, 7
        %v3430 = vsub.s32 0, %v3429
        %v3431 = vrot.slane %v2836, %v3430
        %v3432 = vlaneseq
        %v3433 = vshrl.u32 %v3432, 7
        %v3434 = vsub.s32 0, %v3433
        %v3435 = vrot.slane %v2838, %v3434
        %v3436 = vlaneseq
        %v3437 = vshrl.u32 %v3436, 7
        %v3438 = vsub.s32 0, %v3437
        %v3439 = vrot.slane %v2862, %v3438
        %v3440 = vlaneseq
        %v3441 = vshrl.u32 %v3440, 7
        %v3442 = vsub.s32 0, %v3441
        %v3443 = vrot.slane %v2876, %v3442
        %v3444 = vlaneseq
        %v3445 = vshrl.u32 %v3444, 7
        %v3446 = vsub.s32 0, %v3445
        %v3447 = vrot.slane %v2884, %v3446
        %v3448 = vlaneseq
        %v3449 = vshrl.u32 %v3448, 7
        %v3450 = vsub.s32 0, %v3449
        %v3451 = vrot.slane %v2886, %v3450
        %v3452 = vlaneseq
        %v3453 = vshrl.u32 %v3452, 7
        %v3454 = vsub.s32 0, %v3453
        %v3455 = vrot.slane %v2869, %v3454
        %v3456 = vlaneseq
        %v3457 = vshrl.u32 %v3456, 7
        %v3458 = vsub.s32 0, %v3457
        %v3459 = vrot.slane %v2883, %v3458
        %v3460 = vlaneseq
        %v3461 = vshrl.u32 %v3460, 7
        %v3462 = vsub.s32 0, %v3461
        %v3463 = vrot.slane %v2885, %v3462
        %v3464 = vlaneseq
        %v3465 = vshrl.u32 %v3464, 7
        %v3466 = vsub.s32 0, %v3465
        %v3467 = vrot.slane %v2887, %v3466
        %v3468 = vlaneseq
        %v3469 = vshrl.u32 %v3468, 7
        %v3470 = vsub.s32 0, %v3469
        %v3471 = vrot.slane %v2911, %v3470
        %v3472 = vlaneseq
        %v3473 = vshrl.u32 %v3472, 7
        %v3474 = vsub.s32 0, %v3473
        %v3475 = vrot.slane %v2925, %v3474
        %v3476 = vlaneseq
        %v3477 = vshrl.u32 %v3476, 7
        %v3478 = vsub.s32 0, %v3477
        %v3479 = vrot.slane %v2933, %v3478
        %v3480 = vlaneseq
        %v3481 = vshrl.u32 %v3480, 7
        %v3482 = vsub.s32 0, %v3481
        %v3483 = vrot.slane %v2935, %v3482
        %v3484 = vlaneseq
        %v3485 = vshrl.u32 %v3484, 7
        %v3486 = vsub.s32 0, %v3485
        %v3487 = vrot.slane %v2918, %v3486
        %v3488 = vlaneseq
        %v3489 = vshrl.u32 %v3488, 7
        %v3490 = vsub.s32 0, %v3489
        %v3491 = vrot.slane %v2932, %v3490
        %v3492 = vlaneseq
        %v3493 = vshrl.u32 %v3492, 7
        %v3494 = vsub.s32 0, %v3493
        %v3495 = vrot.slane %v2934, %v3494
        %v3496 = vlaneseq
        %v3497 = vshrl.u32 %v3496, 7
        %v3498 = vsub.s32 0, %v3497
        %v3499 = vrot.slane %v2936, %v3498
        %v3500 = vlaneseq
        %v3501 = vshrl.u32 %v3500, 7
        %v3502 = vsub.s32 0, %v3501
        %v3503 = vrot.slane %v2960, %v3502
        %v3504 = vlaneseq
        %v3505 = vshrl.u32 %v3504, 7
        %v3506 = vsub.s32 0, %v3505
        %v3507 = vrot.slane %v2974, %v3506
        %v3508 = vlaneseq
        %v3509 = vshrl.u32 %v3508, 7
        %v3510 = vsub.s32 0, %v3509
        %v3511 = vrot.slane %v2982, %v3510
        %v3512 = vlaneseq
        %v3513 = vshrl.u32 %v3512, 7
        %v3514 = vsub.s32 0, %v3513
        %v3515 = vrot.slane %v2984, %v3514
        %v3516 = vlaneseq
        %v3517 = vshrl.u32 %v3516, 7
        %v3518 = vsub.s32 0, %v3517
        %v3519 = vrot.slane %v2967, %v3518
        %v3520 = vlaneseq
        %v3521 = vshrl.u32 %v3520, 7
        %v3522 = vsub.s32 0, %v3521
        %v3523 = vrot.slane %v2981, %v3522
        %v3524 = vlaneseq
        %v3525 = vshrl.u32 %v3524, 7
        %v3526 = vsub.s32 0, %v3525
        %v3527 = vrot.slane %v2983, %v3526
        %v3528 = vlaneseq
        %v3529 = vshrl.u32 %v3528, 7
        %v3530 = vsub.s32 0, %v3529
        %v3531 = vrot.slane %v2985, %v3530
        %v3532 = vlaneseq
        %v3533 = vshrl.u32 %v3532, 7
        %v3534 = vsub.s32 0, %v3533
        %v3535 = vrot.slane %v3009, %v3534
        %v3536 = vlaneseq
        %v3537 = vshrl.u32 %v3536, 7
        %v3538 = vsub.s32 0, %v3537
        %v3539 = vrot.slane %v3023, %v3538
        %v3540 = vlaneseq
        %v3541 = vshrl.u32 %v3540, 7
        %v3542 = vsub.s32 0, %v3541
        %v3543 = vrot.slane %v3031, %v3542
        %v3544 = vlaneseq
        %v3545 = vshrl.u32 %v3544, 7
        %v3546 = vsub.s32 0, %v3545
        %v3547 = vrot.slane %v3033, %v3546
        %v3548 = vlaneseq
        %v3549 = vshrl.u32 %v3548, 7
        %v3550 = vsub.s32 0, %v3549
        %v3551 = vrot.slane %v3016, %v3550
        %v3552 = vlaneseq
        %v3553 = vshrl.u32 %v3552, 7
        %v3554 = vsub.s32 0, %v3553
        %v3555 = vrot.slane %v3030, %v3554
        %v3556 = vlaneseq
        %v3557 = vshrl.u32 %v3556, 7
        %v3558 = vsub.s32 0, %v3557
        %v3559 = vrot.slane %v3032, %v3558
        %v3560 = vlaneseq
        %v3561 = vshrl.u32 %v3560, 7
        %v3562 = vsub.s32 0, %v3561
        %v3563 = vrot.slane %v3034, %v3562
        %v3564 = vlaneseq
        %v3565 = vshrl.u32 %v3564, 7
        %v3566 = vsub.s32 0, %v3565
        %v3567 = vrot.slane %v3058, %v3566
        %v3568 = vlaneseq
        %v3569 = vshrl.u32 %v3568, 7
        %v3570 = vsub.s32 0, %v3569
        %v3571 = vrot.slane %v3072, %v3570
        %v3572 = vlaneseq
        %v3573 = vshrl.u32 %v3572, 7
        %v3574 = vsub.s32 0, %v3573
        %v3575 = vrot.slane %v3080, %v3574
        %v3576 = vlaneseq
        %v3577 = vshrl.u32 %v3576, 7
        %v3578 = vsub.s32 0, %v3577
        %v3579 = vrot.slane %v3082, %v3578
        %v3580 = vlaneseq
        %v3581 = vshrl.u32 %v3580, 7
        %v3582 = vsub.s32 0, %v3581
        %v3583 = vrot.slane %v3065, %v3582
        %v3584 = vlaneseq
        %v3585 = vshrl.u32 %v3584, 7
        %v3586 = vsub.s32 0, %v3585
        %v3587 = vrot.slane %v3079, %v3586
        %v3588 = vlaneseq
        %v3589 = vshrl.u32 %v3588, 7
        %v3590 = vsub.s32 0, %v3589
        %v3591 = vrot.slane %v3081, %v3590
        %v3592 = vlaneseq
        %v3593 = vshrl.u32 %v3592, 7
        %v3594 = vsub.s32 0, %v3593
        %v3595 = vrot.slane %v3083, %v3594
        %3724 = vst [vmem:[%s217] sm:$0xf] %v3087
        %3725 = vst [vmem:[%s217 + $0x4] sm:$0xf] %v3091
        %3726 = vst [vmem:[%s217 + $0x8] sm:$0xf] %v3095
        %3727 = vst [vmem:[%s217 + $0xc] sm:$0xf] %v3099
        %3728 = vst [vmem:[%s217 + $0x10] sm:$0xf] %v3103
        %3729 = vst [vmem:[%s217 + $0x14] sm:$0xf] %v3107
        %3730 = vst [vmem:[%s217 + $0x18] sm:$0xf] %v3111
        %3731 = vst [vmem:[%s217 + $0x1c] sm:$0xf] %v3115
        %3732 = vst [vmem:[%s217 + $0x20] sm:$0xf] %v3119
        %3733 = vst [vmem:[%s217 + $0x24] sm:$0xf] %v3123
        %3734 = vst [vmem:[%s217 + $0x28] sm:$0xf] %v3127
        %3735 = vst [vmem:[%s217 + $0x2c] sm:$0xf] %v3131
        %3736 = vst [vmem:[%s217 + $0x30] sm:$0xf] %v3135
        %3737 = vst [vmem:[%s217 + $0x34] sm:$0xf] %v3139
        %3738 = vst [vmem:[%s217 + $0x38] sm:$0xf] %v3143
        %3739 = vst [vmem:[%s217 + $0x3c] sm:$0xf] %v3147
        %3740 = vst [vmem:[%s217 + $0x40] sm:$0xf] %v3151
        %3741 = vst [vmem:[%s217 + $0x44] sm:$0xf] %v3155
        %3742 = vst [vmem:[%s217 + $0x48] sm:$0xf] %v3159
        %3743 = vst [vmem:[%s217 + $0x4c] sm:$0xf] %v3163
        %3744 = vst [vmem:[%s217 + $0x50] sm:$0xf] %v3167
        %3745 = vst [vmem:[%s217 + $0x54] sm:$0xf] %v3171
        %3746 = vst [vmem:[%s217 + $0x58] sm:$0xf] %v3175
        %3747 = vst [vmem:[%s217 + $0x5c] sm:$0xf] %v3179
        %3748 = vst [vmem:[%s217 + $0x60] sm:$0xf] %v3183
        %3749 = vst [vmem:[%s217 + $0x64] sm:$0xf] %v3187
        %3750 = vst [vmem:[%s217 + $0x68] sm:$0xf] %v3191
        %3751 = vst [vmem:[%s217 + $0x6c] sm:$0xf] %v3195
        %3752 = vst [vmem:[%s217 + $0x70] sm:$0xf] %v3199
        %3753 = vst [vmem:[%s217 + $0x74] sm:$0xf] %v3203
        %3754 = vst [vmem:[%s217 + $0x78] sm:$0xf] %v3207
        %3755 = vst [vmem:[%s217 + $0x7c] sm:$0xf] %v3211
        %3756 = vst [vmem:[%s217 + $0x80] sm:$0xf] %v3215
        %3757 = vst [vmem:[%s217 + $0x84] sm:$0xf] %v3219
        %3758 = vst [vmem:[%s217 + $0x88] sm:$0xf] %v3223
        %3759 = vst [vmem:[%s217 + $0x8c] sm:$0xf] %v3227
        %3760 = vst [vmem:[%s217 + $0x90] sm:$0xf] %v3231
        %3761 = vst [vmem:[%s217 + $0x94] sm:$0xf] %v3235
        %3762 = vst [vmem:[%s217 + $0x98] sm:$0xf] %v3239
        %3763 = vst [vmem:[%s217 + $0x9c] sm:$0xf] %v3243
        %3764 = vst [vmem:[%s217 + $0xa0] sm:$0xf] %v3247
        %3765 = vst [vmem:[%s217 + $0xa4] sm:$0xf] %v3251
        %3766 = vst [vmem:[%s217 + $0xa8] sm:$0xf] %v3255
        %3767 = vst [vmem:[%s217 + $0xac] sm:$0xf] %v3259
        %3768 = vst [vmem:[%s217 + $0xb0] sm:$0xf] %v3263
        %3769 = vst [vmem:[%s217 + $0xb4] sm:$0xf] %v3267
        %3770 = vst [vmem:[%s217 + $0xb8] sm:$0xf] %v3271
        %3771 = vst [vmem:[%s217 + $0xbc] sm:$0xf] %v3275
        %3772 = vst [vmem:[%s217 + $0xc0] sm:$0xf] %v3279
        %3773 = vst [vmem:[%s217 + $0xc4] sm:$0xf] %v3283
        %3774 = vst [vmem:[%s217 + $0xc8] sm:$0xf] %v3287
        %3775 = vst [vmem:[%s217 + $0xcc] sm:$0xf] %v3291
        %3776 = vst [vmem:[%s217 + $0xd0] sm:$0xf] %v3295
        %3777 = vst [vmem:[%s217 + $0xd4] sm:$0xf] %v3299
        %3778 = vst [vmem:[%s217 + $0xd8] sm:$0xf] %v3303
        %3779 = vst [vmem:[%s217 + $0xdc] sm:$0xf] %v3307
        %3780 = vst [vmem:[%s217 + $0xe0] sm:$0xf] %v3311
        %3781 = vst [vmem:[%s217 + $0xe4] sm:$0xf] %v3315
        %3782 = vst [vmem:[%s217 + $0xe8] sm:$0xf] %v3319
        %3783 = vst [vmem:[%s217 + $0xec] sm:$0xf] %v3323
        %3784 = vst [vmem:[%s217 + $0xf0] sm:$0xf] %v3327
        %3785 = vst [vmem:[%s217 + $0xf4] sm:$0xf] %v3331
        %3786 = vst [vmem:[%s217 + $0xf8] sm:$0xf] %v3335
        %3787 = vst [vmem:[%s217 + $0xfc] sm:$0xf] %v3339
        %3788 = vst [vmem:[%s217 + $0x100] sm:$0xf] %v3343
        %3789 = vst [vmem:[%s217 + $0x104] sm:$0xf] %v3347
        %3790 = vst [vmem:[%s217 + $0x108] sm:$0xf] %v3351
        %3791 = vst [vmem:[%s217 + $0x10c] sm:$0xf] %v3355
        %3792 = vst [vmem:[%s217 + $0x110] sm:$0xf] %v3359
        %3793 = vst [vmem:[%s217 + $0x114] sm:$0xf] %v3363
        %3794 = vst [vmem:[%s217 + $0x118] sm:$0xf] %v3367
        %3795 = vst [vmem:[%s217 + $0x11c] sm:$0xf] %v3371
        %3796 = vst [vmem:[%s217 + $0x120] sm:$0xf] %v3375
        %3797 = vst [vmem:[%s217 + $0x124] sm:$0xf] %v3379
        %3798 = vst [vmem:[%s217 + $0x128] sm:$0xf] %v3383
        %3799 = vst [vmem:[%s217 + $0x12c] sm:$0xf] %v3387
        %3800 = vst [vmem:[%s217 + $0x130] sm:$0xf] %v3391
        %3801 = vst [vmem:[%s217 + $0x134] sm:$0xf] %v3395
        %3802 = vst [vmem:[%s217 + $0x138] sm:$0xf] %v3399
        %3803 = vst [vmem:[%s217 + $0x13c] sm:$0xf] %v3403
        %3804 = vst [vmem:[%s217 + $0x140] sm:$0xf] %v3407
        %3805 = vst [vmem:[%s217 + $0x144] sm:$0xf] %v3411
        %3806 = vst [vmem:[%s217 + $0x148] sm:$0xf] %v3415
        %3807 = vst [vmem:[%s217 + $0x14c] sm:$0xf] %v3419
        %3808 = vst [vmem:[%s217 + $0x150] sm:$0xf] %v3423
        %3809 = vst [vmem:[%s217 + $0x154] sm:$0xf] %v3427
        %3810 = vst [vmem:[%s217 + $0x158] sm:$0xf] %v3431
        %3811 = vst [vmem:[%s217 + $0x15c] sm:$0xf] %v3435
        %3812 = vst [vmem:[%s217 + $0x160] sm:$0xf] %v3439
        %3813 = vst [vmem:[%s217 + $0x164] sm:$0xf] %v3443
        %3814 = vst [vmem:[%s217 + $0x168] sm:$0xf] %v3447
        %3815 = vst [vmem:[%s217 + $0x16c] sm:$0xf] %v3451
        %3816 = vst [vmem:[%s217 + $0x170] sm:$0xf] %v3455
        %3817 = vst [vmem:[%s217 + $0x174] sm:$0xf] %v3459
        %3818 = vst [vmem:[%s217 + $0x178] sm:$0xf] %v3463
        %3819 = vst [vmem:[%s217 + $0x17c] sm:$0xf] %v3467
        %3820 = vst [vmem:[%s217 + $0x180] sm:$0xf] %v3471
        %3821 = vst [vmem:[%s217 + $0x184] sm:$0xf] %v3475
        %3822 = vst [vmem:[%s217 + $0x188] sm:$0xf] %v3479
        %3823 = vst [vmem:[%s217 + $0x18c] sm:$0xf] %v3483
        %3824 = vst [vmem:[%s217 + $0x190] sm:$0xf] %v3487
        %3825 = vst [vmem:[%s217 + $0x194] sm:$0xf] %v3491
        %3826 = vst [vmem:[%s217 + $0x198] sm:$0xf] %v3495
        %3827 = vst [vmem:[%s217 + $0x19c] sm:$0xf] %v3499
        %3828 = vst [vmem:[%s217 + $0x1a0] sm:$0xf] %v3503
        %3829 = vst [vmem:[%s217 + $0x1a4] sm:$0xf] %v3507
        %3830 = vst [vmem:[%s217 + $0x1a8] sm:$0xf] %v3511
        %3831 = vst [vmem:[%s217 + $0x1ac] sm:$0xf] %v3515
        %3832 = vst [vmem:[%s217 + $0x1b0] sm:$0xf] %v3519
        %3833 = vst [vmem:[%s217 + $0x1b4] sm:$0xf] %v3523
        %3834 = vst [vmem:[%s217 + $0x1b8] sm:$0xf] %v3527
        %3835 = vst [vmem:[%s217 + $0x1bc] sm:$0xf] %v3531
        %3836 = vst [vmem:[%s217 + $0x1c0] sm:$0xf] %v3535
        %3837 = vst [vmem:[%s217 + $0x1c4] sm:$0xf] %v3539
        %3838 = vst [vmem:[%s217 + $0x1c8] sm:$0xf] %v3543
        %3839 = vst [vmem:[%s217 + $0x1cc] sm:$0xf] %v3547
        %3840 = vst [vmem:[%s217 + $0x1d0] sm:$0xf] %v3551
        %3841 = vst [vmem:[%s217 + $0x1d4] sm:$0xf] %v3555
        %3842 = vst [vmem:[%s217 + $0x1d8] sm:$0xf] %v3559
        %3843 = vst [vmem:[%s217 + $0x1dc] sm:$0xf] %v3563
        %3844 = vst [vmem:[%s217 + $0x1e0] sm:$0xf] %v3567
        %3845 = vst [vmem:[%s217 + $0x1e4] sm:$0xf] %v3571
        %3846 = vst [vmem:[%s217 + $0x1e8] sm:$0xf] %v3575
        %3847 = vst [vmem:[%s217 + $0x1ec] sm:$0xf] %v3579
        %3848 = vst [vmem:[%s217 + $0x1f0] sm:$0xf] %v3583
        %3849 = vst [vmem:[%s217 + $0x1f4] sm:$0xf] %v3587
        %3850 = vst [vmem:[%s217 + $0x1f8] sm:$0xf] %v3591
        %3851 = vst [vmem:[%s217 + $0x1fc] sm:$0xf] %v3595
        %s3852 = sand.u32 %s97, 1
        %s3853 = scalar_lea.sflag [#allocation4], %s3852
        %s3854 = sand.u32 %s97, 1
        %s3855 = smul.addr %s3854, 512
        %s3856 = scalar_lea.vmem [#allocation8], %s3855
        // Predicated region
        $region45: #{tpu_custom_call.1} parent=31 // pred_check
          %p3857 = pneg %p107
        $region46: #{tpu_custom_call.1} parent=31 // pred_check_branch
          %3859 = sbr.rel (%p3857) target = $region48
        $region47: #{tpu_custom_call.1} parent=31 // pred_region
          %s3860 = smul.u32 128, %s21
          %s3862 = ssub.s32 8192, 8192
          %3863 = vsyncadd %s3853, %s3862
          %s3864 = smul.addr %s3860, 64
          %s3865 = scalar_lea.hbm %s3, %s3864
          %s3866 = sshll.u32 %s3856, 4
          %s3867 = int_to_ptr.vmem [resolvable:$true] %s3866
          %3872 = dma.vmem_to_hbm [thread:$0]  %s3867, 8192, %s3865, %s3853, 64, 64, 4
        $region48: #{tpu_custom_call.1} parent=31 // pred_fallthru
          _
      $region32: #{tpu_custom_call.1} parent=5 // pred_fallthru
        _
      %p3873 = scmp.le.s32.totalorder 2, %s16
      // Predicated region
      $region49: #{tpu_custom_call.1} parent=5 // pred_check
        %p3874 = pneg %p3873
      $region50: #{tpu_custom_call.1} parent=5 // pred_check_branch
        %3876 = sbr.rel (%p3874) target = $region52
      $region51: #{tpu_custom_call.1} parent=5 // pred_region
        %s3877 = ssub.s32 %s16, 2
        // Predicated region
        $region53: #{tpu_custom_call.1} parent=51 // pred_check
          %p3878 = pneg %p113
        $region54: #{tpu_custom_call.1} parent=51 // pred_check_branch
          %3880 = sbr.rel (%p3878) target = $region56
        $region55: #{tpu_custom_call.1} parent=51 // pred_region
          %s3881 = sand.u32 %s98, 1
          %s3882 = scalar_lea.sflag [#allocation4], %s3881
          %s3883 = sand.u32 %s98, 1
          %s3884 = smul.addr %s3883, 512
          %s3885 = scalar_lea.vmem [#allocation8], %s3884
          %3886 = dma.done %s3882, 8192
        $region56: #{tpu_custom_call.1} parent=51 // pred_fallthru
          _
      $region52: #{tpu_custom_call.1} parent=5 // pred_fallthru
        _
    $region6: #{tpu_custom_call.1} parent=1 // loop_footer
      %s20 = sadd.s32 1, %s16
    $region7: #{tpu_custom_call.1} parent=1 // loop_footer_branch
      %15 = sbr.rel target = $region3
    $region8: #{tpu_custom_call.1} parent=1 // loop_exit
      _
    %3887 = vsyncpa [#allocation3], 1
    %s3888 = scalar_lea.sflag [#allocation3], 1
    %3889 = vsyncpa %s3888, 1
    %3890 = vsyncpa [#allocation6], 1
    %3891 = vsyncpa [#allocation4], 1
    %s3892 = scalar_lea.sflag [#allocation4], 1
    %3893 = vsyncpa %s3892, 1

</llo_original>
